<compile_context>
chip_gen: v7x
topology: tpu7x:2x2x1
jax: 0.10.0
libtpu: 0.0.40
codegen_flags: <defaults>
</compile_context>

<pallas_src>
import functools

import jax
import jax.numpy as jnp
import numpy as np
from jax.experimental import pallas as pl
from jax.experimental.pallas import tpu as pltpu


def _gru_predictor_kernel(x_ref, w_enc_ref, b_enc_ref, w_i3_ref, w_h3_ref,
                          b4_ref, w_c_ref, b_c_ref,
                          out_ref,
                          gi3_s, hrelu_s,
                          *, nsteps, batch):
    hidden = w_enc_ref.shape[1]

    # ---- Batched non-recurrent compute over all T*B rows (feeds the MXU) ----
    enc = jnp.dot(x_ref[...], w_enc_ref[...], preferred_element_type=jnp.float32)
    enc = jnp.maximum(enc + b_enc_ref[...], 0.0)                       # (T*B, H)

    # GRU input projections, one per gate; leading-dim indexing keeps every
    # result / slice starting at lane 0.
    gi3_s[0] = jnp.dot(enc, w_i3_ref[0],
                       preferred_element_type=jnp.float32) + b4_ref[0]
    gi3_s[1] = jnp.dot(enc, w_i3_ref[1],
                       preferred_element_type=jnp.float32) + b4_ref[1]
    gi3_s[2] = jnp.dot(enc, w_i3_ref[2],
                       preferred_element_type=jnp.float32) + b4_ref[2]

    # Loop-invariant hoists (weights + the only bias needed inside the loop).
    w_hr = w_h3_ref[0]
    w_hz = w_h3_ref[1]
    w_hn = w_h3_ref[2]
    b_hn = b4_ref[3]                                                   # (1, H)

    # ---- Serial GRU recurrence: only h_{t-1} @ W_h* on the critical path ----
    def step(t, h_prev):
        row = pl.multiple_of(t * batch, batch)
        gh_r = jnp.dot(h_prev, w_hr, preferred_element_type=jnp.float32)
        gh_z = jnp.dot(h_prev, w_hz, preferred_element_type=jnp.float32)
        gh_n = jnp.dot(h_prev, w_hn, preferred_element_type=jnp.float32) + b_hn
        r = jax.nn.sigmoid(gi3_s[0, pl.ds(row, batch), :] + gh_r)
        z = jax.nn.sigmoid(gi3_s[1, pl.ds(row, batch), :] + gh_z)
        n = jnp.tanh(gi3_s[2, pl.ds(row, batch), :] + r * gh_n)
        h = (1.0 - z) * n + z * h_prev
        # Store relu(h_t): the critic head consumes relu(h), so the batched
        # matmul below needs no extra elementwise pass over (T*B, H).
        hrelu_s[pl.ds(row, batch), :] = jnp.maximum(h, 0.0)
        return h

    h0 = jnp.zeros((batch, hidden), jnp.float32)
    jax.lax.fori_loop(0, nsteps, step, h0, unroll=(nsteps <= 16))

    # ---- Batched critic head: one lane-dense (>=128-wide) store ----
    out_ref[...] = (jnp.dot(hrelu_s[...], w_c_ref[...],
                            preferred_element_type=jnp.float32) + b_c_ref[...])


def recurrent_scalar_predictor(x, params):
    """x: (T, B, input_dims) float32.  Returns (T, B, n_output_dims)."""
    T, B, D = x.shape
    w_enc, b_enc, w_ih, b_ih, w_hh, b_hh, w_c, b_c = params
    H = w_enc.shape[1]
    O = w_c.shape[1]
    TB = T * B
    OP = max(128, ((O + 127) // 128) * 128)       # lane-dense padded critic width

    # Split the (H, 3H) [r|z|n] weights into per-gate (H, H) blocks stacked on a
    # leading axis, so no in-kernel slice lands at a non-128 lane offset.
    w_i3 = jnp.stack([w_ih[:, :H], w_ih[:, H:2 * H], w_ih[:, 2 * H:]])   # (3,H,H)
    w_h3 = jnp.stack([w_hh[:, :H], w_hh[:, H:2 * H], w_hh[:, 2 * H:]])   # (3,H,H)
    # Combined biases: [b_ir+b_hr, b_iz+b_hz, b_in, b_hn] — only b_hn is needed
    # inside the recurrence (it multiplies with r), the rest fold into gi.
    b4 = jnp.stack([b_ih[:, :H] + b_hh[:, :H],
                    b_ih[:, H:2 * H] + b_hh[:, H:2 * H],
                    b_ih[:, 2 * H:],
                    b_hh[:, 2 * H:]])                                    # (4,1,H)

    # Zero-pad the critic head to >=128 output lanes (sliced back off below).
    w_c_p = jnp.zeros((H, OP), jnp.float32).at[:, :O].set(w_c)
    b_c_p = jnp.zeros((1, OP), jnp.float32).at[:, :O].set(b_c)

    x2 = x.reshape(TB, D)

    kernel = functools.partial(_gru_predictor_kernel, nsteps=T, batch=B)
    full2 = lambda i: (0, 0)
    full3 = lambda i: (0, 0, 0)

    flops = 2 * TB * D * H + 2 * 3 * TB * H * H + 2 * 3 * TB * H * H + 2 * TB * H * OP
    bytes_acc = 4 * (TB * D + D * H + 6 * H * H + 4 * H + H * OP + OP + TB * OP)

    out = pl.pallas_call(
        kernel,
        out_shape=jax.ShapeDtypeStruct((TB, OP), jnp.float32),
        grid_spec=pltpu.PrefetchScalarGridSpec(
            num_scalar_prefetch=0,
            grid=(1,),                                    # single invocation
            in_specs=[
                pl.BlockSpec((TB, D), full2),             # x, flattened (T*B, D)
                pl.BlockSpec((D, H), full2),              # W_enc
                pl.BlockSpec((1, H), full2),              # b_enc
                pl.BlockSpec((3, H, H), full3),           # W_i{r,z,n}
                pl.BlockSpec((3, H, H), full3),           # W_h{r,z,n}
                pl.BlockSpec((4, 1, H), full3),           # biases
                pl.BlockSpec((H, OP), full2),             # W_critic (padded)
                pl.BlockSpec((1, OP), full2),             # b_critic (padded)
            ],
            out_specs=pl.BlockSpec((TB, OP), full2),
            scratch_shapes=[
                pltpu.VMEM((3, TB, H), jnp.float32),      # gi (r,z,n)
                pltpu.VMEM((TB, H), jnp.float32),         # relu(h_t) for the head
            ],
        ),
        compiler_params=pltpu.CompilerParams(
            dimension_semantics=("arbitrary",),
            # TODO(synk): for large H (>=1024) raise vmem_limit_bytes and
            # consider bf16 weights; irrelevant at these sizes.
        ),
        cost_estimate=pl.CostEstimate(flops=flops,
                                      transcendentals=3 * TB * H,
                                      bytes_accessed=bytes_acc),
    )(x2, w_enc, b_enc, w_i3, w_h3, b4, w_c_p, b_c_p)

    return out[:, :O].reshape(T, B, O)


def make_params(key, input_dims, hidden, out_dims):
    """Deterministic synthetic parameters (PyTorch-like uniform init scale)."""
    ks = jax.random.split(key, 8)
    k_enc = 1.0 / np.sqrt(input_dims)
    k_h = 1.0 / np.sqrt(hidden)
    u = lambda k, shape, s: jax.random.uniform(k, shape, jnp.float32, -s, s)
    w_enc = u(ks[0], (input_dims, hidden), k_enc)
    b_enc = u(ks[1], (1, hidden), k_enc)
    w_ih = u(ks[2], (hidden, 3 * hidden), k_h)      # [r|z|n] columns
    b_ih = u(ks[3], (1, 3 * hidden), k_h)
    w_hh = u(ks[4], (hidden, 3 * hidden), k_h)
    b_hh = u(ks[5], (1, 3 * hidden), k_h)
    w_c = u(ks[6], (hidden, out_dims), k_h)
    b_c = u(ks[7], (1, out_dims), k_h)
    return (w_enc, b_enc, w_ih, b_ih, w_hh, b_hh, w_c, b_c)


def reference_forward(x, params):
    """Pure-JAX reference matching the PyTorch forward (time_dim=True)."""
    w_enc, b_enc, w_ih, b_ih, w_hh, b_hh, w_c, b_c = params
    H = w_enc.shape[1]
    T, B, _ = x.shape
    enc = jax.nn.relu(x.reshape(T * B, -1) @ w_enc + b_enc).reshape(T, B, H)

    def step(h_prev, e_t):
        gi = e_t @ w_ih + b_ih
        gh = h_prev @ w_hh + b_hh
        r = jax.nn.sigmoid(gi[:, :H] + gh[:, :H])
        z = jax.nn.sigmoid(gi[:, H:2 * H] + gh[:, H:2 * H])
        n = jnp.tanh(gi[:, 2 * H:] + r * gh[:, 2 * H:])
        h = (1.0 - z) * n + z * h_prev
        return h, h

    h0 = jnp.zeros((B, H), jnp.float32)
    _, hs = jax.lax.scan(step, h0, enc)
    return jax.nn.relu(hs) @ w_c + b_c


if __name__ == "__main__":
    T, B = 8, 8
    input_dims, n_latent_var, n_output_dims = 16, 32, 3

    key = jax.random.PRNGKey(0)
    k_x, k_p = jax.random.split(key)
    x = jax.random.normal(k_x, (T, B, input_dims), jnp.float32)
    params = make_params(k_p, input_dims, n_latent_var, n_output_dims)

    out = recurrent_scalar_predictor(x, params)
    out = jax.block_until_ready(out)

    ref = jax.block_until_ready(reference_forward(x, params))
    assert out.shape == (T, B, n_output_dims)
    np.testing.assert_allclose(np.asarray(out), np.asarray(ref), rtol=1e-5, atol=1e-5)

    print("KERNEL_OK")
</pallas_src>

<mosaic_0001>
module attributes {stable_mosaic.version = 11 : i64} {
  func.func @_gru_predictor_kernel(%arg0: i32, %arg1: memref<64x16xf32, #tpu.memory_space<vmem>>, %arg2: memref<16x32xf32, #tpu.memory_space<vmem>>, %arg3: memref<1x32xf32, #tpu.memory_space<vmem>>, %arg4: memref<3x32x32xf32, #tpu.memory_space<vmem>>, %arg5: memref<3x32x32xf32, #tpu.memory_space<vmem>>, %arg6: memref<4x1x32xf32, #tpu.memory_space<vmem>>, %arg7: memref<32x128xf32, #tpu.memory_space<vmem>>, %arg8: memref<1x128xf32, #tpu.memory_space<vmem>>, %arg9: memref<64x128xf32, #tpu.memory_space<vmem>>, %arg10: memref<3x64x32xf32, #tpu.memory_space<vmem>>, %arg11: memref<64x32xf32, #tpu.memory_space<vmem>>) attributes {dimension_semantics = [#tpu.dimension_semantics<arbitrary>], iteration_bounds = array<i64: 1>, scalar_prefetch = 0 : i64, scratch_operands = 2 : i64, tpu.core_type = #tpu.core_type<tc>, window_params = [{pipeline_mode = #tpu.pipeline_mode<synchronous>, transform_indices = @transform_0, window_bounds = array<i64: 64, 16>}, {pipeline_mode = #tpu.pipeline_mode<synchronous>, transform_indices = @transform_1, window_bounds = array<i64: 16, 32>}, {pipeline_mode = #tpu.pipeline_mode<synchronous>, transform_indices = @transform_2, window_bounds = array<i64: 1, 32>}, {pipeline_mode = #tpu.pipeline_mode<synchronous>, transform_indices = @transform_3, window_bounds = array<i64: 3, 32, 32>}, {pipeline_mode = #tpu.pipeline_mode<synchronous>, transform_indices = @transform_4, window_bounds = array<i64: 3, 32, 32>}, {pipeline_mode = #tpu.pipeline_mode<synchronous>, transform_indices = @transform_5, window_bounds = array<i64: 4, 1, 32>}, {pipeline_mode = #tpu.pipeline_mode<synchronous>, transform_indices = @transform_6, window_bounds = array<i64: 32, 128>}, {pipeline_mode = #tpu.pipeline_mode<synchronous>, transform_indices = @transform_7, window_bounds = array<i64: 1, 128>}, {pipeline_mode = #tpu.pipeline_mode<synchronous>, transform_indices = @transform_8, window_bounds = array<i64: 64, 128>}]} {
    %c0 = arith.constant 0 : index
    %c0_0 = arith.constant 0 : index
    %0 = vector.load %arg1[%c0, %c0_0] : memref<64x16xf32, #tpu.memory_space<vmem>>, vector<64x16xf32>
    %c0_1 = arith.constant 0 : index
    %c0_2 = arith.constant 0 : index
    %1 = vector.load %arg2[%c0_1, %c0_2] : memref<16x32xf32, #tpu.memory_space<vmem>>, vector<16x32xf32>
    %cst = arith.constant dense<0.000000e+00> : vector<64x32xf32>
    %2 = tpu.matmul %0, %1, %cst {dimension_numbers = #tpu.dot_dimension_numbers<[1], [0], [0], [1], [0, 0, 1, 1], [], []>} : vector<64x16xf32>, vector<16x32xf32>, vector<64x32xf32> -> vector<64x32xf32>
    %c0_3 = arith.constant 0 : index
    %c0_4 = arith.constant 0 : index
    %3 = vector.load %arg3[%c0_3, %c0_4] : memref<1x32xf32, #tpu.memory_space<vmem>>, vector<1x32xf32>
    %4 = vector.broadcast %3 : vector<1x32xf32> to vector<64x32xf32>
    %5 = arith.addf %2, %4 : vector<64x32xf32>
    %cst_5 = arith.constant 0.000000e+00 : f32
    %6 = vector.broadcast %cst_5 : f32 to vector<64x32xf32>
    %7 = arith.maximumf %5, %6 : vector<64x32xf32>
    %c0_6 = arith.constant 0 : index
    %c0_7 = arith.constant 0 : index
    %c0_8 = arith.constant 0 : index
    %8 = vector.load %arg4[%c0_6, %c0_7, %c0_8] : memref<3x32x32xf32, #tpu.memory_space<vmem>>, vector<1x32x32xf32>
    %9 = vector.shape_cast %8 : vector<1x32x32xf32> to vector<32x32xf32>
    %cst_9 = arith.constant dense<0.000000e+00> : vector<64x32xf32>
    %10 = tpu.matmul %7, %9, %cst_9 {dimension_numbers = #tpu.dot_dimension_numbers<[1], [0], [0], [1], [0, 0, 1, 1], [], []>} : vector<64x32xf32>, vector<32x32xf32>, vector<64x32xf32> -> vector<64x32xf32>
    %c0_10 = arith.constant 0 : index
    %c0_11 = arith.constant 0 : index
    %c0_12 = arith.constant 0 : index
    %11 = vector.load %arg6[%c0_10, %c0_11, %c0_12] : memref<4x1x32xf32, #tpu.memory_space<vmem>>, vector<1x1x32xf32>
    %12 = vector.shape_cast %11 : vector<1x1x32xf32> to vector<1x32xf32>
    %13 = vector.broadcast %12 : vector<1x32xf32> to vector<64x32xf32>
    %14 = arith.addf %10, %13 : vector<64x32xf32>
    %c0_13 = arith.constant 0 : index
    %c0_14 = arith.constant 0 : index
    %c0_15 = arith.constant 0 : index
    %15 = vector.load %arg10[%c0_13, %c0_14, %c0_15] : memref<3x64x32xf32, #tpu.memory_space<vmem>>, vector<1x64x32xf32>
    %16 = vector.shape_cast %15 : vector<1x64x32xf32> to vector<64x32xf32>
    %17 = vector.shape_cast %14 : vector<64x32xf32> to vector<1x64x32xf32>
    tpu.vector_store %arg10[%c0_13, %c0_14, %c0_15], %17 {strides = array<i32>} : memref<3x64x32xf32, #tpu.memory_space<vmem>>, vector<1x64x32xf32>,
    %c1 = arith.constant 1 : index
    %c0_16 = arith.constant 0 : index
    %c0_17 = arith.constant 0 : index
    %18 = vector.load %arg4[%c1, %c0_16, %c0_17] : memref<3x32x32xf32, #tpu.memory_space<vmem>>, vector<1x32x32xf32>
    %19 = vector.shape_cast %18 : vector<1x32x32xf32> to vector<32x32xf32>
    %cst_18 = arith.constant dense<0.000000e+00> : vector<64x32xf32>
    %20 = tpu.matmul %7, %19, %cst_18 {dimension_numbers = #tpu.dot_dimension_numbers<[1], [0], [0], [1], [0, 0, 1, 1], [], []>} : vector<64x32xf32>, vector<32x32xf32>, vector<64x32xf32> -> vector<64x32xf32>
    %c1_19 = arith.constant 1 : index
    %c0_20 = arith.constant 0 : index
    %c0_21 = arith.constant 0 : index
    %21 = vector.load %arg6[%c1_19, %c0_20, %c0_21] : memref<4x1x32xf32, #tpu.memory_space<vmem>>, vector<1x1x32xf32>
    %22 = vector.shape_cast %21 : vector<1x1x32xf32> to vector<1x32xf32>
    %23 = vector.broadcast %22 : vector<1x32xf32> to vector<64x32xf32>
    %24 = arith.addf %20, %23 : vector<64x32xf32>
    %c1_22 = arith.constant 1 : index
    %c0_23 = arith.constant 0 : index
    %c0_24 = arith.constant 0 : index
    %25 = vector.load %arg10[%c1_22, %c0_23, %c0_24] : memref<3x64x32xf32, #tpu.memory_space<vmem>>, vector<1x64x32xf32>
    %26 = vector.shape_cast %25 : vector<1x64x32xf32> to vector<64x32xf32>
    %27 = vector.shape_cast %24 : vector<64x32xf32> to vector<1x64x32xf32>
    tpu.vector_store %arg10[%c1_22, %c0_23, %c0_24], %27 {strides = array<i32>} : memref<3x64x32xf32, #tpu.memory_space<vmem>>, vector<1x64x32xf32>,
    %c2 = arith.constant 2 : index
    %c0_25 = arith.constant 0 : index
    %c0_26 = arith.constant 0 : index
    %28 = vector.load %arg4[%c2, %c0_25, %c0_26] : memref<3x32x32xf32, #tpu.memory_space<vmem>>, vector<1x32x32xf32>
    %29 = vector.shape_cast %28 : vector<1x32x32xf32> to vector<32x32xf32>
    %cst_27 = arith.constant dense<0.000000e+00> : vector<64x32xf32>
    %30 = tpu.matmul %7, %29, %cst_27 {dimension_numbers = #tpu.dot_dimension_numbers<[1], [0], [0], [1], [0, 0, 1, 1], [], []>} : vector<64x32xf32>, vector<32x32xf32>, vector<64x32xf32> -> vector<64x32xf32>
    %c2_28 = arith.constant 2 : index
    %c0_29 = arith.constant 0 : index
    %c0_30 = arith.constant 0 : index
    %31 = vector.load %arg6[%c2_28, %c0_29, %c0_30] : memref<4x1x32xf32, #tpu.memory_space<vmem>>, vector<1x1x32xf32>
    %32 = vector.shape_cast %31 : vector<1x1x32xf32> to vector<1x32xf32>
    %33 = vector.broadcast %32 : vector<1x32xf32> to vector<64x32xf32>
    %34 = arith.addf %30, %33 : vector<64x32xf32>
    %c2_31 = arith.constant 2 : index
    %c0_32 = arith.constant 0 : index
    %c0_33 = arith.constant 0 : index
    %35 = vector.load %arg10[%c2_31, %c0_32, %c0_33] : memref<3x64x32xf32, #tpu.memory_space<vmem>>, vector<1x64x32xf32>
    %36 = vector.shape_cast %35 : vector<1x64x32xf32> to vector<64x32xf32>
    %37 = vector.shape_cast %34 : vector<64x32xf32> to vector<1x64x32xf32>
    tpu.vector_store %arg10[%c2_31, %c0_32, %c0_33], %37 {strides = array<i32>} : memref<3x64x32xf32, #tpu.memory_space<vmem>>, vector<1x64x32xf32>,
    %c0_34 = arith.constant 0 : index
    %c0_35 = arith.constant 0 : index
    %c0_36 = arith.constant 0 : index
    %38 = vector.load %arg5[%c0_34, %c0_35, %c0_36] : memref<3x32x32xf32, #tpu.memory_space<vmem>>, vector<1x32x32xf32>
    %39 = vector.shape_cast %38 : vector<1x32x32xf32> to vector<32x32xf32>
    %c1_37 = arith.constant 1 : index
    %c0_38 = arith.constant 0 : index
    %c0_39 = arith.constant 0 : index
    %40 = vector.load %arg5[%c1_37, %c0_38, %c0_39] : memref<3x32x32xf32, #tpu.memory_space<vmem>>, vector<1x32x32xf32>
    %41 = vector.shape_cast %40 : vector<1x32x32xf32> to vector<32x32xf32>
    %c2_40 = arith.constant 2 : index
    %c0_41 = arith.constant 0 : index
    %c0_42 = arith.constant 0 : index
    %42 = vector.load %arg5[%c2_40, %c0_41, %c0_42] : memref<3x32x32xf32, #tpu.memory_space<vmem>>, vector<1x32x32xf32>
    %43 = vector.shape_cast %42 : vector<1x32x32xf32> to vector<32x32xf32>
    %c3 = arith.constant 3 : index
    %c0_43 = arith.constant 0 : index
    %c0_44 = arith.constant 0 : index
    %44 = vector.load %arg6[%c3, %c0_43, %c0_44] : memref<4x1x32xf32, #tpu.memory_space<vmem>>, vector<1x1x32xf32>
    %45 = vector.shape_cast %44 : vector<1x1x32xf32> to vector<1x32xf32>
    %cst_45 = arith.constant 0.000000e+00 : f32
    %46 = vector.broadcast %cst_45 : f32 to vector<8x32xf32>
    %c0_i32 = arith.constant 0 : i32
    %c8_i32 = arith.constant 8 : i32
    %47 = arith.muli %c0_i32, %c8_i32 : i32
    %48 = tpu.assume_multiple %47, 8 : i32
    %cst_46 = arith.constant dense<0.000000e+00> : vector<8x32xf32>
    %49 = tpu.matmul %46, %39, %cst_46 {dimension_numbers = #tpu.dot_dimension_numbers<[1], [0], [0], [1], [0, 0, 1, 1], [], []>} : vector<8x32xf32>, vector<32x32xf32>, vector<8x32xf32> -> vector<8x32xf32>
    %cst_47 = arith.constant dense<0.000000e+00> : vector<8x32xf32>
    %50 = tpu.matmul %46, %41, %cst_47 {dimension_numbers = #tpu.dot_dimension_numbers<[1], [0], [0], [1], [0, 0, 1, 1], [], []>} : vector<8x32xf32>, vector<32x32xf32>, vector<8x32xf32> -> vector<8x32xf32>
    %cst_48 = arith.constant dense<0.000000e+00> : vector<8x32xf32>
    %51 = tpu.matmul %46, %43, %cst_48 {dimension_numbers = #tpu.dot_dimension_numbers<[1], [0], [0], [1], [0, 0, 1, 1], [], []>} : vector<8x32xf32>, vector<32x32xf32>, vector<8x32xf32> -> vector<8x32xf32>
    %52 = vector.broadcast %45 : vector<1x32xf32> to vector<8x32xf32>
    %53 = arith.addf %51, %52 : vector<8x32xf32>
    %c0_49 = arith.constant 0 : index
    %54 = arith.index_cast %48 : i32 to index
    %c0_50 = arith.constant 0 : index
    %55 = vector.load %arg10[%c0_49, %54, %c0_50] : memref<3x64x32xf32, #tpu.memory_space<vmem>>, vector<1x8x32xf32>
    %56 = vector.shape_cast %55 : vector<1x8x32xf32> to vector<8x32xf32>
    %57 = arith.addf %56, %49 : vector<8x32xf32>
    %58 = arith.negf %57 : vector<8x32xf32>
    %59 = math.exp %58 : vector<8x32xf32>
    %cst_51 = arith.constant 1.000000e+00 : f32
    %60 = vector.broadcast %cst_51 : f32 to vector<8x32xf32>
    %61 = arith.addf %60, %59 : vector<8x32xf32>
    %62 = arith.divf %60, %61 : vector<8x32xf32>
    %c1_52 = arith.constant 1 : index
    %63 = arith.index_cast %48 : i32 to index
    %c0_53 = arith.constant 0 : index
    %64 = vector.load %arg10[%c1_52, %63, %c0_53] : memref<3x64x32xf32, #tpu.memory_space<vmem>>, vector<1x8x32xf32>
    %65 = vector.shape_cast %64 : vector<1x8x32xf32> to vector<8x32xf32>
    %66 = arith.addf %65, %50 : vector<8x32xf32>
    %67 = arith.negf %66 : vector<8x32xf32>
    %68 = math.exp %67 : vector<8x32xf32>
    %cst_54 = arith.constant 1.000000e+00 : f32
    %69 = vector.broadcast %cst_54 : f32 to vector<8x32xf32>
    %70 = arith.addf %69, %68 : vector<8x32xf32>
    %71 = arith.divf %69, %70 : vector<8x32xf32>
    %c2_55 = arith.constant 2 : index
    %72 = arith.index_cast %48 : i32 to index
    %c0_56 = arith.constant 0 : index
    %73 = vector.load %arg10[%c2_55, %72, %c0_56] : memref<3x64x32xf32, #tpu.memory_space<vmem>>, vector<1x8x32xf32>
    %74 = vector.shape_cast %73 : vector<1x8x32xf32> to vector<8x32xf32>
    %75 = arith.mulf %62, %53 : vector<8x32xf32>
    %76 = arith.addf %74, %75 : vector<8x32xf32>
    %77 = math.tanh %76 : vector<8x32xf32>
    %cst_57 = arith.constant 1.000000e+00 : f32
    %78 = vector.broadcast %cst_57 : f32 to vector<8x32xf32>
    %79 = arith.subf %78, %71 : vector<8x32xf32>
    %80 = arith.mulf %79, %77 : vector<8x32xf32>
    %81 = arith.mulf %71, %46 : vector<8x32xf32>
    %82 = arith.addf %80, %81 : vector<8x32xf32>
    %cst_58 = arith.constant 0.000000e+00 : f32
    %83 = vector.broadcast %cst_58 : f32 to vector<8x32xf32>
    %84 = arith.maximumf %82, %83 : vector<8x32xf32>
    %85 = arith.index_cast %48 : i32 to index
    %c0_59 = arith.constant 0 : index
    %86 = vector.load %arg11[%85, %c0_59] : memref<64x32xf32, #tpu.memory_space<vmem>>, vector<8x32xf32>
    tpu.vector_store %arg11[%85, %c0_59], %84 {strides = array<i32>} : memref<64x32xf32, #tpu.memory_space<vmem>>, vector<8x32xf32>,
    %c1_i32 = arith.constant 1 : i32
    %c8_i32_60 = arith.constant 8 : i32
    %87 = arith.muli %c1_i32, %c8_i32_60 : i32
    %88 = tpu.assume_multiple %87, 8 : i32
    %cst_61 = arith.constant dense<0.000000e+00> : vector<8x32xf32>
    %89 = tpu.matmul %82, %39, %cst_61 {dimension_numbers = #tpu.dot_dimension_numbers<[1], [0], [0], [1], [0, 0, 1, 1], [], []>} : vector<8x32xf32>, vector<32x32xf32>, vector<8x32xf32> -> vector<8x32xf32>
    %cst_62 = arith.constant dense<0.000000e+00> : vector<8x32xf32>
    %90 = tpu.matmul %82, %41, %cst_62 {dimension_numbers = #tpu.dot_dimension_numbers<[1], [0], [0], [1], [0, 0, 1, 1], [], []>} : vector<8x32xf32>, vector<32x32xf32>, vector<8x32xf32> -> vector<8x32xf32>
    %cst_63 = arith.constant dense<0.000000e+00> : vector<8x32xf32>
    %91 = tpu.matmul %82, %43, %cst_63 {dimension_numbers = #tpu.dot_dimension_numbers<[1], [0], [0], [1], [0, 0, 1, 1], [], []>} : vector<8x32xf32>, vector<32x32xf32>, vector<8x32xf32> -> vector<8x32xf32>
    %92 = vector.broadcast %45 : vector<1x32xf32> to vector<8x32xf32>
    %93 = arith.addf %91, %92 : vector<8x32xf32>
    %c0_64 = arith.constant 0 : index
    %94 = arith.index_cast %88 : i32 to index
    %c0_65 = arith.constant 0 : index
    %95 = vector.load %arg10[%c0_64, %94, %c0_65] : memref<3x64x32xf32, #tpu.memory_space<vmem>>, vector<1x8x32xf32>
    %96 = vector.shape_cast %95 : vector<1x8x32xf32> to vector<8x32xf32>
    %97 = arith.addf %96, %89 : vector<8x32xf32>
    %98 = arith.negf %97 : vector<8x32xf32>
    %99 = math.exp %98 : vector<8x32xf32>
    %cst_66 = arith.constant 1.000000e+00 : f32
    %100 = vector.broadcast %cst_66 : f32 to vector<8x32xf32>
    %101 = arith.addf %100, %99 : vector<8x32xf32>
    %102 = arith.divf %100, %101 : vector<8x32xf32>
    %c1_67 = arith.constant 1 : index
    %103 = arith.index_cast %88 : i32 to index
    %c0_68 = arith.constant 0 : index
    %104 = vector.load %arg10[%c1_67, %103, %c0_68] : memref<3x64x32xf32, #tpu.memory_space<vmem>>, vector<1x8x32xf32>
    %105 = vector.shape_cast %104 : vector<1x8x32xf32> to vector<8x32xf32>
    %106 = arith.addf %105, %90 : vector<8x32xf32>
    %107 = arith.negf %106 : vector<8x32xf32>
    %108 = math.exp %107 : vector<8x32xf32>
    %cst_69 = arith.constant 1.000000e+00 : f32
    %109 = vector.broadcast %cst_69 : f32 to vector<8x32xf32>
    %110 = arith.addf %109, %108 : vector<8x32xf32>
    %111 = arith.divf %109, %110 : vector<8x32xf32>
    %c2_70 = arith.constant 2 : index
    %112 = arith.index_cast %88 : i32 to index
    %c0_71 = arith.constant 0 : index
    %113 = vector.load %arg10[%c2_70, %112, %c0_71] : memref<3x64x32xf32, #tpu.memory_space<vmem>>, vector<1x8x32xf32>
    %114 = vector.shape_cast %113 : vector<1x8x32xf32> to vector<8x32xf32>
    %115 = arith.mulf %102, %93 : vector<8x32xf32>
    %116 = arith.addf %114, %115 : vector<8x32xf32>
    %117 = math.tanh %116 : vector<8x32xf32>
    %cst_72 = arith.constant 1.000000e+00 : f32
    %118 = vector.broadcast %cst_72 : f32 to vector<8x32xf32>
    %119 = arith.subf %118, %111 : vector<8x32xf32>
    %120 = arith.mulf %119, %117 : vector<8x32xf32>
    %121 = arith.mulf %111, %82 : vector<8x32xf32>
    %122 = arith.addf %120, %121 : vector<8x32xf32>
    %cst_73 = arith.constant 0.000000e+00 : f32
    %123 = vector.broadcast %cst_73 : f32 to vector<8x32xf32>
    %124 = arith.maximumf %122, %123 : vector<8x32xf32>
    %125 = arith.index_cast %88 : i32 to index
    %c0_74 = arith.constant 0 : index
    %126 = vector.load %arg11[%125, %c0_74] : memref<64x32xf32, #tpu.memory_space<vmem>>, vector<8x32xf32>
    tpu.vector_store %arg11[%125, %c0_74], %124 {strides = array<i32>} : memref<64x32xf32, #tpu.memory_space<vmem>>, vector<8x32xf32>,
    %c2_i32 = arith.constant 2 : i32
    %c8_i32_75 = arith.constant 8 : i32
    %127 = arith.muli %c2_i32, %c8_i32_75 : i32
    %128 = tpu.assume_multiple %127, 8 : i32
    %cst_76 = arith.constant dense<0.000000e+00> : vector<8x32xf32>
    %129 = tpu.matmul %122, %39, %cst_76 {dimension_numbers = #tpu.dot_dimension_numbers<[1], [0], [0], [1], [0, 0, 1, 1], [], []>} : vector<8x32xf32>, vector<32x32xf32>, vector<8x32xf32> -> vector<8x32xf32>
    %cst_77 = arith.constant dense<0.000000e+00> : vector<8x32xf32>
    %130 = tpu.matmul %122, %41, %cst_77 {dimension_numbers = #tpu.dot_dimension_numbers<[1], [0], [0], [1], [0, 0, 1, 1], [], []>} : vector<8x32xf32>, vector<32x32xf32>, vector<8x32xf32> -> vector<8x32xf32>
    %cst_78 = arith.constant dense<0.000000e+00> : vector<8x32xf32>
    %131 = tpu.matmul %122, %43, %cst_78 {dimension_numbers = #tpu.dot_dimension_numbers<[1], [0], [0], [1], [0, 0, 1, 1], [], []>} : vector<8x32xf32>, vector<32x32xf32>, vector<8x32xf32> -> vector<8x32xf32>
    %132 = vector.broadcast %45 : vector<1x32xf32> to vector<8x32xf32>
    %133 = arith.addf %131, %132 : vector<8x32xf32>
    %c0_79 = arith.constant 0 : index
    %134 = arith.index_cast %128 : i32 to index
    %c0_80 = arith.constant 0 : index
    %135 = vector.load %arg10[%c0_79, %134, %c0_80] : memref<3x64x32xf32, #tpu.memory_space<vmem>>, vector<1x8x32xf32>
    %136 = vector.shape_cast %135 : vector<1x8x32xf32> to vector<8x32xf32>
    %137 = arith.addf %136, %129 : vector<8x32xf32>
    %138 = arith.negf %137 : vector<8x32xf32>
    %139 = math.exp %138 : vector<8x32xf32>
    %cst_81 = arith.constant 1.000000e+00 : f32
    %140 = vector.broadcast %cst_81 : f32 to vector<8x32xf32>
    %141 = arith.addf %140, %139 : vector<8x32xf32>
    %142 = arith.divf %140, %141 : vector<8x32xf32>
    %c1_82 = arith.constant 1 : index
    %143 = arith.index_cast %128 : i32 to index
    %c0_83 = arith.constant 0 : index
    %144 = vector.load %arg10[%c1_82, %143, %c0_83] : memref<3x64x32xf32, #tpu.memory_space<vmem>>, vector<1x8x32xf32>
    %145 = vector.shape_cast %144 : vector<1x8x32xf32> to vector<8x32xf32>
    %146 = arith.addf %145, %130 : vector<8x32xf32>
    %147 = arith.negf %146 : vector<8x32xf32>
    %148 = math.exp %147 : vector<8x32xf32>
    %cst_84 = arith.constant 1.000000e+00 : f32
    %149 = vector.broadcast %cst_84 : f32 to vector<8x32xf32>
    %150 = arith.addf %149, %148 : vector<8x32xf32>
    %151 = arith.divf %149, %150 : vector<8x32xf32>
    %c2_85 = arith.constant 2 : index
    %152 = arith.index_cast %128 : i32 to index
    %c0_86 = arith.constant 0 : index
    %153 = vector.load %arg10[%c2_85, %152, %c0_86] : memref<3x64x32xf32, #tpu.memory_space<vmem>>, vector<1x8x32xf32>
    %154 = vector.shape_cast %153 : vector<1x8x32xf32> to vector<8x32xf32>
    %155 = arith.mulf %142, %133 : vector<8x32xf32>
    %156 = arith.addf %154, %155 : vector<8x32xf32>
    %157 = math.tanh %156 : vector<8x32xf32>
    %cst_87 = arith.constant 1.000000e+00 : f32
    %158 = vector.broadcast %cst_87 : f32 to vector<8x32xf32>
    %159 = arith.subf %158, %151 : vector<8x32xf32>
    %160 = arith.mulf %159, %157 : vector<8x32xf32>
    %161 = arith.mulf %151, %122 : vector<8x32xf32>
    %162 = arith.addf %160, %161 : vector<8x32xf32>
    %cst_88 = arith.constant 0.000000e+00 : f32
    %163 = vector.broadcast %cst_88 : f32 to vector<8x32xf32>
    %164 = arith.maximumf %162, %163 : vector<8x32xf32>
    %165 = arith.index_cast %128 : i32 to index
    %c0_89 = arith.constant 0 : index
    %166 = vector.load %arg11[%165, %c0_89] : memref<64x32xf32, #tpu.memory_space<vmem>>, vector<8x32xf32>
    tpu.vector_store %arg11[%165, %c0_89], %164 {strides = array<i32>} : memref<64x32xf32, #tpu.memory_space<vmem>>, vector<8x32xf32>,
    %c3_i32 = arith.constant 3 : i32
    %c8_i32_90 = arith.constant 8 : i32
    %167 = arith.muli %c3_i32, %c8_i32_90 : i32
    %168 = tpu.assume_multiple %167, 8 : i32
    %cst_91 = arith.constant dense<0.000000e+00> : vector<8x32xf32>
    %169 = tpu.matmul %162, %39, %cst_91 {dimension_numbers = #tpu.dot_dimension_numbers<[1], [0], [0], [1], [0, 0, 1, 1], [], []>} : vector<8x32xf32>, vector<32x32xf32>, vector<8x32xf32> -> vector<8x32xf32>
    %cst_92 = arith.constant dense<0.000000e+00> : vector<8x32xf32>
    %170 = tpu.matmul %162, %41, %cst_92 {dimension_numbers = #tpu.dot_dimension_numbers<[1], [0], [0], [1], [0, 0, 1, 1], [], []>} : vector<8x32xf32>, vector<32x32xf32>, vector<8x32xf32> -> vector<8x32xf32>
    %cst_93 = arith.constant dense<0.000000e+00> : vector<8x32xf32>
    %171 = tpu.matmul %162, %43, %cst_93 {dimension_numbers = #tpu.dot_dimension_numbers<[1], [0], [0], [1], [0, 0, 1, 1], [], []>} : vector<8x32xf32>, vector<32x32xf32>, vector<8x32xf32> -> vector<8x32xf32>
    %172 = vector.broadcast %45 : vector<1x32xf32> to vector<8x32xf32>
    %173 = arith.addf %171, %172 : vector<8x32xf32>
    %c0_94 = arith.constant 0 : index
    %174 = arith.index_cast %168 : i32 to index
    %c0_95 = arith.constant 0 : index
    %175 = vector.load %arg10[%c0_94, %174, %c0_95] : memref<3x64x32xf32, #tpu.memory_space<vmem>>, vector<1x8x32xf32>
    %176 = vector.shape_cast %175 : vector<1x8x32xf32> to vector<8x32xf32>
    %177 = arith.addf %176, %169 : vector<8x32xf32>
    %178 = arith.negf %177 : vector<8x32xf32>
    %179 = math.exp %178 : vector<8x32xf32>
    %cst_96 = arith.constant 1.000000e+00 : f32
    %180 = vector.broadcast %cst_96 : f32 to vector<8x32xf32>
    %181 = arith.addf %180, %179 : vector<8x32xf32>
    %182 = arith.divf %180, %181 : vector<8x32xf32>
    %c1_97 = arith.constant 1 : index
    %183 = arith.index_cast %168 : i32 to index
    %c0_98 = arith.constant 0 : index
    %184 = vector.load %arg10[%c1_97, %183, %c0_98] : memref<3x64x32xf32, #tpu.memory_space<vmem>>, vector<1x8x32xf32>
    %185 = vector.shape_cast %184 : vector<1x8x32xf32> to vector<8x32xf32>
    %186 = arith.addf %185, %170 : vector<8x32xf32>
    %187 = arith.negf %186 : vector<8x32xf32>
    %188 = math.exp %187 : vector<8x32xf32>
    %cst_99 = arith.constant 1.000000e+00 : f32
    %189 = vector.broadcast %cst_99 : f32 to vector<8x32xf32>
    %190 = arith.addf %189, %188 : vector<8x32xf32>
    %191 = arith.divf %189, %190 : vector<8x32xf32>
    %c2_100 = arith.constant 2 : index
    %192 = arith.index_cast %168 : i32 to index
    %c0_101 = arith.constant 0 : index
    %193 = vector.load %arg10[%c2_100, %192, %c0_101] : memref<3x64x32xf32, #tpu.memory_space<vmem>>, vector<1x8x32xf32>
    %194 = vector.shape_cast %193 : vector<1x8x32xf32> to vector<8x32xf32>
    %195 = arith.mulf %182, %173 : vector<8x32xf32>
    %196 = arith.addf %194, %195 : vector<8x32xf32>
    %197 = math.tanh %196 : vector<8x32xf32>
    %cst_102 = arith.constant 1.000000e+00 : f32
    %198 = vector.broadcast %cst_102 : f32 to vector<8x32xf32>
    %199 = arith.subf %198, %191 : vector<8x32xf32>
    %200 = arith.mulf %199, %197 : vector<8x32xf32>
    %201 = arith.mulf %191, %162 : vector<8x32xf32>
    %202 = arith.addf %200, %201 : vector<8x32xf32>
    %cst_103 = arith.constant 0.000000e+00 : f32
    %203 = vector.broadcast %cst_103 : f32 to vector<8x32xf32>
    %204 = arith.maximumf %202, %203 : vector<8x32xf32>
    %205 = arith.index_cast %168 : i32 to index
    %c0_104 = arith.constant 0 : index
    %206 = vector.load %arg11[%205, %c0_104] : memref<64x32xf32, #tpu.memory_space<vmem>>, vector<8x32xf32>
    tpu.vector_store %arg11[%205, %c0_104], %204 {strides = array<i32>} : memref<64x32xf32, #tpu.memory_space<vmem>>, vector<8x32xf32>,
    %c4_i32 = arith.constant 4 : i32
    %c8_i32_105 = arith.constant 8 : i32
    %207 = arith.muli %c4_i32, %c8_i32_105 : i32
    %208 = tpu.assume_multiple %207, 8 : i32
    %cst_106 = arith.constant dense<0.000000e+00> : vector<8x32xf32>
    %209 = tpu.matmul %202, %39, %cst_106 {dimension_numbers = #tpu.dot_dimension_numbers<[1], [0], [0], [1], [0, 0, 1, 1], [], []>} : vector<8x32xf32>, vector<32x32xf32>, vector<8x32xf32> -> vector<8x32xf32>
    %cst_107 = arith.constant dense<0.000000e+00> : vector<8x32xf32>
    %210 = tpu.matmul %202, %41, %cst_107 {dimension_numbers = #tpu.dot_dimension_numbers<[1], [0], [0], [1], [0, 0, 1, 1], [], []>} : vector<8x32xf32>, vector<32x32xf32>, vector<8x32xf32> -> vector<8x32xf32>
    %cst_108 = arith.constant dense<0.000000e+00> : vector<8x32xf32>
    %211 = tpu.matmul %202, %43, %cst_108 {dimension_numbers = #tpu.dot_dimension_numbers<[1], [0], [0], [1], [0, 0, 1, 1], [], []>} : vector<8x32xf32>, vector<32x32xf32>, vector<8x32xf32> -> vector<8x32xf32>
    %212 = vector.broadcast %45 : vector<1x32xf32> to vector<8x32xf32>
    %213 = arith.addf %211, %212 : vector<8x32xf32>
    %c0_109 = arith.constant 0 : index
    %214 = arith.index_cast %208 : i32 to index
    %c0_110 = arith.constant 0 : index
    %215 = vector.load %arg10[%c0_109, %214, %c0_110] : memref<3x64x32xf32, #tpu.memory_space<vmem>>, vector<1x8x32xf32>
    %216 = vector.shape_cast %215 : vector<1x8x32xf32> to vector<8x32xf32>
    %217 = arith.addf %216, %209 : vector<8x32xf32>
    %218 = arith.negf %217 : vector<8x32xf32>
    %219 = math.exp %218 : vector<8x32xf32>
    %cst_111 = arith.constant 1.000000e+00 : f32
    %220 = vector.broadcast %cst_111 : f32 to vector<8x32xf32>
    %221 = arith.addf %220, %219 : vector<8x32xf32>
    %222 = arith.divf %220, %221 : vector<8x32xf32>
    %c1_112 = arith.constant 1 : index
    %223 = arith.index_cast %208 : i32 to index
    %c0_113 = arith.constant 0 : index
    %224 = vector.load %arg10[%c1_112, %223, %c0_113] : memref<3x64x32xf32, #tpu.memory_space<vmem>>, vector<1x8x32xf32>
    %225 = vector.shape_cast %224 : vector<1x8x32xf32> to vector<8x32xf32>
    %226 = arith.addf %225, %210 : vector<8x32xf32>
    %227 = arith.negf %226 : vector<8x32xf32>
    %228 = math.exp %227 : vector<8x32xf32>
    %cst_114 = arith.constant 1.000000e+00 : f32
    %229 = vector.broadcast %cst_114 : f32 to vector<8x32xf32>
    %230 = arith.addf %229, %228 : vector<8x32xf32>
    %231 = arith.divf %229, %230 : vector<8x32xf32>
    %c2_115 = arith.constant 2 : index
    %232 = arith.index_cast %208 : i32 to index
    %c0_116 = arith.constant 0 : index
    %233 = vector.load %arg10[%c2_115, %232, %c0_116] : memref<3x64x32xf32, #tpu.memory_space<vmem>>, vector<1x8x32xf32>
    %234 = vector.shape_cast %233 : vector<1x8x32xf32> to vector<8x32xf32>
    %235 = arith.mulf %222, %213 : vector<8x32xf32>
    %236 = arith.addf %234, %235 : vector<8x32xf32>
    %237 = math.tanh %236 : vector<8x32xf32>
    %cst_117 = arith.constant 1.000000e+00 : f32
    %238 = vector.broadcast %cst_117 : f32 to vector<8x32xf32>
    %239 = arith.subf %238, %231 : vector<8x32xf32>
    %240 = arith.mulf %239, %237 : vector<8x32xf32>
    %241 = arith.mulf %231, %202 : vector<8x32xf32>
    %242 = arith.addf %240, %241 : vector<8x32xf32>
    %cst_118 = arith.constant 0.000000e+00 : f32
    %243 = vector.broadcast %cst_118 : f32 to vector<8x32xf32>
    %244 = arith.maximumf %242, %243 : vector<8x32xf32>
    %245 = arith.index_cast %208 : i32 to index
    %c0_119 = arith.constant 0 : index
    %246 = vector.load %arg11[%245, %c0_119] : memref<64x32xf32, #tpu.memory_space<vmem>>, vector<8x32xf32>
    tpu.vector_store %arg11[%245, %c0_119], %244 {strides = array<i32>} : memref<64x32xf32, #tpu.memory_space<vmem>>, vector<8x32xf32>,
    %c5_i32 = arith.constant 5 : i32
    %c8_i32_120 = arith.constant 8 : i32
    %247 = arith.muli %c5_i32, %c8_i32_120 : i32
    %248 = tpu.assume_multiple %247, 8 : i32
    %cst_121 = arith.constant dense<0.000000e+00> : vector<8x32xf32>
    %249 = tpu.matmul %242, %39, %cst_121 {dimension_numbers = #tpu.dot_dimension_numbers<[1], [0], [0], [1], [0, 0, 1, 1], [], []>} : vector<8x32xf32>, vector<32x32xf32>, vector<8x32xf32> -> vector<8x32xf32>
    %cst_122 = arith.constant dense<0.000000e+00> : vector<8x32xf32>
    %250 = tpu.matmul %242, %41, %cst_122 {dimension_numbers = #tpu.dot_dimension_numbers<[1], [0], [0], [1], [0, 0, 1, 1], [], []>} : vector<8x32xf32>, vector<32x32xf32>, vector<8x32xf32> -> vector<8x32xf32>
    %cst_123 = arith.constant dense<0.000000e+00> : vector<8x32xf32>
    %251 = tpu.matmul %242, %43, %cst_123 {dimension_numbers = #tpu.dot_dimension_numbers<[1], [0], [0], [1], [0, 0, 1, 1], [], []>} : vector<8x32xf32>, vector<32x32xf32>, vector<8x32xf32> -> vector<8x32xf32>
    %252 = vector.broadcast %45 : vector<1x32xf32> to vector<8x32xf32>
    %253 = arith.addf %251, %252 : vector<8x32xf32>
    %c0_124 = arith.constant 0 : index
    %254 = arith.index_cast %248 : i32 to index
    %c0_125 = arith.constant 0 : index
    %255 = vector.load %arg10[%c0_124, %254, %c0_125] : memref<3x64x32xf32, #tpu.memory_space<vmem>>, vector<1x8x32xf32>
    %256 = vector.shape_cast %255 : vector<1x8x32xf32> to vector<8x32xf32>
    %257 = arith.addf %256, %249 : vector<8x32xf32>
    %258 = arith.negf %257 : vector<8x32xf32>
    %259 = math.exp %258 : vector<8x32xf32>
    %cst_126 = arith.constant 1.000000e+00 : f32
    %260 = vector.broadcast %cst_126 : f32 to vector<8x32xf32>
    %261 = arith.addf %260, %259 : vector<8x32xf32>
    %262 = arith.divf %260, %261 : vector<8x32xf32>
    %c1_127 = arith.constant 1 : index
    %263 = arith.index_cast %248 : i32 to index
    %c0_128 = arith.constant 0 : index
    %264 = vector.load %arg10[%c1_127, %263, %c0_128] : memref<3x64x32xf32, #tpu.memory_space<vmem>>, vector<1x8x32xf32>
    %265 = vector.shape_cast %264 : vector<1x8x32xf32> to vector<8x32xf32>
    %266 = arith.addf %265, %250 : vector<8x32xf32>
    %267 = arith.negf %266 : vector<8x32xf32>
    %268 = math.exp %267 : vector<8x32xf32>
    %cst_129 = arith.constant 1.000000e+00 : f32
    %269 = vector.broadcast %cst_129 : f32 to vector<8x32xf32>
    %270 = arith.addf %269, %268 : vector<8x32xf32>
    %271 = arith.divf %269, %270 : vector<8x32xf32>
    %c2_130 = arith.constant 2 : index
    %272 = arith.index_cast %248 : i32 to index
    %c0_131 = arith.constant 0 : index
    %273 = vector.load %arg10[%c2_130, %272, %c0_131] : memref<3x64x32xf32, #tpu.memory_space<vmem>>, vector<1x8x32xf32>
    %274 = vector.shape_cast %273 : vector<1x8x32xf32> to vector<8x32xf32>
    %275 = arith.mulf %262, %253 : vector<8x32xf32>
    %276 = arith.addf %274, %275 : vector<8x32xf32>
    %277 = math.tanh %276 : vector<8x32xf32>
    %cst_132 = arith.constant 1.000000e+00 : f32
    %278 = vector.broadcast %cst_132 : f32 to vector<8x32xf32>
    %279 = arith.subf %278, %271 : vector<8x32xf32>
    %280 = arith.mulf %279, %277 : vector<8x32xf32>
    %281 = arith.mulf %271, %242 : vector<8x32xf32>
    %282 = arith.addf %280, %281 : vector<8x32xf32>
    %cst_133 = arith.constant 0.000000e+00 : f32
    %283 = vector.broadcast %cst_133 : f32 to vector<8x32xf32>
    %284 = arith.maximumf %282, %283 : vector<8x32xf32>
    %285 = arith.index_cast %248 : i32 to index
    %c0_134 = arith.constant 0 : index
    %286 = vector.load %arg11[%285, %c0_134] : memref<64x32xf32, #tpu.memory_space<vmem>>, vector<8x32xf32>
    tpu.vector_store %arg11[%285, %c0_134], %284 {strides = array<i32>} : memref<64x32xf32, #tpu.memory_space<vmem>>, vector<8x32xf32>,
    %c6_i32 = arith.constant 6 : i32
    %c8_i32_135 = arith.constant 8 : i32
    %287 = arith.muli %c6_i32, %c8_i32_135 : i32
    %288 = tpu.assume_multiple %287, 8 : i32
    %cst_136 = arith.constant dense<0.000000e+00> : vector<8x32xf32>
    %289 = tpu.matmul %282, %39, %cst_136 {dimension_numbers = #tpu.dot_dimension_numbers<[1], [0], [0], [1], [0, 0, 1, 1], [], []>} : vector<8x32xf32>, vector<32x32xf32>, vector<8x32xf32> -> vector<8x32xf32>
    %cst_137 = arith.constant dense<0.000000e+00> : vector<8x32xf32>
    %290 = tpu.matmul %282, %41, %cst_137 {dimension_numbers = #tpu.dot_dimension_numbers<[1], [0], [0], [1], [0, 0, 1, 1], [], []>} : vector<8x32xf32>, vector<32x32xf32>, vector<8x32xf32> -> vector<8x32xf32>
    %cst_138 = arith.constant dense<0.000000e+00> : vector<8x32xf32>
    %291 = tpu.matmul %282, %43, %cst_138 {dimension_numbers = #tpu.dot_dimension_numbers<[1], [0], [0], [1], [0, 0, 1, 1], [], []>} : vector<8x32xf32>, vector<32x32xf32>, vector<8x32xf32> -> vector<8x32xf32>
    %292 = vector.broadcast %45 : vector<1x32xf32> to vector<8x32xf32>
    %293 = arith.addf %291, %292 : vector<8x32xf32>
    %c0_139 = arith.constant 0 : index
    %294 = arith.index_cast %288 : i32 to index
    %c0_140 = arith.constant 0 : index
    %295 = vector.load %arg10[%c0_139, %294, %c0_140] : memref<3x64x32xf32, #tpu.memory_space<vmem>>, vector<1x8x32xf32>
    %296 = vector.shape_cast %295 : vector<1x8x32xf32> to vector<8x32xf32>
    %297 = arith.addf %296, %289 : vector<8x32xf32>
    %298 = arith.negf %297 : vector<8x32xf32>
    %299 = math.exp %298 : vector<8x32xf32>
    %cst_141 = arith.constant 1.000000e+00 : f32
    %300 = vector.broadcast %cst_141 : f32 to vector<8x32xf32>
    %301 = arith.addf %300, %299 : vector<8x32xf32>
    %302 = arith.divf %300, %301 : vector<8x32xf32>
    %c1_142 = arith.constant 1 : index
    %303 = arith.index_cast %288 : i32 to index
    %c0_143 = arith.constant 0 : index
    %304 = vector.load %arg10[%c1_142, %303, %c0_143] : memref<3x64x32xf32, #tpu.memory_space<vmem>>, vector<1x8x32xf32>
    %305 = vector.shape_cast %304 : vector<1x8x32xf32> to vector<8x32xf32>
    %306 = arith.addf %305, %290 : vector<8x32xf32>
    %307 = arith.negf %306 : vector<8x32xf32>
    %308 = math.exp %307 : vector<8x32xf32>
    %cst_144 = arith.constant 1.000000e+00 : f32
    %309 = vector.broadcast %cst_144 : f32 to vector<8x32xf32>
    %310 = arith.addf %309, %308 : vector<8x32xf32>
    %311 = arith.divf %309, %310 : vector<8x32xf32>
    %c2_145 = arith.constant 2 : index
    %312 = arith.index_cast %288 : i32 to index
    %c0_146 = arith.constant 0 : index
    %313 = vector.load %arg10[%c2_145, %312, %c0_146] : memref<3x64x32xf32, #tpu.memory_space<vmem>>, vector<1x8x32xf32>
    %314 = vector.shape_cast %313 : vector<1x8x32xf32> to vector<8x32xf32>
    %315 = arith.mulf %302, %293 : vector<8x32xf32>
    %316 = arith.addf %314, %315 : vector<8x32xf32>
    %317 = math.tanh %316 : vector<8x32xf32>
    %cst_147 = arith.constant 1.000000e+00 : f32
    %318 = vector.broadcast %cst_147 : f32 to vector<8x32xf32>
    %319 = arith.subf %318, %311 : vector<8x32xf32>
    %320 = arith.mulf %319, %317 : vector<8x32xf32>
    %321 = arith.mulf %311, %282 : vector<8x32xf32>
    %322 = arith.addf %320, %321 : vector<8x32xf32>
    %cst_148 = arith.constant 0.000000e+00 : f32
    %323 = vector.broadcast %cst_148 : f32 to vector<8x32xf32>
    %324 = arith.maximumf %322, %323 : vector<8x32xf32>
    %325 = arith.index_cast %288 : i32 to index
    %c0_149 = arith.constant 0 : index
    %326 = vector.load %arg11[%325, %c0_149] : memref<64x32xf32, #tpu.memory_space<vmem>>, vector<8x32xf32>
    tpu.vector_store %arg11[%325, %c0_149], %324 {strides = array<i32>} : memref<64x32xf32, #tpu.memory_space<vmem>>, vector<8x32xf32>,
    %c7_i32 = arith.constant 7 : i32
    %c8_i32_150 = arith.constant 8 : i32
    %327 = arith.muli %c7_i32, %c8_i32_150 : i32
    %328 = tpu.assume_multiple %327, 8 : i32
    %cst_151 = arith.constant dense<0.000000e+00> : vector<8x32xf32>
    %329 = tpu.matmul %322, %39, %cst_151 {dimension_numbers = #tpu.dot_dimension_numbers<[1], [0], [0], [1], [0, 0, 1, 1], [], []>} : vector<8x32xf32>, vector<32x32xf32>, vector<8x32xf32> -> vector<8x32xf32>
    %cst_152 = arith.constant dense<0.000000e+00> : vector<8x32xf32>
    %330 = tpu.matmul %322, %41, %cst_152 {dimension_numbers = #tpu.dot_dimension_numbers<[1], [0], [0], [1], [0, 0, 1, 1], [], []>} : vector<8x32xf32>, vector<32x32xf32>, vector<8x32xf32> -> vector<8x32xf32>
    %cst_153 = arith.constant dense<0.000000e+00> : vector<8x32xf32>
    %331 = tpu.matmul %322, %43, %cst_153 {dimension_numbers = #tpu.dot_dimension_numbers<[1], [0], [0], [1], [0, 0, 1, 1], [], []>} : vector<8x32xf32>, vector<32x32xf32>, vector<8x32xf32> -> vector<8x32xf32>
    %332 = vector.broadcast %45 : vector<1x32xf32> to vector<8x32xf32>
    %333 = arith.addf %331, %332 : vector<8x32xf32>
    %c0_154 = arith.constant 0 : index
    %334 = arith.index_cast %328 : i32 to index
    %c0_155 = arith.constant 0 : index
    %335 = vector.load %arg10[%c0_154, %334, %c0_155] : memref<3x64x32xf32, #tpu.memory_space<vmem>>, vector<1x8x32xf32>
    %336 = vector.shape_cast %335 : vector<1x8x32xf32> to vector<8x32xf32>
    %337 = arith.addf %336, %329 : vector<8x32xf32>
    %338 = arith.negf %337 : vector<8x32xf32>
    %339 = math.exp %338 : vector<8x32xf32>
    %cst_156 = arith.constant 1.000000e+00 : f32
    %340 = vector.broadcast %cst_156 : f32 to vector<8x32xf32>
    %341 = arith.addf %340, %339 : vector<8x32xf32>
    %342 = arith.divf %340, %341 : vector<8x32xf32>
    %c1_157 = arith.constant 1 : index
    %343 = arith.index_cast %328 : i32 to index
    %c0_158 = arith.constant 0 : index
    %344 = vector.load %arg10[%c1_157, %343, %c0_158] : memref<3x64x32xf32, #tpu.memory_space<vmem>>, vector<1x8x32xf32>
    %345 = vector.shape_cast %344 : vector<1x8x32xf32> to vector<8x32xf32>
    %346 = arith.addf %345, %330 : vector<8x32xf32>
    %347 = arith.negf %346 : vector<8x32xf32>
    %348 = math.exp %347 : vector<8x32xf32>
    %cst_159 = arith.constant 1.000000e+00 : f32
    %349 = vector.broadcast %cst_159 : f32 to vector<8x32xf32>
    %350 = arith.addf %349, %348 : vector<8x32xf32>
    %351 = arith.divf %349, %350 : vector<8x32xf32>
    %c2_160 = arith.constant 2 : index
    %352 = arith.index_cast %328 : i32 to index
    %c0_161 = arith.constant 0 : index
    %353 = vector.load %arg10[%c2_160, %352, %c0_161] : memref<3x64x32xf32, #tpu.memory_space<vmem>>, vector<1x8x32xf32>
    %354 = vector.shape_cast %353 : vector<1x8x32xf32> to vector<8x32xf32>
    %355 = arith.mulf %342, %333 : vector<8x32xf32>
    %356 = arith.addf %354, %355 : vector<8x32xf32>
    %357 = math.tanh %356 : vector<8x32xf32>
    %cst_162 = arith.constant 1.000000e+00 : f32
    %358 = vector.broadcast %cst_162 : f32 to vector<8x32xf32>
    %359 = arith.subf %358, %351 : vector<8x32xf32>
    %360 = arith.mulf %359, %357 : vector<8x32xf32>
    %361 = arith.mulf %351, %322 : vector<8x32xf32>
    %362 = arith.addf %360, %361 : vector<8x32xf32>
    %cst_163 = arith.constant 0.000000e+00 : f32
    %363 = vector.broadcast %cst_163 : f32 to vector<8x32xf32>
    %364 = arith.maximumf %362, %363 : vector<8x32xf32>
    %365 = arith.index_cast %328 : i32 to index
    %c0_164 = arith.constant 0 : index
    %366 = vector.load %arg11[%365, %c0_164] : memref<64x32xf32, #tpu.memory_space<vmem>>, vector<8x32xf32>
    tpu.vector_store %arg11[%365, %c0_164], %364 {strides = array<i32>} : memref<64x32xf32, #tpu.memory_space<vmem>>, vector<8x32xf32>,
    %c8_i32_165 = arith.constant 8 : i32
    %c0_166 = arith.constant 0 : index
    %c0_167 = arith.constant 0 : index
    %367 = vector.load %arg11[%c0_166, %c0_167] : memref<64x32xf32, #tpu.memory_space<vmem>>, vector<64x32xf32>
    %c0_168 = arith.constant 0 : index
    %c0_169 = arith.constant 0 : index
    %368 = vector.load %arg7[%c0_168, %c0_169] : memref<32x128xf32, #tpu.memory_space<vmem>>, vector<32x128xf32>
    %cst_170 = arith.constant dense<0.000000e+00> : vector<64x128xf32>
    %369 = tpu.matmul %367, %368, %cst_170 {dimension_numbers = #tpu.dot_dimension_numbers<[1], [0], [0], [1], [0, 0, 1, 1], [], []>} : vector<64x32xf32>, vector<32x128xf32>, vector<64x128xf32> -> vector<64x128xf32>
    %c0_171 = arith.constant 0 : index
    %c0_172 = arith.constant 0 : index
    %370 = vector.load %arg8[%c0_171, %c0_172] : memref<1x128xf32, #tpu.memory_space<vmem>>, vector<1x128xf32>
    %371 = vector.broadcast %370 : vector<1x128xf32> to vector<64x128xf32>
    %372 = arith.addf %369, %371 : vector<64x128xf32>
    %c0_173 = arith.constant 0 : index
    %c0_174 = arith.constant 0 : index
    %373 = vector.load %arg9[%c0_173, %c0_174] : memref<64x128xf32, #tpu.memory_space<vmem>>, vector<64x128xf32>
    tpu.vector_store %arg9[%c0_173, %c0_174], %372 {strides = array<i32>} : memref<64x128xf32, #tpu.memory_space<vmem>>, vector<64x128xf32>,
    return
  }
  func.func @transform_0(%arg0: i32) -> (i32, i32) {
    %c0_i32 = arith.constant 0 : i32
    %c0_i32_0 = arith.constant 0 : i32
    %c0_i32_1 = arith.constant 0 : i32
    return %c0_i32, %c0_i32_0 : i32, i32
  }
  func.func @transform_1(%arg0: i32) -> (i32, i32) {
    %c0_i32 = arith.constant 0 : i32
    %c0_i32_0 = arith.constant 0 : i32
    %c0_i32_1 = arith.constant 0 : i32
    return %c0_i32, %c0_i32_0 : i32, i32
  }
  func.func @transform_2(%arg0: i32) -> (i32, i32) {
    %c0_i32 = arith.constant 0 : i32
    %c0_i32_0 = arith.constant 0 : i32
    %c0_i32_1 = arith.constant 0 : i32
    return %c0_i32, %c0_i32_0 : i32, i32
  }
  func.func @transform_3(%arg0: i32) -> (i32, i32, i32) {
    %c0_i32 = arith.constant 0 : i32
    %c0_i32_0 = arith.constant 0 : i32
    %c0_i32_1 = arith.constant 0 : i32
    %c0_i32_2 = arith.constant 0 : i32
    return %c0_i32, %c0_i32_0, %c0_i32_1 : i32, i32, i32
  }
  func.func @transform_4(%arg0: i32) -> (i32, i32, i32) {
    %c0_i32 = arith.constant 0 : i32
    %c0_i32_0 = arith.constant 0 : i32
    %c0_i32_1 = arith.constant 0 : i32
    %c0_i32_2 = arith.constant 0 : i32
    return %c0_i32, %c0_i32_0, %c0_i32_1 : i32, i32, i32
  }
  func.func @transform_5(%arg0: i32) -> (i32, i32, i32) {
    %c0_i32 = arith.constant 0 : i32
    %c0_i32_0 = arith.constant 0 : i32
    %c0_i32_1 = arith.constant 0 : i32
    %c0_i32_2 = arith.constant 0 : i32
    return %c0_i32, %c0_i32_0, %c0_i32_1 : i32, i32, i32
  }
  func.func @transform_6(%arg0: i32) -> (i32, i32) {
    %c0_i32 = arith.constant 0 : i32
    %c0_i32_0 = arith.constant 0 : i32
    %c0_i32_1 = arith.constant 0 : i32
    return %c0_i32, %c0_i32_0 : i32, i32
  }
  func.func @transform_7(%arg0: i32) -> (i32, i32) {
    %c0_i32 = arith.constant 0 : i32
    %c0_i32_0 = arith.constant 0 : i32
    %c0_i32_1 = arith.constant 0 : i32
    return %c0_i32, %c0_i32_0 : i32, i32
  }
  func.func @transform_8(%arg0: i32) -> (i32, i32) {
    %c0_i32 = arith.constant 0 : i32
    %c0_i32_0 = arith.constant 0 : i32
    %c0_i32_1 = arith.constant 0 : i32
    return %c0_i32, %c0_i32_0 : i32, i32
  }
}

</mosaic_0001>

<llo_original>
// kernel: tpu_custom_call.1
$region0: #{tpu_custom_call.1}
  #allocation0 [shape = 'u32[]', space=smem, size = 0x4, offset = 0x4, fixed_abs, tag = 'smem constant byte address 0x4 - core index']
  #allocation1 [shape = 'u32[144,128]{1,0:T(1,128)}', space=vmem, size = 0x12000, scoped, tag = 'internal scratch']
  #allocation2 [shape = 'f32[3,64,32]{2,1,0:T(8,128)}', space=vmem, size = 0x18000, scoped, tag = 'scratch operand']
  #allocation3 [shape = 'f32[64,32]{1,0:T(8,128)}', space=vmem, size = 0x8000, scoped, tag = 'scratch operand']
  %s0 = inlined_call_operand.vmem [shape: f32[64,16], index: 0, kind: input, shape index: {}]
  %s1 = inlined_call_operand.vmem [shape: f32[16,32], index: 1, kind: input, shape index: {}]
  %s2 = inlined_call_operand.vmem [shape: f32[1,32], index: 2, kind: input, shape index: {}]
  %s3 = inlined_call_operand.hbm [shape: f32[3,32,32], index: 3, kind: input, shape index: {}]
  %s4 = inlined_call_operand.hbm [shape: f32[3,32,32], index: 4, kind: input, shape index: {}]
  %s5 = inlined_call_operand.vmem [shape: f32[4,1,32], index: 5, kind: input, shape index: {}]
  %s6 = inlined_call_operand.vmem [shape: f32[32,128], index: 6, kind: input, shape index: {}]
  %s7 = inlined_call_operand.vmem [shape: f32[1,128], index: 7, kind: input, shape index: {}]
  %s8 = inlined_call_operand.hbm [shape: f32[64,128], index: 8, kind: output, shape index: {}]
  %s9 = sld [smem:[#allocation0]]
  $region50: #{tpu_custom_call.1} parent=0
    _
  %s11 = ssub.s32 1, %s9
  %s12 = scalar_select 0, %s11, %s9
  $region1: #{tpu_custom_call.1} parent=0
    #allocation4 [shape = 'u8[49152]{0}', space=vmem, size = 0xc000, scoped, tag = 'input window, operand 3, single buffered']
    #allocation5 [shape = 's32[1]{0}', space=sflag, size = 0x4, scoped, tag = 'scoped memory for tpu_custom_call.1']
    #allocation6 [shape = 's32[1]{0}', space=sflag, size = 0x4, scoped, tag = 'scoped memory for tpu_custom_call.1']
    #allocation7 [shape = 'u8[49152]{0}', space=vmem, size = 0xc000, scoped, tag = 'input window, operand 4, single buffered']
    #allocation8 [shape = 's32[1]{0}', space=sflag, size = 0x4, scoped, tag = 'scoped memory for tpu_custom_call.1']
    #allocation9 [shape = 'u8[32768]{0}', space=vmem, size = 0x8000, scoped, tag = 'output window, operand 0, single buffered']
    %13 = vsyncpa [#allocation5], 0
    %14 = vsyncpa [#allocation8], 0
    %15 = vsyncpa [#allocation6], 0
    // Predicated region
    $region2: #{tpu_custom_call.1} parent=1 // pred_check
      _
    $region3: #{tpu_custom_call.1} parent=1 // pred_check_branch
      %17 = sbr.rel (0) target = $region5
    $region4: #{tpu_custom_call.1} parent=1 // pred_region
      _
    $region5: #{tpu_custom_call.1} parent=1 // pred_fallthru
      _
    // Predicated region
    $region6: #{tpu_custom_call.1} parent=1 // pred_check
      _
    $region7: #{tpu_custom_call.1} parent=1 // pred_check_branch
      %19 = sbr.rel (0) target = $region9
    $region8: #{tpu_custom_call.1} parent=1 // pred_region
      _
    $region9: #{tpu_custom_call.1} parent=1 // pred_fallthru
      _
    // Predicated region
    $region10: #{tpu_custom_call.1} parent=1 // pred_check
      _
    $region11: #{tpu_custom_call.1} parent=1 // pred_check_branch
      %21 = sbr.rel (0) target = $region13
    $region12: #{tpu_custom_call.1} parent=1 // pred_region
      _
    $region13: #{tpu_custom_call.1} parent=1 // pred_fallthru
      _
    // Predicated region
    $region14: #{tpu_custom_call.1} parent=1 // pred_check
      _
    $region15: #{tpu_custom_call.1} parent=1 // pred_check_branch
      %23 = sbr.rel (0) target = $region17
    $region16: #{tpu_custom_call.1} parent=1 // pred_region
      %s25 = ssub.s32 1536, 1536
      %26 = vsyncadd [#allocation5], %s25
      %s27 = sshll.u32 [#allocation4], 4
      %s28 = int_to_ptr.vmem [resolvable:$true] %s27
      %33 = dma.hbm_to_vmem [thread:$0]  %s3, 1536, %s28, [#allocation5], 128, 128, 8
    $region17: #{tpu_custom_call.1} parent=1 // pred_fallthru
      _
    // Predicated region
    $region18: #{tpu_custom_call.1} parent=1 // pred_check
      _
    $region19: #{tpu_custom_call.1} parent=1 // pred_check_branch
      %35 = sbr.rel (0) target = $region21
    $region20: #{tpu_custom_call.1} parent=1 // pred_region
      %s37 = ssub.s32 1536, 1536
      %38 = vsyncadd [#allocation8], %s37
      %s39 = sshll.u32 [#allocation7], 4
      %s40 = int_to_ptr.vmem [resolvable:$true] %s39
      %45 = dma.hbm_to_vmem [thread:$0]  %s4, 1536, %s40, [#allocation8], 128, 128, 8
    $region21: #{tpu_custom_call.1} parent=1 // pred_fallthru
      _
    // Predicated region
    $region22: #{tpu_custom_call.1} parent=1 // pred_check
      _
    $region23: #{tpu_custom_call.1} parent=1 // pred_check_branch
      %47 = sbr.rel (0) target = $region25
    $region24: #{tpu_custom_call.1} parent=1 // pred_region
      _
    $region25: #{tpu_custom_call.1} parent=1 // pred_fallthru
      _
    // Predicated region
    $region26: #{tpu_custom_call.1} parent=1 // pred_check
      _
    $region27: #{tpu_custom_call.1} parent=1 // pred_check_branch
      %49 = sbr.rel (0) target = $region29
    $region28: #{tpu_custom_call.1} parent=1 // pred_region
      _
    $region29: #{tpu_custom_call.1} parent=1 // pred_fallthru
      _
    // Predicated region
    $region30: #{tpu_custom_call.1} parent=1 // pred_check
      _
    $region31: #{tpu_custom_call.1} parent=1 // pred_check_branch
      %51 = sbr.rel (0) target = $region33
    $region32: #{tpu_custom_call.1} parent=1 // pred_region
      _
    $region33: #{tpu_custom_call.1} parent=1 // pred_fallthru
      _
    // Predicated region
    $region34: #{tpu_custom_call.1} parent=1 // pred_check
      _
    $region35: #{tpu_custom_call.1} parent=1 // pred_check_branch
      %53 = sbr.rel (0) target = $region37
    $region36: #{tpu_custom_call.1} parent=1 // pred_region
      %54 = dma.done [#allocation5], 1536
    $region37: #{tpu_custom_call.1} parent=1 // pred_fallthru
      _
    // Predicated region
    $region38: #{tpu_custom_call.1} parent=1 // pred_check
      _
    $region39: #{tpu_custom_call.1} parent=1 // pred_check_branch
      %56 = sbr.rel (0) target = $region41
    $region40: #{tpu_custom_call.1} parent=1 // pred_region
      %57 = dma.done [#allocation8], 1536
    $region41: #{tpu_custom_call.1} parent=1 // pred_fallthru
      _
    %v58 = vld [vmem:[%s0] sm:$0xff]
    %v59 = vld [vmem:[%s0 + $0x8] sm:$0xff]
    %v60 = vld [vmem:[%s0 + $0x10] sm:$0xff]
    %v61 = vld [vmem:[%s0 + $0x18] sm:$0xff]
    %v62 = vld [vmem:[%s0 + $0x20] sm:$0xff]
    %v63 = vld [vmem:[%s0 + $0x28] sm:$0xff]
    %v64 = vld [vmem:[%s0 + $0x30] sm:$0xff]
    %v65 = vld [vmem:[%s0 + $0x38] sm:$0xff]
    %v66 = vld [vmem:[%s1] sm:$0xff]
    %v67 = vld [vmem:[%s1 + $0x8] sm:$0xff]
    %v68 = vld [vmem:[%s2] sm:$0x1]
    %v70 = vlaneseq
    %v71 = vshrl.u32 %v70, 7
    %v72 = vsub.s32 0, %v71
    %v73 = vrot.slane %v68, %v72
    %vm75 = vcmask 130048
    %v77 = vsel %vm75, %v58, 0
    %v80 = vsel %vm75, %v59, 0
    %v83 = vsel %vm75, %v60, 0
    %v86 = vsel %vm75, %v61, 0
    %v89 = vsel %vm75, %v62, 0
    %v92 = vsel %vm75, %v63, 0
    %v95 = vsel %vm75, %v64, 0
    %v98 = vsel %vm75, %v65, 0
    %100 = vmatprep.subr.mxu0 0.0
    %101 = vmatpush1.msra.mxu0 %v66
    %102 = vmatprep.subr.mxu0 0.0
    %103 = vmatpush1.msra.mxu0 %v67
    %104 = vmatprep.subr.mxu0 0.0
    %105 = vmatpush1.msra.mxu0 0.0
    %106 = vmatprep.subr.mxu0 0.0
    %107 = vmatpush1.msra.mxu0 0.0
    %108 = vmatprep.subr.mxu0 0.0
    %109 = vmatpush1.msra.mxu0 0.0
    %110 = vmatprep.subr.mxu0 0.0
    %111 = vmatpush1.msra.mxu0 0.0
    %112 = vmatprep.subr.mxu0 0.0
    %113 = vmatpush1.msra.mxu0 0.0
    %114 = vmatprep.subr.mxu0 0.0
    %115 = vmatpush1.msra.mxu0 0.0
    %116 = vmatprep.subr.mxu0 0.0
    %117 = vmatpush1.msra.mxu0 0.0
    %118 = vmatprep.subr.mxu0 0.0
    %119 = vmatpush1.msra.mxu0 0.0
    %120 = vmatprep.subr.mxu0 0.0
    %121 = vmatpush1.msra.mxu0 0.0
    %122 = vmatprep.subr.mxu0 0.0
    %123 = vmatpush1.msra.mxu0 0.0
    %124 = vmatprep.subr.mxu0 0.0
    %125 = vmatpush1.msra.mxu0 0.0
    %126 = vmatprep.subr.mxu0 0.0
    %127 = vmatpush1.msra.mxu0 0.0
    %128 = vmatprep.subr.mxu0 0.0
    %129 = vmatpush1.msra.mxu0 0.0
    %130 = vmatprep.subr.mxu0 0.0
    %131 = vmatpush1.msra.mxu0 0.0
    %132 = vmatprep.subr.mxu0 0.0
    %133 = vmatpush1.msra.mxu0 0.0
    %134 = vmatprep.subr.mxu0 0.0
    %135 = vmatpush1.msra.mxu0 0.0
    %136 = vmatprep.subr.mxu0 0.0
    %137 = vmatpush1.msra.mxu0 0.0
    %138 = vmatprep.subr.mxu0 0.0
    %139 = vmatpush1.msra.mxu0 0.0
    %140 = vmatprep.subr.mxu0 0.0
    %141 = vmatpush1.msra.mxu0 0.0
    %142 = vmatprep.subr.mxu0 0.0
    %143 = vmatpush1.msra.mxu0 0.0
    %144 = vmatprep.subr.mxu0 0.0
    %145 = vmatpush1.msra.mxu0 0.0
    %146 = vmatprep.subr.mxu0 0.0
    %147 = vmatpush1.msra.mxu0 0.0
    %148 = vmatprep.subr.mxu0 0.0
    %149 = vmatpush1.msra.mxu0 0.0
    %150 = vmatprep.subr.mxu0 0.0
    %151 = vmatpush1.msra.mxu0 0.0
    %152 = vmatprep.subr.mxu0 0.0
    %153 = vmatpush1.msra.mxu0 0.0
    %154 = vmatprep.subr.mxu0 0.0
    %155 = vmatpush1.msra.mxu0 0.0
    %156 = vmatprep.subr.mxu0 0.0
    %157 = vmatpush1.msra.mxu0 0.0
    %158 = vmatprep.subr.mxu0 0.0
    %159 = vmatpush1.msra.mxu0 0.0
    %160 = vmatprep.subr.mxu0 0.0
    %161 = vmatpush1.msra.mxu0 0.0
    %162 = vmatprep.subr.mxu0 0.0
    %163 = vmatpush1.msra.mxu0 0.0
    %164 = vmatprep.mubr.f32.mxu0 0.0
    %165 = vmatmul.mubr.f32.gmra.mrb[0].mxu0 %v77
    %v166 = vpop.f32.mrb[0].mxu0
    %v167 = vadd.f32 %v73, %v166
    %v168 = vpop.f32.mrb[0].mxu0
    %169 = vmatprep.mubr.f32.mxu0 0.0
    %170 = vmatmul.mubr.f32.gmra.mrb[0].mxu0 %v80
    %v171 = vpop.f32.mrb[0].mxu0
    %v172 = vadd.f32 %v73, %v171
    %v173 = vpop.f32.mrb[0].mxu0
    %174 = vmatprep.mubr.f32.mxu0 0.0
    %175 = vmatmul.mubr.f32.gmra.mrb[0].mxu0 %v83
    %v176 = vpop.f32.mrb[0].mxu0
    %v177 = vadd.f32 %v73, %v176
    %v178 = vpop.f32.mrb[0].mxu0
    %179 = vmatprep.mubr.f32.mxu0 0.0
    %180 = vmatmul.mubr.f32.gmra.mrb[0].mxu0 %v86
    %v181 = vpop.f32.mrb[0].mxu0
    %v182 = vadd.f32 %v73, %v181
    %v183 = vpop.f32.mrb[0].mxu0
    %184 = vmatprep.mubr.f32.mxu0 0.0
    %185 = vmatmul.mubr.f32.gmra.mrb[0].mxu0 %v89
    %v186 = vpop.f32.mrb[0].mxu0
    %v187 = vadd.f32 %v73, %v186
    %v188 = vpop.f32.mrb[0].mxu0
    %189 = vmatprep.mubr.f32.mxu0 0.0
    %190 = vmatmul.mubr.f32.gmra.mrb[0].mxu0 %v92
    %v191 = vpop.f32.mrb[0].mxu0
    %v192 = vadd.f32 %v73, %v191
    %v193 = vpop.f32.mrb[0].mxu0
    %194 = vmatprep.mubr.f32.mxu0 0.0
    %195 = vmatmul.mubr.f32.gmra.mrb[0].mxu0 %v95
    %v196 = vpop.f32.mrb[0].mxu0
    %v197 = vadd.f32 %v73, %v196
    %v198 = vpop.f32.mrb[0].mxu0
    %199 = vmatprep.mubr.f32.mxu0 0.0
    %200 = vmatmul.mubr.f32.gmra.mrb[0].mxu0 %v98
    %v201 = vpop.f32.mrb[0].mxu0
    %v202 = vadd.f32 %v73, %v201
    %v203 = vpop.f32.mrb[0].mxu0
    %204 = vdwg.mxu0
    %v205 = vmax.f32 %v167, 0.0
    %v206 = vmax.f32 %v172, 0.0
    %v207 = vmax.f32 %v177, 0.0
    %v208 = vmax.f32 %v182, 0.0
    %v209 = vmax.f32 %v187, 0.0
    %v210 = vmax.f32 %v192, 0.0
    %v211 = vmax.f32 %v197, 0.0
    %v212 = vmax.f32 %v202, 0.0
    %v213 = vld [vmem:[#allocation4] sm:$0xff]
    %v214 = vld [vmem:[#allocation4 + $0x8] sm:$0xff]
    %v215 = vld [vmem:[#allocation4 + $0x10] sm:$0xff]
    %v216 = vld [vmem:[#allocation4 + $0x18] sm:$0xff]
    %v217 = vld [vmem:[%s5] sm:$0x1]
    %v219 = vlaneseq
    %v220 = vshrl.u32 %v219, 7
    %v221 = vsub.s32 0, %v220
    %v222 = vrot.slane %v217, %v221
    %vm224 = vcmask 261120
    %v226 = vsel %vm224, %v205, 0
    %v229 = vsel %vm224, %v206, 0
    %v232 = vsel %vm224, %v207, 0
    %v235 = vsel %vm224, %v208, 0
    %v238 = vsel %vm224, %v209, 0
    %v241 = vsel %vm224, %v210, 0
    %v244 = vsel %vm224, %v211, 0
    %v247 = vsel %vm224, %v212, 0
    %249 = vmatprep.subr.mxu0 0.0
    %250 = vmatpush1.msra.mxu0 %v213
    %251 = vmatprep.subr.mxu0 0.0
    %252 = vmatpush1.msra.mxu0 %v214
    %253 = vmatprep.subr.mxu0 0.0
    %254 = vmatpush1.msra.mxu0 %v215
    %255 = vmatprep.subr.mxu0 0.0
    %256 = vmatpush1.msra.mxu0 %v216
    %257 = vmatprep.subr.mxu0 0.0
    %258 = vmatpush1.msra.mxu0 0.0
    %259 = vmatprep.subr.mxu0 0.0
    %260 = vmatpush1.msra.mxu0 0.0
    %261 = vmatprep.subr.mxu0 0.0
    %262 = vmatpush1.msra.mxu0 0.0
    %263 = vmatprep.subr.mxu0 0.0
    %264 = vmatpush1.msra.mxu0 0.0
    %265 = vmatprep.subr.mxu0 0.0
    %266 = vmatpush1.msra.mxu0 0.0
    %267 = vmatprep.subr.mxu0 0.0
    %268 = vmatpush1.msra.mxu0 0.0
    %269 = vmatprep.subr.mxu0 0.0
    %270 = vmatpush1.msra.mxu0 0.0
    %271 = vmatprep.subr.mxu0 0.0
    %272 = vmatpush1.msra.mxu0 0.0
    %273 = vmatprep.subr.mxu0 0.0
    %274 = vmatpush1.msra.mxu0 0.0
    %275 = vmatprep.subr.mxu0 0.0
    %276 = vmatpush1.msra.mxu0 0.0
    %277 = vmatprep.subr.mxu0 0.0
    %278 = vmatpush1.msra.mxu0 0.0
    %279 = vmatprep.subr.mxu0 0.0
    %280 = vmatpush1.msra.mxu0 0.0
    %281 = vmatprep.subr.mxu0 0.0
    %282 = vmatpush1.msra.mxu0 0.0
    %283 = vmatprep.subr.mxu0 0.0
    %284 = vmatpush1.msra.mxu0 0.0
    %285 = vmatprep.subr.mxu0 0.0
    %286 = vmatpush1.msra.mxu0 0.0
    %287 = vmatprep.subr.mxu0 0.0
    %288 = vmatpush1.msra.mxu0 0.0
    %289 = vmatprep.subr.mxu0 0.0
    %290 = vmatpush1.msra.mxu0 0.0
    %291 = vmatprep.subr.mxu0 0.0
    %292 = vmatpush1.msra.mxu0 0.0
    %293 = vmatprep.subr.mxu0 0.0
    %294 = vmatpush1.msra.mxu0 0.0
    %295 = vmatprep.subr.mxu0 0.0
    %296 = vmatpush1.msra.mxu0 0.0
    %297 = vmatprep.subr.mxu0 0.0
    %298 = vmatpush1.msra.mxu0 0.0
    %299 = vmatprep.subr.mxu0 0.0
    %300 = vmatpush1.msra.mxu0 0.0
    %301 = vmatprep.subr.mxu0 0.0
    %302 = vmatpush1.msra.mxu0 0.0
    %303 = vmatprep.subr.mxu0 0.0
    %304 = vmatpush1.msra.mxu0 0.0
    %305 = vmatprep.subr.mxu0 0.0
    %306 = vmatpush1.msra.mxu0 0.0
    %307 = vmatprep.subr.mxu0 0.0
    %308 = vmatpush1.msra.mxu0 0.0
    %309 = vmatprep.subr.mxu0 0.0
    %310 = vmatpush1.msra.mxu0 0.0
    %311 = vmatprep.subr.mxu0 0.0
    %312 = vmatpush1.msra.mxu0 0.0
    %313 = vmatprep.mubr.f32.mxu0 0.0
    %314 = vmatmul.mubr.f32.gmra.mrb[0].mxu0 %v226
    %v315 = vpop.f32.mrb[0].mxu0
    %v316 = vadd.f32 %v222, %v315
    %v317 = vpop.f32.mrb[0].mxu0
    %318 = vmatprep.mubr.f32.mxu0 0.0
    %319 = vmatmul.mubr.f32.gmra.mrb[0].mxu0 %v229
    %v320 = vpop.f32.mrb[0].mxu0
    %v321 = vadd.f32 %v222, %v320
    %v322 = vpop.f32.mrb[0].mxu0
    %323 = vmatprep.mubr.f32.mxu0 0.0
    %324 = vmatmul.mubr.f32.gmra.mrb[0].mxu0 %v232
    %v325 = vpop.f32.mrb[0].mxu0
    %v326 = vadd.f32 %v222, %v325
    %v327 = vpop.f32.mrb[0].mxu0
    %328 = vmatprep.mubr.f32.mxu0 0.0
    %329 = vmatmul.mubr.f32.gmra.mrb[0].mxu0 %v235
    %v330 = vpop.f32.mrb[0].mxu0
    %v331 = vadd.f32 %v222, %v330
    %v332 = vpop.f32.mrb[0].mxu0
    %333 = vmatprep.mubr.f32.mxu0 0.0
    %334 = vmatmul.mubr.f32.gmra.mrb[0].mxu0 %v238
    %v335 = vpop.f32.mrb[0].mxu0
    %v336 = vadd.f32 %v222, %v335
    %v337 = vpop.f32.mrb[0].mxu0
    %338 = vmatprep.mubr.f32.mxu0 0.0
    %339 = vmatmul.mubr.f32.gmra.mrb[0].mxu0 %v241
    %v340 = vpop.f32.mrb[0].mxu0
    %v341 = vadd.f32 %v222, %v340
    %v342 = vpop.f32.mrb[0].mxu0
    %343 = vmatprep.mubr.f32.mxu0 0.0
    %344 = vmatmul.mubr.f32.gmra.mrb[0].mxu0 %v244
    %v345 = vpop.f32.mrb[0].mxu0
    %v346 = vadd.f32 %v222, %v345
    %v347 = vpop.f32.mrb[0].mxu0
    %348 = vmatprep.mubr.f32.mxu0 0.0
    %349 = vmatmul.mubr.f32.gmra.mrb[0].mxu0 %v247
    %v350 = vpop.f32.mrb[0].mxu0
    %v351 = vadd.f32 %v222, %v350
    %v352 = vpop.f32.mrb[0].mxu0
    %353 = vdwg.mxu0
    %354 = vst.msk [vmem:[#allocation2] sm:$0xff] %vm224, %v316
    %355 = vst.msk [vmem:[#allocation2 + $0x8] sm:$0xff] %vm224, %v321
    %356 = vst.msk [vmem:[#allocation2 + $0x10] sm:$0xff] %vm224, %v326
    %357 = vst.msk [vmem:[#allocation2 + $0x18] sm:$0xff] %vm224, %v331
    %358 = vst.msk [vmem:[#allocation2 + $0x20] sm:$0xff] %vm224, %v336
    %359 = vst.msk [vmem:[#allocation2 + $0x28] sm:$0xff] %vm224, %v341
    %360 = vst.msk [vmem:[#allocation2 + $0x30] sm:$0xff] %vm224, %v346
    %361 = vst.msk [vmem:[#allocation2 + $0x38] sm:$0xff] %vm224, %v351
    %s362 = scalar_lea.vmem [#allocation4], 32
    %v363 = vld [vmem:[%s362] sm:$0xff]
    %v364 = vld [vmem:[%s362 + $0x8] sm:$0xff]
    %v365 = vld [vmem:[%s362 + $0x10] sm:$0xff]
    %v366 = vld [vmem:[%s362 + $0x18] sm:$0xff]
    %s367 = scalar_lea.vmem %s5, 1
    %v368 = vld [vmem:[%s367] sm:$0x1]
    %v370 = vlaneseq
    %v371 = vshrl.u32 %v370, 7
    %v372 = vsub.s32 0, %v371
    %v373 = vrot.slane %v368, %v372
    %375 = vmatprep.subr.mxu0 0.0
    %376 = vmatpush1.msra.mxu0 %v363
    %377 = vmatprep.subr.mxu0 0.0
    %378 = vmatpush1.msra.mxu0 %v364
    %379 = vmatprep.subr.mxu0 0.0
    %380 = vmatpush1.msra.mxu0 %v365
    %381 = vmatprep.subr.mxu0 0.0
    %382 = vmatpush1.msra.mxu0 %v366
    %383 = vmatprep.subr.mxu0 0.0
    %384 = vmatpush1.msra.mxu0 0.0
    %385 = vmatprep.subr.mxu0 0.0
    %386 = vmatpush1.msra.mxu0 0.0
    %387 = vmatprep.subr.mxu0 0.0
    %388 = vmatpush1.msra.mxu0 0.0
    %389 = vmatprep.subr.mxu0 0.0
    %390 = vmatpush1.msra.mxu0 0.0
    %391 = vmatprep.subr.mxu0 0.0
    %392 = vmatpush1.msra.mxu0 0.0
    %393 = vmatprep.subr.mxu0 0.0
    %394 = vmatpush1.msra.mxu0 0.0
    %395 = vmatprep.subr.mxu0 0.0
    %396 = vmatpush1.msra.mxu0 0.0
    %397 = vmatprep.subr.mxu0 0.0
    %398 = vmatpush1.msra.mxu0 0.0
    %399 = vmatprep.subr.mxu0 0.0
    %400 = vmatpush1.msra.mxu0 0.0
    %401 = vmatprep.subr.mxu0 0.0
    %402 = vmatpush1.msra.mxu0 0.0
    %403 = vmatprep.subr.mxu0 0.0
    %404 = vmatpush1.msra.mxu0 0.0
    %405 = vmatprep.subr.mxu0 0.0
    %406 = vmatpush1.msra.mxu0 0.0
    %407 = vmatprep.subr.mxu0 0.0
    %408 = vmatpush1.msra.mxu0 0.0
    %409 = vmatprep.subr.mxu0 0.0
    %410 = vmatpush1.msra.mxu0 0.0
    %411 = vmatprep.subr.mxu0 0.0
    %412 = vmatpush1.msra.mxu0 0.0
    %413 = vmatprep.subr.mxu0 0.0
    %414 = vmatpush1.msra.mxu0 0.0
    %415 = vmatprep.subr.mxu0 0.0
    %416 = vmatpush1.msra.mxu0 0.0
    %417 = vmatprep.subr.mxu0 0.0
    %418 = vmatpush1.msra.mxu0 0.0
    %419 = vmatprep.subr.mxu0 0.0
    %420 = vmatpush1.msra.mxu0 0.0
    %421 = vmatprep.subr.mxu0 0.0
    %422 = vmatpush1.msra.mxu0 0.0
    %423 = vmatprep.subr.mxu0 0.0
    %424 = vmatpush1.msra.mxu0 0.0
    %425 = vmatprep.subr.mxu0 0.0
    %426 = vmatpush1.msra.mxu0 0.0
    %427 = vmatprep.subr.mxu0 0.0
    %428 = vmatpush1.msra.mxu0 0.0
    %429 = vmatprep.subr.mxu0 0.0
    %430 = vmatpush1.msra.mxu0 0.0
    %431 = vmatprep.subr.mxu0 0.0
    %432 = vmatpush1.msra.mxu0 0.0
    %433 = vmatprep.subr.mxu0 0.0
    %434 = vmatpush1.msra.mxu0 0.0
    %435 = vmatprep.subr.mxu0 0.0
    %436 = vmatpush1.msra.mxu0 0.0
    %437 = vmatprep.subr.mxu0 0.0
    %438 = vmatpush1.msra.mxu0 0.0
    %439 = vmatprep.mubr.f32.mxu0 0.0
    %440 = vmatmul.mubr.f32.gmra.mrb[0].mxu0 %v226
    %v441 = vpop.f32.mrb[0].mxu0
    %v442 = vadd.f32 %v373, %v441
    %v443 = vpop.f32.mrb[0].mxu0
    %444 = vmatprep.mubr.f32.mxu0 0.0
    %445 = vmatmul.mubr.f32.gmra.mrb[0].mxu0 %v229
    %v446 = vpop.f32.mrb[0].mxu0
    %v447 = vadd.f32 %v373, %v446
    %v448 = vpop.f32.mrb[0].mxu0
    %449 = vmatprep.mubr.f32.mxu0 0.0
    %450 = vmatmul.mubr.f32.gmra.mrb[0].mxu0 %v232
    %v451 = vpop.f32.mrb[0].mxu0
    %v452 = vadd.f32 %v373, %v451
    %v453 = vpop.f32.mrb[0].mxu0
    %454 = vmatprep.mubr.f32.mxu0 0.0
    %455 = vmatmul.mubr.f32.gmra.mrb[0].mxu0 %v235
    %v456 = vpop.f32.mrb[0].mxu0
    %v457 = vadd.f32 %v373, %v456
    %v458 = vpop.f32.mrb[0].mxu0
    %459 = vmatprep.mubr.f32.mxu0 0.0
    %460 = vmatmul.mubr.f32.gmra.mrb[0].mxu0 %v238
    %v461 = vpop.f32.mrb[0].mxu0
    %v462 = vadd.f32 %v373, %v461
    %v463 = vpop.f32.mrb[0].mxu0
    %464 = vmatprep.mubr.f32.mxu0 0.0
    %465 = vmatmul.mubr.f32.gmra.mrb[0].mxu0 %v241
    %v466 = vpop.f32.mrb[0].mxu0
    %v467 = vadd.f32 %v373, %v466
    %v468 = vpop.f32.mrb[0].mxu0
    %469 = vmatprep.mubr.f32.mxu0 0.0
    %470 = vmatmul.mubr.f32.gmra.mrb[0].mxu0 %v244
    %v471 = vpop.f32.mrb[0].mxu0
    %v472 = vadd.f32 %v373, %v471
    %v473 = vpop.f32.mrb[0].mxu0
    %474 = vmatprep.mubr.f32.mxu0 0.0
    %475 = vmatmul.mubr.f32.gmra.mrb[0].mxu0 %v247
    %v476 = vpop.f32.mrb[0].mxu0
    %v477 = vadd.f32 %v373, %v476
    %v478 = vpop.f32.mrb[0].mxu0
    %479 = vdwg.mxu0
    %s480 = scalar_lea.vmem [#allocation2], 64
    %481 = vst.msk [vmem:[%s480] sm:$0xff] %vm224, %v442
    %482 = vst.msk [vmem:[%s480 + $0x8] sm:$0xff] %vm224, %v447
    %483 = vst.msk [vmem:[%s480 + $0x10] sm:$0xff] %vm224, %v452
    %484 = vst.msk [vmem:[%s480 + $0x18] sm:$0xff] %vm224, %v457
    %485 = vst.msk [vmem:[%s480 + $0x20] sm:$0xff] %vm224, %v462
    %486 = vst.msk [vmem:[%s480 + $0x28] sm:$0xff] %vm224, %v467
    %487 = vst.msk [vmem:[%s480 + $0x30] sm:$0xff] %vm224, %v472
    %488 = vst.msk [vmem:[%s480 + $0x38] sm:$0xff] %vm224, %v477
    %s489 = scalar_lea.vmem [#allocation4], 64
    %v490 = vld [vmem:[%s489] sm:$0xff]
    %v491 = vld [vmem:[%s489 + $0x8] sm:$0xff]
    %v492 = vld [vmem:[%s489 + $0x10] sm:$0xff]
    %v493 = vld [vmem:[%s489 + $0x18] sm:$0xff]
    %s494 = scalar_lea.vmem %s5, 2
    %v495 = vld [vmem:[%s494] sm:$0x1]
    %v497 = vlaneseq
    %v498 = vshrl.u32 %v497, 7
    %v499 = vsub.s32 0, %v498
    %v500 = vrot.slane %v495, %v499
    %502 = vmatprep.subr.mxu0 0.0
    %503 = vmatpush1.msra.mxu0 %v490
    %504 = vmatprep.subr.mxu0 0.0
    %505 = vmatpush1.msra.mxu0 %v491
    %506 = vmatprep.subr.mxu0 0.0
    %507 = vmatpush1.msra.mxu0 %v492
    %508 = vmatprep.subr.mxu0 0.0
    %509 = vmatpush1.msra.mxu0 %v493
    %510 = vmatprep.subr.mxu0 0.0
    %511 = vmatpush1.msra.mxu0 0.0
    %512 = vmatprep.subr.mxu0 0.0
    %513 = vmatpush1.msra.mxu0 0.0
    %514 = vmatprep.subr.mxu0 0.0
    %515 = vmatpush1.msra.mxu0 0.0
    %516 = vmatprep.subr.mxu0 0.0
    %517 = vmatpush1.msra.mxu0 0.0
    %518 = vmatprep.subr.mxu0 0.0
    %519 = vmatpush1.msra.mxu0 0.0
    %520 = vmatprep.subr.mxu0 0.0
    %521 = vmatpush1.msra.mxu0 0.0
    %522 = vmatprep.subr.mxu0 0.0
    %523 = vmatpush1.msra.mxu0 0.0
    %524 = vmatprep.subr.mxu0 0.0
    %525 = vmatpush1.msra.mxu0 0.0
    %526 = vmatprep.subr.mxu0 0.0
    %527 = vmatpush1.msra.mxu0 0.0
    %528 = vmatprep.subr.mxu0 0.0
    %529 = vmatpush1.msra.mxu0 0.0
    %530 = vmatprep.subr.mxu0 0.0
    %531 = vmatpush1.msra.mxu0 0.0
    %532 = vmatprep.subr.mxu0 0.0
    %533 = vmatpush1.msra.mxu0 0.0
    %534 = vmatprep.subr.mxu0 0.0
    %535 = vmatpush1.msra.mxu0 0.0
    %536 = vmatprep.subr.mxu0 0.0
    %537 = vmatpush1.msra.mxu0 0.0
    %538 = vmatprep.subr.mxu0 0.0
    %539 = vmatpush1.msra.mxu0 0.0
    %540 = vmatprep.subr.mxu0 0.0
    %541 = vmatpush1.msra.mxu0 0.0
    %542 = vmatprep.subr.mxu0 0.0
    %543 = vmatpush1.msra.mxu0 0.0
    %544 = vmatprep.subr.mxu0 0.0
    %545 = vmatpush1.msra.mxu0 0.0
    %546 = vmatprep.subr.mxu0 0.0
    %547 = vmatpush1.msra.mxu0 0.0
    %548 = vmatprep.subr.mxu0 0.0
    %549 = vmatpush1.msra.mxu0 0.0
    %550 = vmatprep.subr.mxu0 0.0
    %551 = vmatpush1.msra.mxu0 0.0
    %552 = vmatprep.subr.mxu0 0.0
    %553 = vmatpush1.msra.mxu0 0.0
    %554 = vmatprep.subr.mxu0 0.0
    %555 = vmatpush1.msra.mxu0 0.0
    %556 = vmatprep.subr.mxu0 0.0
    %557 = vmatpush1.msra.mxu0 0.0
    %558 = vmatprep.subr.mxu0 0.0
    %559 = vmatpush1.msra.mxu0 0.0
    %560 = vmatprep.subr.mxu0 0.0
    %561 = vmatpush1.msra.mxu0 0.0
    %562 = vmatprep.subr.mxu0 0.0
    %563 = vmatpush1.msra.mxu0 0.0
    %564 = vmatprep.subr.mxu0 0.0
    %565 = vmatpush1.msra.mxu0 0.0
    %566 = vmatprep.mubr.f32.mxu0 0.0
    %567 = vmatmul.mubr.f32.gmra.mrb[0].mxu0 %v226
    %v568 = vpop.f32.mrb[0].mxu0
    %v569 = vadd.f32 %v500, %v568
    %v570 = vpop.f32.mrb[0].mxu0
    %571 = vmatprep.mubr.f32.mxu0 0.0
    %572 = vmatmul.mubr.f32.gmra.mrb[0].mxu0 %v229
    %v573 = vpop.f32.mrb[0].mxu0
    %v574 = vadd.f32 %v500, %v573
    %v575 = vpop.f32.mrb[0].mxu0
    %576 = vmatprep.mubr.f32.mxu0 0.0
    %577 = vmatmul.mubr.f32.gmra.mrb[0].mxu0 %v232
    %v578 = vpop.f32.mrb[0].mxu0
    %v579 = vadd.f32 %v500, %v578
    %v580 = vpop.f32.mrb[0].mxu0
    %581 = vmatprep.mubr.f32.mxu0 0.0
    %582 = vmatmul.mubr.f32.gmra.mrb[0].mxu0 %v235
    %v583 = vpop.f32.mrb[0].mxu0
    %v584 = vadd.f32 %v500, %v583
    %v585 = vpop.f32.mrb[0].mxu0
    %586 = vmatprep.mubr.f32.mxu0 0.0
    %587 = vmatmul.mubr.f32.gmra.mrb[0].mxu0 %v238
    %v588 = vpop.f32.mrb[0].mxu0
    %v589 = vadd.f32 %v500, %v588
    %v590 = vpop.f32.mrb[0].mxu0
    %591 = vmatprep.mubr.f32.mxu0 0.0
    %592 = vmatmul.mubr.f32.gmra.mrb[0].mxu0 %v241
    %v593 = vpop.f32.mrb[0].mxu0
    %v594 = vadd.f32 %v500, %v593
    %v595 = vpop.f32.mrb[0].mxu0
    %596 = vmatprep.mubr.f32.mxu0 0.0
    %597 = vmatmul.mubr.f32.gmra.mrb[0].mxu0 %v244
    %v598 = vpop.f32.mrb[0].mxu0
    %v599 = vadd.f32 %v500, %v598
    %v600 = vpop.f32.mrb[0].mxu0
    %601 = vmatprep.mubr.f32.mxu0 0.0
    %602 = vmatmul.mubr.f32.gmra.mrb[0].mxu0 %v247
    %v603 = vpop.f32.mrb[0].mxu0
    %v604 = vadd.f32 %v500, %v603
    %v605 = vpop.f32.mrb[0].mxu0
    %606 = vdwg.mxu0
    %s607 = scalar_lea.vmem [#allocation2], 128
    %608 = vst.msk [vmem:[%s607] sm:$0xff] %vm224, %v569
    %609 = vst.msk [vmem:[%s607 + $0x8] sm:$0xff] %vm224, %v574
    %610 = vst.msk [vmem:[%s607 + $0x10] sm:$0xff] %vm224, %v579
    %611 = vst.msk [vmem:[%s607 + $0x18] sm:$0xff] %vm224, %v584
    %612 = vst.msk [vmem:[%s607 + $0x20] sm:$0xff] %vm224, %v589
    %613 = vst.msk [vmem:[%s607 + $0x28] sm:$0xff] %vm224, %v594
    %614 = vst.msk [vmem:[%s607 + $0x30] sm:$0xff] %vm224, %v599
    %615 = vst.msk [vmem:[%s607 + $0x38] sm:$0xff] %vm224, %v604
    %v616 = vld [vmem:[#allocation7] sm:$0xff]
    %v617 = vld [vmem:[#allocation7 + $0x8] sm:$0xff]
    %v618 = vld [vmem:[#allocation7 + $0x10] sm:$0xff]
    %v619 = vld [vmem:[#allocation7 + $0x18] sm:$0xff]
    %s620 = scalar_lea.vmem [#allocation7], 32
    %v621 = vld [vmem:[%s620] sm:$0xff]
    %v622 = vld [vmem:[%s620 + $0x8] sm:$0xff]
    %v623 = vld [vmem:[%s620 + $0x10] sm:$0xff]
    %v624 = vld [vmem:[%s620 + $0x18] sm:$0xff]
    %s625 = scalar_lea.vmem [#allocation7], 64
    %v626 = vld [vmem:[%s625] sm:$0xff]
    %v627 = vld [vmem:[%s625 + $0x8] sm:$0xff]
    %v628 = vld [vmem:[%s625 + $0x10] sm:$0xff]
    %v629 = vld [vmem:[%s625 + $0x18] sm:$0xff]
    %s630 = scalar_lea.vmem %s5, 3
    %v631 = vld [vmem:[%s630] sm:$0x1]
    %v633 = vsel %vm224, 0.0, 0
    %635 = vmatprep.subr.mxu0 0.0
    %636 = vmatpush1.msra.mxu0 %v616
    %637 = vmatprep.subr.mxu0 0.0
    %638 = vmatpush1.msra.mxu0 %v617
    %639 = vmatprep.subr.mxu0 0.0
    %640 = vmatpush1.msra.mxu0 %v618
    %641 = vmatprep.subr.mxu0 0.0
    %642 = vmatpush1.msra.mxu0 %v619
    %643 = vmatprep.subr.mxu0 0.0
    %644 = vmatpush1.msra.mxu0 0.0
    %645 = vmatprep.subr.mxu0 0.0
    %646 = vmatpush1.msra.mxu0 0.0
    %647 = vmatprep.subr.mxu0 0.0
    %648 = vmatpush1.msra.mxu0 0.0
    %649 = vmatprep.subr.mxu0 0.0
    %650 = vmatpush1.msra.mxu0 0.0
    %651 = vmatprep.subr.mxu0 0.0
    %652 = vmatpush1.msra.mxu0 0.0
    %653 = vmatprep.subr.mxu0 0.0
    %654 = vmatpush1.msra.mxu0 0.0
    %655 = vmatprep.subr.mxu0 0.0
    %656 = vmatpush1.msra.mxu0 0.0
    %657 = vmatprep.subr.mxu0 0.0
    %658 = vmatpush1.msra.mxu0 0.0
    %659 = vmatprep.subr.mxu0 0.0
    %660 = vmatpush1.msra.mxu0 0.0
    %661 = vmatprep.subr.mxu0 0.0
    %662 = vmatpush1.msra.mxu0 0.0
    %663 = vmatprep.subr.mxu0 0.0
    %664 = vmatpush1.msra.mxu0 0.0
    %665 = vmatprep.subr.mxu0 0.0
    %666 = vmatpush1.msra.mxu0 0.0
    %667 = vmatprep.subr.mxu0 0.0
    %668 = vmatpush1.msra.mxu0 0.0
    %669 = vmatprep.subr.mxu0 0.0
    %670 = vmatpush1.msra.mxu0 0.0
    %671 = vmatprep.subr.mxu0 0.0
    %672 = vmatpush1.msra.mxu0 0.0
    %673 = vmatprep.subr.mxu0 0.0
    %674 = vmatpush1.msra.mxu0 0.0
    %675 = vmatprep.subr.mxu0 0.0
    %676 = vmatpush1.msra.mxu0 0.0
    %677 = vmatprep.subr.mxu0 0.0
    %678 = vmatpush1.msra.mxu0 0.0
    %679 = vmatprep.subr.mxu0 0.0
    %680 = vmatpush1.msra.mxu0 0.0
    %681 = vmatprep.subr.mxu0 0.0
    %682 = vmatpush1.msra.mxu0 0.0
    %683 = vmatprep.subr.mxu0 0.0
    %684 = vmatpush1.msra.mxu0 0.0
    %685 = vmatprep.subr.mxu0 0.0
    %686 = vmatpush1.msra.mxu0 0.0
    %687 = vmatprep.subr.mxu0 0.0
    %688 = vmatpush1.msra.mxu0 0.0
    %689 = vmatprep.subr.mxu0 0.0
    %690 = vmatpush1.msra.mxu0 0.0
    %691 = vmatprep.subr.mxu0 0.0
    %692 = vmatpush1.msra.mxu0 0.0
    %693 = vmatprep.subr.mxu0 0.0
    %694 = vmatpush1.msra.mxu0 0.0
    %695 = vmatprep.subr.mxu0 0.0
    %696 = vmatpush1.msra.mxu0 0.0
    %697 = vmatprep.subr.mxu0 0.0
    %698 = vmatpush1.msra.mxu0 0.0
    %699 = vmatprep.mubr.f32.mxu0 0.0
    %700 = vmatmul.mubr.f32.gmra.mrb[0].mxu0 %v633
    %v701 = vpop.f32.mrb[0].mxu0
    %v702 = vadd.f32 0.0, %v701
    %v703 = vpop.f32.mrb[0].mxu0
    %704 = vdwg.mxu0
    %705 = vmatprep.subr.mxu0 0.0
    %706 = vmatpush1.msra.mxu0 %v621
    %707 = vmatprep.subr.mxu0 0.0
    %708 = vmatpush1.msra.mxu0 %v622
    %709 = vmatprep.subr.mxu0 0.0
    %710 = vmatpush1.msra.mxu0 %v623
    %711 = vmatprep.subr.mxu0 0.0
    %712 = vmatpush1.msra.mxu0 %v624
    %713 = vmatprep.subr.mxu0 0.0
    %714 = vmatpush1.msra.mxu0 0.0
    %715 = vmatprep.subr.mxu0 0.0
    %716 = vmatpush1.msra.mxu0 0.0
    %717 = vmatprep.subr.mxu0 0.0
    %718 = vmatpush1.msra.mxu0 0.0
    %719 = vmatprep.subr.mxu0 0.0
    %720 = vmatpush1.msra.mxu0 0.0
    %721 = vmatprep.subr.mxu0 0.0
    %722 = vmatpush1.msra.mxu0 0.0
    %723 = vmatprep.subr.mxu0 0.0
    %724 = vmatpush1.msra.mxu0 0.0
    %725 = vmatprep.subr.mxu0 0.0
    %726 = vmatpush1.msra.mxu0 0.0
    %727 = vmatprep.subr.mxu0 0.0
    %728 = vmatpush1.msra.mxu0 0.0
    %729 = vmatprep.subr.mxu0 0.0
    %730 = vmatpush1.msra.mxu0 0.0
    %731 = vmatprep.subr.mxu0 0.0
    %732 = vmatpush1.msra.mxu0 0.0
    %733 = vmatprep.subr.mxu0 0.0
    %734 = vmatpush1.msra.mxu0 0.0
    %735 = vmatprep.subr.mxu0 0.0
    %736 = vmatpush1.msra.mxu0 0.0
    %737 = vmatprep.subr.mxu0 0.0
    %738 = vmatpush1.msra.mxu0 0.0
    %739 = vmatprep.subr.mxu0 0.0
    %740 = vmatpush1.msra.mxu0 0.0
    %741 = vmatprep.subr.mxu0 0.0
    %742 = vmatpush1.msra.mxu0 0.0
    %743 = vmatprep.subr.mxu0 0.0
    %744 = vmatpush1.msra.mxu0 0.0
    %745 = vmatprep.subr.mxu0 0.0
    %746 = vmatpush1.msra.mxu0 0.0
    %747 = vmatprep.subr.mxu0 0.0
    %748 = vmatpush1.msra.mxu0 0.0
    %749 = vmatprep.subr.mxu0 0.0
    %750 = vmatpush1.msra.mxu0 0.0
    %751 = vmatprep.subr.mxu0 0.0
    %752 = vmatpush1.msra.mxu0 0.0
    %753 = vmatprep.subr.mxu0 0.0
    %754 = vmatpush1.msra.mxu0 0.0
    %755 = vmatprep.subr.mxu0 0.0
    %756 = vmatpush1.msra.mxu0 0.0
    %757 = vmatprep.subr.mxu0 0.0
    %758 = vmatpush1.msra.mxu0 0.0
    %759 = vmatprep.subr.mxu0 0.0
    %760 = vmatpush1.msra.mxu0 0.0
    %761 = vmatprep.subr.mxu0 0.0
    %762 = vmatpush1.msra.mxu0 0.0
    %763 = vmatprep.subr.mxu0 0.0
    %764 = vmatpush1.msra.mxu0 0.0
    %765 = vmatprep.subr.mxu0 0.0
    %766 = vmatpush1.msra.mxu0 0.0
    %767 = vmatprep.subr.mxu0 0.0
    %768 = vmatpush1.msra.mxu0 0.0
    %769 = vmatprep.mubr.f32.mxu0 0.0
    %770 = vmatmul.mubr.f32.gmra.mrb[0].mxu0 %v633
    %v771 = vpop.f32.mrb[0].mxu0
    %v772 = vadd.f32 0.0, %v771
    %v773 = vpop.f32.mrb[0].mxu0
    %774 = vdwg.mxu0
    %v776 = vlaneseq
    %v777 = vshrl.u32 %v776, 7
    %v778 = vsub.s32 0, %v777
    %v779 = vrot.slane %v631, %v778
    %781 = vmatprep.subr.mxu0 0.0
    %782 = vmatpush1.msra.mxu0 %v626
    %783 = vmatprep.subr.mxu0 0.0
    %784 = vmatpush1.msra.mxu0 %v627
    %785 = vmatprep.subr.mxu0 0.0
    %786 = vmatpush1.msra.mxu0 %v628
    %787 = vmatprep.subr.mxu0 0.0
    %788 = vmatpush1.msra.mxu0 %v629
    %789 = vmatprep.subr.mxu0 0.0
    %790 = vmatpush1.msra.mxu0 0.0
    %791 = vmatprep.subr.mxu0 0.0
    %792 = vmatpush1.msra.mxu0 0.0
    %793 = vmatprep.subr.mxu0 0.0
    %794 = vmatpush1.msra.mxu0 0.0
    %795 = vmatprep.subr.mxu0 0.0
    %796 = vmatpush1.msra.mxu0 0.0
    %797 = vmatprep.subr.mxu0 0.0
    %798 = vmatpush1.msra.mxu0 0.0
    %799 = vmatprep.subr.mxu0 0.0
    %800 = vmatpush1.msra.mxu0 0.0
    %801 = vmatprep.subr.mxu0 0.0
    %802 = vmatpush1.msra.mxu0 0.0
    %803 = vmatprep.subr.mxu0 0.0
    %804 = vmatpush1.msra.mxu0 0.0
    %805 = vmatprep.subr.mxu0 0.0
    %806 = vmatpush1.msra.mxu0 0.0
    %807 = vmatprep.subr.mxu0 0.0
    %808 = vmatpush1.msra.mxu0 0.0
    %809 = vmatprep.subr.mxu0 0.0
    %810 = vmatpush1.msra.mxu0 0.0
    %811 = vmatprep.subr.mxu0 0.0
    %812 = vmatpush1.msra.mxu0 0.0
    %813 = vmatprep.subr.mxu0 0.0
    %814 = vmatpush1.msra.mxu0 0.0
    %815 = vmatprep.subr.mxu0 0.0
    %816 = vmatpush1.msra.mxu0 0.0
    %817 = vmatprep.subr.mxu0 0.0
    %818 = vmatpush1.msra.mxu0 0.0
    %819 = vmatprep.subr.mxu0 0.0
    %820 = vmatpush1.msra.mxu0 0.0
    %821 = vmatprep.subr.mxu0 0.0
    %822 = vmatpush1.msra.mxu0 0.0
    %823 = vmatprep.subr.mxu0 0.0
    %824 = vmatpush1.msra.mxu0 0.0
    %825 = vmatprep.subr.mxu0 0.0
    %826 = vmatpush1.msra.mxu0 0.0
    %827 = vmatprep.subr.mxu0 0.0
    %828 = vmatpush1.msra.mxu0 0.0
    %829 = vmatprep.subr.mxu0 0.0
    %830 = vmatpush1.msra.mxu0 0.0
    %831 = vmatprep.subr.mxu0 0.0
    %832 = vmatpush1.msra.mxu0 0.0
    %833 = vmatprep.subr.mxu0 0.0
    %834 = vmatpush1.msra.mxu0 0.0
    %835 = vmatprep.subr.mxu0 0.0
    %836 = vmatpush1.msra.mxu0 0.0
    %837 = vmatprep.subr.mxu0 0.0
    %838 = vmatpush1.msra.mxu0 0.0
    %839 = vmatprep.subr.mxu0 0.0
    %840 = vmatpush1.msra.mxu0 0.0
    %841 = vmatprep.subr.mxu0 0.0
    %842 = vmatpush1.msra.mxu0 0.0
    %843 = vmatprep.subr.mxu0 0.0
    %844 = vmatpush1.msra.mxu0 0.0
    %845 = vmatprep.mubr.f32.mxu0 0.0
    %846 = vmatmul.mubr.f32.gmra.mrb[0].mxu0 %v633
    %v847 = vpop.f32.mrb[0].mxu0
    %v848 = vadd.f32 %v779, %v847
    %v849 = vpop.f32.mrb[0].mxu0
    %850 = vdwg.mxu0
    %v851 = vld [vmem:[#allocation2] sm:$0xff]
    %v852 = vadd.f32 %v851, %v702
    %v853 = vxor.u32 %v852, 2147483648
    %v854 = vmul.f32 %v853, 1.442695
    %v855 = vpow.pop %v854
    %v856 = vadd.f32 %v855, 1.0
    %v857 = vrcp.pop %v856
    %v858 = vmul.f32 1.0, %v857
    %s859 = sadd.s32 0, 64
    %s860 = scalar_lea.vmem [#allocation2], %s859
    %v861 = vld [vmem:[%s860] sm:$0xff]
    %v862 = vadd.f32 %v861, %v772
    %v863 = vxor.u32 %v862, 2147483648
    %v864 = vmul.f32 %v863, 1.442695
    %v865 = vpow.pop %v864
    %v866 = vadd.f32 %v865, 1.0
    %v867 = vrcp.pop %v866
    %v868 = vmul.f32 1.0, %v867
    %s869 = sadd.s32 0, 128
    %s870 = scalar_lea.vmem [#allocation2], %s869
    %v871 = vld [vmem:[%s870] sm:$0xff]
    %v872 = vmul.f32 %v858, %v848
    %v873 = vadd.f32 %v871, %v872
    %v874 = vtanh.pop %v873
    %v875 = vsub.f32 1.0, %v868
    %v876 = vmul.f32 %v875, %v874
    %v877 = vmul.f32 %v868, 0.0
    %v878 = vadd.f32 %v876, %v877
    %v879 = vmax.f32 %v878, 0.0
    %880 = vst.msk [vmem:[#allocation3] sm:$0xff] %vm224, %v879
    %v882 = vsel %vm224, %v878, 0
    %884 = vmatprep.subr.mxu0 0.0
    %885 = vmatpush1.msra.mxu0 %v616
    %886 = vmatprep.subr.mxu0 0.0
    %887 = vmatpush1.msra.mxu0 %v617
    %888 = vmatprep.subr.mxu0 0.0
    %889 = vmatpush1.msra.mxu0 %v618
    %890 = vmatprep.subr.mxu0 0.0
    %891 = vmatpush1.msra.mxu0 %v619
    %892 = vmatprep.subr.mxu0 0.0
    %893 = vmatpush1.msra.mxu0 0.0
    %894 = vmatprep.subr.mxu0 0.0
    %895 = vmatpush1.msra.mxu0 0.0
    %896 = vmatprep.subr.mxu0 0.0
    %897 = vmatpush1.msra.mxu0 0.0
    %898 = vmatprep.subr.mxu0 0.0
    %899 = vmatpush1.msra.mxu0 0.0
    %900 = vmatprep.subr.mxu0 0.0
    %901 = vmatpush1.msra.mxu0 0.0
    %902 = vmatprep.subr.mxu0 0.0
    %903 = vmatpush1.msra.mxu0 0.0
    %904 = vmatprep.subr.mxu0 0.0
    %905 = vmatpush1.msra.mxu0 0.0
    %906 = vmatprep.subr.mxu0 0.0
    %907 = vmatpush1.msra.mxu0 0.0
    %908 = vmatprep.subr.mxu0 0.0
    %909 = vmatpush1.msra.mxu0 0.0
    %910 = vmatprep.subr.mxu0 0.0
    %911 = vmatpush1.msra.mxu0 0.0
    %912 = vmatprep.subr.mxu0 0.0
    %913 = vmatpush1.msra.mxu0 0.0
    %914 = vmatprep.subr.mxu0 0.0
    %915 = vmatpush1.msra.mxu0 0.0
    %916 = vmatprep.subr.mxu0 0.0
    %917 = vmatpush1.msra.mxu0 0.0
    %918 = vmatprep.subr.mxu0 0.0
    %919 = vmatpush1.msra.mxu0 0.0
    %920 = vmatprep.subr.mxu0 0.0
    %921 = vmatpush1.msra.mxu0 0.0
    %922 = vmatprep.subr.mxu0 0.0
    %923 = vmatpush1.msra.mxu0 0.0
    %924 = vmatprep.subr.mxu0 0.0
    %925 = vmatpush1.msra.mxu0 0.0
    %926 = vmatprep.subr.mxu0 0.0
    %927 = vmatpush1.msra.mxu0 0.0
    %928 = vmatprep.subr.mxu0 0.0
    %929 = vmatpush1.msra.mxu0 0.0
    %930 = vmatprep.subr.mxu0 0.0
    %931 = vmatpush1.msra.mxu0 0.0
    %932 = vmatprep.subr.mxu0 0.0
    %933 = vmatpush1.msra.mxu0 0.0
    %934 = vmatprep.subr.mxu0 0.0
    %935 = vmatpush1.msra.mxu0 0.0
    %936 = vmatprep.subr.mxu0 0.0
    %937 = vmatpush1.msra.mxu0 0.0
    %938 = vmatprep.subr.mxu0 0.0
    %939 = vmatpush1.msra.mxu0 0.0
    %940 = vmatprep.subr.mxu0 0.0
    %941 = vmatpush1.msra.mxu0 0.0
    %942 = vmatprep.subr.mxu0 0.0
    %943 = vmatpush1.msra.mxu0 0.0
    %944 = vmatprep.subr.mxu0 0.0
    %945 = vmatpush1.msra.mxu0 0.0
    %946 = vmatprep.subr.mxu0 0.0
    %947 = vmatpush1.msra.mxu0 0.0
    %948 = vmatprep.mubr.f32.mxu0 0.0
    %949 = vmatmul.mubr.f32.gmra.mrb[0].mxu0 %v882
    %v950 = vpop.f32.mrb[0].mxu0
    %v951 = vadd.f32 0.0, %v950
    %v952 = vpop.f32.mrb[0].mxu0
    %953 = vdwg.mxu0
    %954 = vmatprep.subr.mxu0 0.0
    %955 = vmatpush1.msra.mxu0 %v621
    %956 = vmatprep.subr.mxu0 0.0
    %957 = vmatpush1.msra.mxu0 %v622
    %958 = vmatprep.subr.mxu0 0.0
    %959 = vmatpush1.msra.mxu0 %v623
    %960 = vmatprep.subr.mxu0 0.0
    %961 = vmatpush1.msra.mxu0 %v624
    %962 = vmatprep.subr.mxu0 0.0
    %963 = vmatpush1.msra.mxu0 0.0
    %964 = vmatprep.subr.mxu0 0.0
    %965 = vmatpush1.msra.mxu0 0.0
    %966 = vmatprep.subr.mxu0 0.0
    %967 = vmatpush1.msra.mxu0 0.0
    %968 = vmatprep.subr.mxu0 0.0
    %969 = vmatpush1.msra.mxu0 0.0
    %970 = vmatprep.subr.mxu0 0.0
    %971 = vmatpush1.msra.mxu0 0.0
    %972 = vmatprep.subr.mxu0 0.0
    %973 = vmatpush1.msra.mxu0 0.0
    %974 = vmatprep.subr.mxu0 0.0
    %975 = vmatpush1.msra.mxu0 0.0
    %976 = vmatprep.subr.mxu0 0.0
    %977 = vmatpush1.msra.mxu0 0.0
    %978 = vmatprep.subr.mxu0 0.0
    %979 = vmatpush1.msra.mxu0 0.0
    %980 = vmatprep.subr.mxu0 0.0
    %981 = vmatpush1.msra.mxu0 0.0
    %982 = vmatprep.subr.mxu0 0.0
    %983 = vmatpush1.msra.mxu0 0.0
    %984 = vmatprep.subr.mxu0 0.0
    %985 = vmatpush1.msra.mxu0 0.0
    %986 = vmatprep.subr.mxu0 0.0
    %987 = vmatpush1.msra.mxu0 0.0
    %988 = vmatprep.subr.mxu0 0.0
    %989 = vmatpush1.msra.mxu0 0.0
    %990 = vmatprep.subr.mxu0 0.0
    %991 = vmatpush1.msra.mxu0 0.0
    %992 = vmatprep.subr.mxu0 0.0
    %993 = vmatpush1.msra.mxu0 0.0
    %994 = vmatprep.subr.mxu0 0.0
    %995 = vmatpush1.msra.mxu0 0.0
    %996 = vmatprep.subr.mxu0 0.0
    %997 = vmatpush1.msra.mxu0 0.0
    %998 = vmatprep.subr.mxu0 0.0
    %999 = vmatpush1.msra.mxu0 0.0
    %1000 = vmatprep.subr.mxu0 0.0
    %1001 = vmatpush1.msra.mxu0 0.0
    %1002 = vmatprep.subr.mxu0 0.0
    %1003 = vmatpush1.msra.mxu0 0.0
    %1004 = vmatprep.subr.mxu0 0.0
    %1005 = vmatpush1.msra.mxu0 0.0
    %1006 = vmatprep.subr.mxu0 0.0
    %1007 = vmatpush1.msra.mxu0 0.0
    %1008 = vmatprep.subr.mxu0 0.0
    %1009 = vmatpush1.msra.mxu0 0.0
    %1010 = vmatprep.subr.mxu0 0.0
    %1011 = vmatpush1.msra.mxu0 0.0
    %1012 = vmatprep.subr.mxu0 0.0
    %1013 = vmatpush1.msra.mxu0 0.0
    %1014 = vmatprep.subr.mxu0 0.0
    %1015 = vmatpush1.msra.mxu0 0.0
    %1016 = vmatprep.subr.mxu0 0.0
    %1017 = vmatpush1.msra.mxu0 0.0
    %1018 = vmatprep.mubr.f32.mxu0 0.0
    %1019 = vmatmul.mubr.f32.gmra.mrb[0].mxu0 %v882
    %v1020 = vpop.f32.mrb[0].mxu0
    %v1021 = vadd.f32 0.0, %v1020
    %v1022 = vpop.f32.mrb[0].mxu0
    %1023 = vdwg.mxu0
    %1024 = vmatprep.subr.mxu0 0.0
    %1025 = vmatpush1.msra.mxu0 %v626
    %1026 = vmatprep.subr.mxu0 0.0
    %1027 = vmatpush1.msra.mxu0 %v627
    %1028 = vmatprep.subr.mxu0 0.0
    %1029 = vmatpush1.msra.mxu0 %v628
    %1030 = vmatprep.subr.mxu0 0.0
    %1031 = vmatpush1.msra.mxu0 %v629
    %1032 = vmatprep.subr.mxu0 0.0
    %1033 = vmatpush1.msra.mxu0 0.0
    %1034 = vmatprep.subr.mxu0 0.0
    %1035 = vmatpush1.msra.mxu0 0.0
    %1036 = vmatprep.subr.mxu0 0.0
    %1037 = vmatpush1.msra.mxu0 0.0
    %1038 = vmatprep.subr.mxu0 0.0
    %1039 = vmatpush1.msra.mxu0 0.0
    %1040 = vmatprep.subr.mxu0 0.0
    %1041 = vmatpush1.msra.mxu0 0.0
    %1042 = vmatprep.subr.mxu0 0.0
    %1043 = vmatpush1.msra.mxu0 0.0
    %1044 = vmatprep.subr.mxu0 0.0
    %1045 = vmatpush1.msra.mxu0 0.0
    %1046 = vmatprep.subr.mxu0 0.0
    %1047 = vmatpush1.msra.mxu0 0.0
    %1048 = vmatprep.subr.mxu0 0.0
    %1049 = vmatpush1.msra.mxu0 0.0
    %1050 = vmatprep.subr.mxu0 0.0
    %1051 = vmatpush1.msra.mxu0 0.0
    %1052 = vmatprep.subr.mxu0 0.0
    %1053 = vmatpush1.msra.mxu0 0.0
    %1054 = vmatprep.subr.mxu0 0.0
    %1055 = vmatpush1.msra.mxu0 0.0
    %1056 = vmatprep.subr.mxu0 0.0
    %1057 = vmatpush1.msra.mxu0 0.0
    %1058 = vmatprep.subr.mxu0 0.0
    %1059 = vmatpush1.msra.mxu0 0.0
    %1060 = vmatprep.subr.mxu0 0.0
    %1061 = vmatpush1.msra.mxu0 0.0
    %1062 = vmatprep.subr.mxu0 0.0
    %1063 = vmatpush1.msra.mxu0 0.0
    %1064 = vmatprep.subr.mxu0 0.0
    %1065 = vmatpush1.msra.mxu0 0.0
    %1066 = vmatprep.subr.mxu0 0.0
    %1067 = vmatpush1.msra.mxu0 0.0
    %1068 = vmatprep.subr.mxu0 0.0
    %1069 = vmatpush1.msra.mxu0 0.0
    %1070 = vmatprep.subr.mxu0 0.0
    %1071 = vmatpush1.msra.mxu0 0.0
    %1072 = vmatprep.subr.mxu0 0.0
    %1073 = vmatpush1.msra.mxu0 0.0
    %1074 = vmatprep.subr.mxu0 0.0
    %1075 = vmatpush1.msra.mxu0 0.0
    %1076 = vmatprep.subr.mxu0 0.0
    %1077 = vmatpush1.msra.mxu0 0.0
    %1078 = vmatprep.subr.mxu0 0.0
    %1079 = vmatpush1.msra.mxu0 0.0
    %1080 = vmatprep.subr.mxu0 0.0
    %1081 = vmatpush1.msra.mxu0 0.0
    %1082 = vmatprep.subr.mxu0 0.0
    %1083 = vmatpush1.msra.mxu0 0.0
    %1084 = vmatprep.subr.mxu0 0.0
    %1085 = vmatpush1.msra.mxu0 0.0
    %1086 = vmatprep.subr.mxu0 0.0
    %1087 = vmatpush1.msra.mxu0 0.0
    %1088 = vmatprep.mubr.f32.mxu0 0.0
    %1089 = vmatmul.mubr.f32.gmra.mrb[0].mxu0 %v882
    %v1090 = vpop.f32.mrb[0].mxu0
    %v1091 = vadd.f32 %v779, %v1090
    %v1092 = vpop.f32.mrb[0].mxu0
    %1093 = vdwg.mxu0
    %s1094 = scalar_lea.vmem [#allocation2], 8
    %v1095 = vld [vmem:[%s1094] sm:$0xff]
    %v1096 = vadd.f32 %v1095, %v951
    %v1097 = vxor.u32 %v1096, 2147483648
    %v1098 = vmul.f32 %v1097, 1.442695
    %v1099 = vpow.pop %v1098
    %v1100 = vadd.f32 %v1099, 1.0
    %v1101 = vrcp.pop %v1100
    %v1102 = vmul.f32 1.0, %v1101
    %s1103 = sadd.s32 8, 64
    %s1104 = scalar_lea.vmem [#allocation2], %s1103
    %v1105 = vld [vmem:[%s1104] sm:$0xff]
    %v1106 = vadd.f32 %v1105, %v1021
    %v1107 = vxor.u32 %v1106, 2147483648
    %v1108 = vmul.f32 %v1107, 1.442695
    %v1109 = vpow.pop %v1108
    %v1110 = vadd.f32 %v1109, 1.0
    %v1111 = vrcp.pop %v1110
    %v1112 = vmul.f32 1.0, %v1111
    %s1113 = sadd.s32 8, 128
    %s1114 = scalar_lea.vmem [#allocation2], %s1113
    %v1115 = vld [vmem:[%s1114] sm:$0xff]
    %v1116 = vmul.f32 %v1102, %v1091
    %v1117 = vadd.f32 %v1115, %v1116
    %v1118 = vtanh.pop %v1117
    %v1119 = vsub.f32 1.0, %v1112
    %v1120 = vmul.f32 %v1119, %v1118
    %v1121 = vmul.f32 %v1112, %v878
    %v1122 = vadd.f32 %v1120, %v1121
    %v1123 = vmax.f32 %v1122, 0.0
    %s1124 = scalar_lea.vmem [#allocation3], 8
    %1125 = vst.msk [vmem:[%s1124] sm:$0xff] %vm224, %v1123
    %v1127 = vsel %vm224, %v1122, 0
    %1129 = vmatprep.subr.mxu0 0.0
    %1130 = vmatpush1.msra.mxu0 %v616
    %1131 = vmatprep.subr.mxu0 0.0
    %1132 = vmatpush1.msra.mxu0 %v617
    %1133 = vmatprep.subr.mxu0 0.0
    %1134 = vmatpush1.msra.mxu0 %v618
    %1135 = vmatprep.subr.mxu0 0.0
    %1136 = vmatpush1.msra.mxu0 %v619
    %1137 = vmatprep.subr.mxu0 0.0
    %1138 = vmatpush1.msra.mxu0 0.0
    %1139 = vmatprep.subr.mxu0 0.0
    %1140 = vmatpush1.msra.mxu0 0.0
    %1141 = vmatprep.subr.mxu0 0.0
    %1142 = vmatpush1.msra.mxu0 0.0
    %1143 = vmatprep.subr.mxu0 0.0
    %1144 = vmatpush1.msra.mxu0 0.0
    %1145 = vmatprep.subr.mxu0 0.0
    %1146 = vmatpush1.msra.mxu0 0.0
    %1147 = vmatprep.subr.mxu0 0.0
    %1148 = vmatpush1.msra.mxu0 0.0
    %1149 = vmatprep.subr.mxu0 0.0
    %1150 = vmatpush1.msra.mxu0 0.0
    %1151 = vmatprep.subr.mxu0 0.0
    %1152 = vmatpush1.msra.mxu0 0.0
    %1153 = vmatprep.subr.mxu0 0.0
    %1154 = vmatpush1.msra.mxu0 0.0
    %1155 = vmatprep.subr.mxu0 0.0
    %1156 = vmatpush1.msra.mxu0 0.0
    %1157 = vmatprep.subr.mxu0 0.0
    %1158 = vmatpush1.msra.mxu0 0.0
    %1159 = vmatprep.subr.mxu0 0.0
    %1160 = vmatpush1.msra.mxu0 0.0
    %1161 = vmatprep.subr.mxu0 0.0
    %1162 = vmatpush1.msra.mxu0 0.0
    %1163 = vmatprep.subr.mxu0 0.0
    %1164 = vmatpush1.msra.mxu0 0.0
    %1165 = vmatprep.subr.mxu0 0.0
    %1166 = vmatpush1.msra.mxu0 0.0
    %1167 = vmatprep.subr.mxu0 0.0
    %1168 = vmatpush1.msra.mxu0 0.0
    %1169 = vmatprep.subr.mxu0 0.0
    %1170 = vmatpush1.msra.mxu0 0.0
    %1171 = vmatprep.subr.mxu0 0.0
    %1172 = vmatpush1.msra.mxu0 0.0
    %1173 = vmatprep.subr.mxu0 0.0
    %1174 = vmatpush1.msra.mxu0 0.0
    %1175 = vmatprep.subr.mxu0 0.0
    %1176 = vmatpush1.msra.mxu0 0.0
    %1177 = vmatprep.subr.mxu0 0.0
    %1178 = vmatpush1.msra.mxu0 0.0
    %1179 = vmatprep.subr.mxu0 0.0
    %1180 = vmatpush1.msra.mxu0 0.0
    %1181 = vmatprep.subr.mxu0 0.0
    %1182 = vmatpush1.msra.mxu0 0.0
    %1183 = vmatprep.subr.mxu0 0.0
    %1184 = vmatpush1.msra.mxu0 0.0
    %1185 = vmatprep.subr.mxu0 0.0
    %1186 = vmatpush1.msra.mxu0 0.0
    %1187 = vmatprep.subr.mxu0 0.0
    %1188 = vmatpush1.msra.mxu0 0.0
    %1189 = vmatprep.subr.mxu0 0.0
    %1190 = vmatpush1.msra.mxu0 0.0
    %1191 = vmatprep.subr.mxu0 0.0
    %1192 = vmatpush1.msra.mxu0 0.0
    %1193 = vmatprep.mubr.f32.mxu0 0.0
    %1194 = vmatmul.mubr.f32.gmra.mrb[0].mxu0 %v1127
    %v1195 = vpop.f32.mrb[0].mxu0
    %v1196 = vadd.f32 0.0, %v1195
    %v1197 = vpop.f32.mrb[0].mxu0
    %1198 = vdwg.mxu0
    %1199 = vmatprep.subr.mxu0 0.0
    %1200 = vmatpush1.msra.mxu0 %v621
    %1201 = vmatprep.subr.mxu0 0.0
    %1202 = vmatpush1.msra.mxu0 %v622
    %1203 = vmatprep.subr.mxu0 0.0
    %1204 = vmatpush1.msra.mxu0 %v623
    %1205 = vmatprep.subr.mxu0 0.0
    %1206 = vmatpush1.msra.mxu0 %v624
    %1207 = vmatprep.subr.mxu0 0.0
    %1208 = vmatpush1.msra.mxu0 0.0
    %1209 = vmatprep.subr.mxu0 0.0
    %1210 = vmatpush1.msra.mxu0 0.0
    %1211 = vmatprep.subr.mxu0 0.0
    %1212 = vmatpush1.msra.mxu0 0.0
    %1213 = vmatprep.subr.mxu0 0.0
    %1214 = vmatpush1.msra.mxu0 0.0
    %1215 = vmatprep.subr.mxu0 0.0
    %1216 = vmatpush1.msra.mxu0 0.0
    %1217 = vmatprep.subr.mxu0 0.0
    %1218 = vmatpush1.msra.mxu0 0.0
    %1219 = vmatprep.subr.mxu0 0.0
    %1220 = vmatpush1.msra.mxu0 0.0
    %1221 = vmatprep.subr.mxu0 0.0
    %1222 = vmatpush1.msra.mxu0 0.0
    %1223 = vmatprep.subr.mxu0 0.0
    %1224 = vmatpush1.msra.mxu0 0.0
    %1225 = vmatprep.subr.mxu0 0.0
    %1226 = vmatpush1.msra.mxu0 0.0
    %1227 = vmatprep.subr.mxu0 0.0
    %1228 = vmatpush1.msra.mxu0 0.0
    %1229 = vmatprep.subr.mxu0 0.0
    %1230 = vmatpush1.msra.mxu0 0.0
    %1231 = vmatprep.subr.mxu0 0.0
    %1232 = vmatpush1.msra.mxu0 0.0
    %1233 = vmatprep.subr.mxu0 0.0
    %1234 = vmatpush1.msra.mxu0 0.0
    %1235 = vmatprep.subr.mxu0 0.0
    %1236 = vmatpush1.msra.mxu0 0.0
    %1237 = vmatprep.subr.mxu0 0.0
    %1238 = vmatpush1.msra.mxu0 0.0
    %1239 = vmatprep.subr.mxu0 0.0
    %1240 = vmatpush1.msra.mxu0 0.0
    %1241 = vmatprep.subr.mxu0 0.0
    %1242 = vmatpush1.msra.mxu0 0.0
    %1243 = vmatprep.subr.mxu0 0.0
    %1244 = vmatpush1.msra.mxu0 0.0
    %1245 = vmatprep.subr.mxu0 0.0
    %1246 = vmatpush1.msra.mxu0 0.0
    %1247 = vmatprep.subr.mxu0 0.0
    %1248 = vmatpush1.msra.mxu0 0.0
    %1249 = vmatprep.subr.mxu0 0.0
    %1250 = vmatpush1.msra.mxu0 0.0
    %1251 = vmatprep.subr.mxu0 0.0
    %1252 = vmatpush1.msra.mxu0 0.0
    %1253 = vmatprep.subr.mxu0 0.0
    %1254 = vmatpush1.msra.mxu0 0.0
    %1255 = vmatprep.subr.mxu0 0.0
    %1256 = vmatpush1.msra.mxu0 0.0
    %1257 = vmatprep.subr.mxu0 0.0
    %1258 = vmatpush1.msra.mxu0 0.0
    %1259 = vmatprep.subr.mxu0 0.0
    %1260 = vmatpush1.msra.mxu0 0.0
    %1261 = vmatprep.subr.mxu0 0.0
    %1262 = vmatpush1.msra.mxu0 0.0
    %1263 = vmatprep.mubr.f32.mxu0 0.0
    %1264 = vmatmul.mubr.f32.gmra.mrb[0].mxu0 %v1127
    %v1265 = vpop.f32.mrb[0].mxu0
    %v1266 = vadd.f32 0.0, %v1265
    %v1267 = vpop.f32.mrb[0].mxu0
    %1268 = vdwg.mxu0
    %1269 = vmatprep.subr.mxu0 0.0
    %1270 = vmatpush1.msra.mxu0 %v626
    %1271 = vmatprep.subr.mxu0 0.0
    %1272 = vmatpush1.msra.mxu0 %v627
    %1273 = vmatprep.subr.mxu0 0.0
    %1274 = vmatpush1.msra.mxu0 %v628
    %1275 = vmatprep.subr.mxu0 0.0
    %1276 = vmatpush1.msra.mxu0 %v629
    %1277 = vmatprep.subr.mxu0 0.0
    %1278 = vmatpush1.msra.mxu0 0.0
    %1279 = vmatprep.subr.mxu0 0.0
    %1280 = vmatpush1.msra.mxu0 0.0
    %1281 = vmatprep.subr.mxu0 0.0
    %1282 = vmatpush1.msra.mxu0 0.0
    %1283 = vmatprep.subr.mxu0 0.0
    %1284 = vmatpush1.msra.mxu0 0.0
    %1285 = vmatprep.subr.mxu0 0.0
    %1286 = vmatpush1.msra.mxu0 0.0
    %1287 = vmatprep.subr.mxu0 0.0
    %1288 = vmatpush1.msra.mxu0 0.0
    %1289 = vmatprep.subr.mxu0 0.0
    %1290 = vmatpush1.msra.mxu0 0.0
    %1291 = vmatprep.subr.mxu0 0.0
    %1292 = vmatpush1.msra.mxu0 0.0
    %1293 = vmatprep.subr.mxu0 0.0
    %1294 = vmatpush1.msra.mxu0 0.0
    %1295 = vmatprep.subr.mxu0 0.0
    %1296 = vmatpush1.msra.mxu0 0.0
    %1297 = vmatprep.subr.mxu0 0.0
    %1298 = vmatpush1.msra.mxu0 0.0
    %1299 = vmatprep.subr.mxu0 0.0
    %1300 = vmatpush1.msra.mxu0 0.0
    %1301 = vmatprep.subr.mxu0 0.0
    %1302 = vmatpush1.msra.mxu0 0.0
    %1303 = vmatprep.subr.mxu0 0.0
    %1304 = vmatpush1.msra.mxu0 0.0
    %1305 = vmatprep.subr.mxu0 0.0
    %1306 = vmatpush1.msra.mxu0 0.0
    %1307 = vmatprep.subr.mxu0 0.0
    %1308 = vmatpush1.msra.mxu0 0.0
    %1309 = vmatprep.subr.mxu0 0.0
    %1310 = vmatpush1.msra.mxu0 0.0
    %1311 = vmatprep.subr.mxu0 0.0
    %1312 = vmatpush1.msra.mxu0 0.0
    %1313 = vmatprep.subr.mxu0 0.0
    %1314 = vmatpush1.msra.mxu0 0.0
    %1315 = vmatprep.subr.mxu0 0.0
    %1316 = vmatpush1.msra.mxu0 0.0
    %1317 = vmatprep.subr.mxu0 0.0
    %1318 = vmatpush1.msra.mxu0 0.0
    %1319 = vmatprep.subr.mxu0 0.0
    %1320 = vmatpush1.msra.mxu0 0.0
    %1321 = vmatprep.subr.mxu0 0.0
    %1322 = vmatpush1.msra.mxu0 0.0
    %1323 = vmatprep.subr.mxu0 0.0
    %1324 = vmatpush1.msra.mxu0 0.0
    %1325 = vmatprep.subr.mxu0 0.0
    %1326 = vmatpush1.msra.mxu0 0.0
    %1327 = vmatprep.subr.mxu0 0.0
    %1328 = vmatpush1.msra.mxu0 0.0
    %1329 = vmatprep.subr.mxu0 0.0
    %1330 = vmatpush1.msra.mxu0 0.0
    %1331 = vmatprep.subr.mxu0 0.0
    %1332 = vmatpush1.msra.mxu0 0.0
    %1333 = vmatprep.mubr.f32.mxu0 0.0
    %1334 = vmatmul.mubr.f32.gmra.mrb[0].mxu0 %v1127
    %v1335 = vpop.f32.mrb[0].mxu0
    %v1336 = vadd.f32 %v779, %v1335
    %v1337 = vpop.f32.mrb[0].mxu0
    %1338 = vdwg.mxu0
    %s1339 = scalar_lea.vmem [#allocation2], 16
    %v1340 = vld [vmem:[%s1339] sm:$0xff]
    %v1341 = vadd.f32 %v1340, %v1196
    %v1342 = vxor.u32 %v1341, 2147483648
    %v1343 = vmul.f32 %v1342, 1.442695
    %v1344 = vpow.pop %v1343
    %v1345 = vadd.f32 %v1344, 1.0
    %v1346 = vrcp.pop %v1345
    %v1347 = vmul.f32 1.0, %v1346
    %s1348 = sadd.s32 16, 64
    %s1349 = scalar_lea.vmem [#allocation2], %s1348
    %v1350 = vld [vmem:[%s1349] sm:$0xff]
    %v1351 = vadd.f32 %v1350, %v1266
    %v1352 = vxor.u32 %v1351, 2147483648
    %v1353 = vmul.f32 %v1352, 1.442695
    %v1354 = vpow.pop %v1353
    %v1355 = vadd.f32 %v1354, 1.0
    %v1356 = vrcp.pop %v1355
    %v1357 = vmul.f32 1.0, %v1356
    %s1358 = sadd.s32 16, 128
    %s1359 = scalar_lea.vmem [#allocation2], %s1358
    %v1360 = vld [vmem:[%s1359] sm:$0xff]
    %v1361 = vmul.f32 %v1347, %v1336
    %v1362 = vadd.f32 %v1360, %v1361
    %v1363 = vtanh.pop %v1362
    %v1364 = vsub.f32 1.0, %v1357
    %v1365 = vmul.f32 %v1364, %v1363
    %v1366 = vmul.f32 %v1357, %v1122
    %v1367 = vadd.f32 %v1365, %v1366
    %v1368 = vmax.f32 %v1367, 0.0
    %s1369 = scalar_lea.vmem [#allocation3], 16
    %1370 = vst.msk [vmem:[%s1369] sm:$0xff] %vm224, %v1368
    %v1372 = vsel %vm224, %v1367, 0
    %1374 = vmatprep.subr.mxu0 0.0
    %1375 = vmatpush1.msra.mxu0 %v616
    %1376 = vmatprep.subr.mxu0 0.0
    %1377 = vmatpush1.msra.mxu0 %v617
    %1378 = vmatprep.subr.mxu0 0.0
    %1379 = vmatpush1.msra.mxu0 %v618
    %1380 = vmatprep.subr.mxu0 0.0
    %1381 = vmatpush1.msra.mxu0 %v619
    %1382 = vmatprep.subr.mxu0 0.0
    %1383 = vmatpush1.msra.mxu0 0.0
    %1384 = vmatprep.subr.mxu0 0.0
    %1385 = vmatpush1.msra.mxu0 0.0
    %1386 = vmatprep.subr.mxu0 0.0
    %1387 = vmatpush1.msra.mxu0 0.0
    %1388 = vmatprep.subr.mxu0 0.0
    %1389 = vmatpush1.msra.mxu0 0.0
    %1390 = vmatprep.subr.mxu0 0.0
    %1391 = vmatpush1.msra.mxu0 0.0
    %1392 = vmatprep.subr.mxu0 0.0
    %1393 = vmatpush1.msra.mxu0 0.0
    %1394 = vmatprep.subr.mxu0 0.0
    %1395 = vmatpush1.msra.mxu0 0.0
    %1396 = vmatprep.subr.mxu0 0.0
    %1397 = vmatpush1.msra.mxu0 0.0
    %1398 = vmatprep.subr.mxu0 0.0
    %1399 = vmatpush1.msra.mxu0 0.0
    %1400 = vmatprep.subr.mxu0 0.0
    %1401 = vmatpush1.msra.mxu0 0.0
    %1402 = vmatprep.subr.mxu0 0.0
    %1403 = vmatpush1.msra.mxu0 0.0
    %1404 = vmatprep.subr.mxu0 0.0
    %1405 = vmatpush1.msra.mxu0 0.0
    %1406 = vmatprep.subr.mxu0 0.0
    %1407 = vmatpush1.msra.mxu0 0.0
    %1408 = vmatprep.subr.mxu0 0.0
    %1409 = vmatpush1.msra.mxu0 0.0
    %1410 = vmatprep.subr.mxu0 0.0
    %1411 = vmatpush1.msra.mxu0 0.0
    %1412 = vmatprep.subr.mxu0 0.0
    %1413 = vmatpush1.msra.mxu0 0.0
    %1414 = vmatprep.subr.mxu0 0.0
    %1415 = vmatpush1.msra.mxu0 0.0
    %1416 = vmatprep.subr.mxu0 0.0
    %1417 = vmatpush1.msra.mxu0 0.0
    %1418 = vmatprep.subr.mxu0 0.0
    %1419 = vmatpush1.msra.mxu0 0.0
    %1420 = vmatprep.subr.mxu0 0.0
    %1421 = vmatpush1.msra.mxu0 0.0
    %1422 = vmatprep.subr.mxu0 0.0
    %1423 = vmatpush1.msra.mxu0 0.0
    %1424 = vmatprep.subr.mxu0 0.0
    %1425 = vmatpush1.msra.mxu0 0.0
    %1426 = vmatprep.subr.mxu0 0.0
    %1427 = vmatpush1.msra.mxu0 0.0
    %1428 = vmatprep.subr.mxu0 0.0
    %1429 = vmatpush1.msra.mxu0 0.0
    %1430 = vmatprep.subr.mxu0 0.0
    %1431 = vmatpush1.msra.mxu0 0.0
    %1432 = vmatprep.subr.mxu0 0.0
    %1433 = vmatpush1.msra.mxu0 0.0
    %1434 = vmatprep.subr.mxu0 0.0
    %1435 = vmatpush1.msra.mxu0 0.0
    %1436 = vmatprep.subr.mxu0 0.0
    %1437 = vmatpush1.msra.mxu0 0.0
    %1438 = vmatprep.mubr.f32.mxu0 0.0
    %1439 = vmatmul.mubr.f32.gmra.mrb[0].mxu0 %v1372
    %v1440 = vpop.f32.mrb[0].mxu0
    %v1441 = vadd.f32 0.0, %v1440
    %v1442 = vpop.f32.mrb[0].mxu0
    %1443 = vdwg.mxu0
    %1444 = vmatprep.subr.mxu0 0.0
    %1445 = vmatpush1.msra.mxu0 %v621
    %1446 = vmatprep.subr.mxu0 0.0
    %1447 = vmatpush1.msra.mxu0 %v622
    %1448 = vmatprep.subr.mxu0 0.0
    %1449 = vmatpush1.msra.mxu0 %v623
    %1450 = vmatprep.subr.mxu0 0.0
    %1451 = vmatpush1.msra.mxu0 %v624
    %1452 = vmatprep.subr.mxu0 0.0
    %1453 = vmatpush1.msra.mxu0 0.0
    %1454 = vmatprep.subr.mxu0 0.0
    %1455 = vmatpush1.msra.mxu0 0.0
    %1456 = vmatprep.subr.mxu0 0.0
    %1457 = vmatpush1.msra.mxu0 0.0
    %1458 = vmatprep.subr.mxu0 0.0
    %1459 = vmatpush1.msra.mxu0 0.0
    %1460 = vmatprep.subr.mxu0 0.0
    %1461 = vmatpush1.msra.mxu0 0.0
    %1462 = vmatprep.subr.mxu0 0.0
    %1463 = vmatpush1.msra.mxu0 0.0
    %1464 = vmatprep.subr.mxu0 0.0
    %1465 = vmatpush1.msra.mxu0 0.0
    %1466 = vmatprep.subr.mxu0 0.0
    %1467 = vmatpush1.msra.mxu0 0.0
    %1468 = vmatprep.subr.mxu0 0.0
    %1469 = vmatpush1.msra.mxu0 0.0
    %1470 = vmatprep.subr.mxu0 0.0
    %1471 = vmatpush1.msra.mxu0 0.0
    %1472 = vmatprep.subr.mxu0 0.0
    %1473 = vmatpush1.msra.mxu0 0.0
    %1474 = vmatprep.subr.mxu0 0.0
    %1475 = vmatpush1.msra.mxu0 0.0
    %1476 = vmatprep.subr.mxu0 0.0
    %1477 = vmatpush1.msra.mxu0 0.0
    %1478 = vmatprep.subr.mxu0 0.0
    %1479 = vmatpush1.msra.mxu0 0.0
    %1480 = vmatprep.subr.mxu0 0.0
    %1481 = vmatpush1.msra.mxu0 0.0
    %1482 = vmatprep.subr.mxu0 0.0
    %1483 = vmatpush1.msra.mxu0 0.0
    %1484 = vmatprep.subr.mxu0 0.0
    %1485 = vmatpush1.msra.mxu0 0.0
    %1486 = vmatprep.subr.mxu0 0.0
    %1487 = vmatpush1.msra.mxu0 0.0
    %1488 = vmatprep.subr.mxu0 0.0
    %1489 = vmatpush1.msra.mxu0 0.0
    %1490 = vmatprep.subr.mxu0 0.0
    %1491 = vmatpush1.msra.mxu0 0.0
    %1492 = vmatprep.subr.mxu0 0.0
    %1493 = vmatpush1.msra.mxu0 0.0
    %1494 = vmatprep.subr.mxu0 0.0
    %1495 = vmatpush1.msra.mxu0 0.0
    %1496 = vmatprep.subr.mxu0 0.0
    %1497 = vmatpush1.msra.mxu0 0.0
    %1498 = vmatprep.subr.mxu0 0.0
    %1499 = vmatpush1.msra.mxu0 0.0
    %1500 = vmatprep.subr.mxu0 0.0
    %1501 = vmatpush1.msra.mxu0 0.0
    %1502 = vmatprep.subr.mxu0 0.0
    %1503 = vmatpush1.msra.mxu0 0.0
    %1504 = vmatprep.subr.mxu0 0.0
    %1505 = vmatpush1.msra.mxu0 0.0
    %1506 = vmatprep.subr.mxu0 0.0
    %1507 = vmatpush1.msra.mxu0 0.0
    %1508 = vmatprep.mubr.f32.mxu0 0.0
    %1509 = vmatmul.mubr.f32.gmra.mrb[0].mxu0 %v1372
    %v1510 = vpop.f32.mrb[0].mxu0
    %v1511 = vadd.f32 0.0, %v1510
    %v1512 = vpop.f32.mrb[0].mxu0
    %1513 = vdwg.mxu0
    %1514 = vmatprep.subr.mxu0 0.0
    %1515 = vmatpush1.msra.mxu0 %v626
    %1516 = vmatprep.subr.mxu0 0.0
    %1517 = vmatpush1.msra.mxu0 %v627
    %1518 = vmatprep.subr.mxu0 0.0
    %1519 = vmatpush1.msra.mxu0 %v628
    %1520 = vmatprep.subr.mxu0 0.0
    %1521 = vmatpush1.msra.mxu0 %v629
    %1522 = vmatprep.subr.mxu0 0.0
    %1523 = vmatpush1.msra.mxu0 0.0
    %1524 = vmatprep.subr.mxu0 0.0
    %1525 = vmatpush1.msra.mxu0 0.0
    %1526 = vmatprep.subr.mxu0 0.0
    %1527 = vmatpush1.msra.mxu0 0.0
    %1528 = vmatprep.subr.mxu0 0.0
    %1529 = vmatpush1.msra.mxu0 0.0
    %1530 = vmatprep.subr.mxu0 0.0
    %1531 = vmatpush1.msra.mxu0 0.0
    %1532 = vmatprep.subr.mxu0 0.0
    %1533 = vmatpush1.msra.mxu0 0.0
    %1534 = vmatprep.subr.mxu0 0.0
    %1535 = vmatpush1.msra.mxu0 0.0
    %1536 = vmatprep.subr.mxu0 0.0
    %1537 = vmatpush1.msra.mxu0 0.0
    %1538 = vmatprep.subr.mxu0 0.0
    %1539 = vmatpush1.msra.mxu0 0.0
    %1540 = vmatprep.subr.mxu0 0.0
    %1541 = vmatpush1.msra.mxu0 0.0
    %1542 = vmatprep.subr.mxu0 0.0
    %1543 = vmatpush1.msra.mxu0 0.0
    %1544 = vmatprep.subr.mxu0 0.0
    %1545 = vmatpush1.msra.mxu0 0.0
    %1546 = vmatprep.subr.mxu0 0.0
    %1547 = vmatpush1.msra.mxu0 0.0
    %1548 = vmatprep.subr.mxu0 0.0
    %1549 = vmatpush1.msra.mxu0 0.0
    %1550 = vmatprep.subr.mxu0 0.0
    %1551 = vmatpush1.msra.mxu0 0.0
    %1552 = vmatprep.subr.mxu0 0.0
    %1553 = vmatpush1.msra.mxu0 0.0
    %1554 = vmatprep.subr.mxu0 0.0
    %1555 = vmatpush1.msra.mxu0 0.0
    %1556 = vmatprep.subr.mxu0 0.0
    %1557 = vmatpush1.msra.mxu0 0.0
    %1558 = vmatprep.subr.mxu0 0.0
    %1559 = vmatpush1.msra.mxu0 0.0
    %1560 = vmatprep.subr.mxu0 0.0
    %1561 = vmatpush1.msra.mxu0 0.0
    %1562 = vmatprep.subr.mxu0 0.0
    %1563 = vmatpush1.msra.mxu0 0.0
    %1564 = vmatprep.subr.mxu0 0.0
    %1565 = vmatpush1.msra.mxu0 0.0
    %1566 = vmatprep.subr.mxu0 0.0
    %1567 = vmatpush1.msra.mxu0 0.0
    %1568 = vmatprep.subr.mxu0 0.0
    %1569 = vmatpush1.msra.mxu0 0.0
    %1570 = vmatprep.subr.mxu0 0.0
    %1571 = vmatpush1.msra.mxu0 0.0
    %1572 = vmatprep.subr.mxu0 0.0
    %1573 = vmatpush1.msra.mxu0 0.0
    %1574 = vmatprep.subr.mxu0 0.0
    %1575 = vmatpush1.msra.mxu0 0.0
    %1576 = vmatprep.subr.mxu0 0.0
    %1577 = vmatpush1.msra.mxu0 0.0
    %1578 = vmatprep.mubr.f32.mxu0 0.0
    %1579 = vmatmul.mubr.f32.gmra.mrb[0].mxu0 %v1372
    %v1580 = vpop.f32.mrb[0].mxu0
    %v1581 = vadd.f32 %v779, %v1580
    %v1582 = vpop.f32.mrb[0].mxu0
    %1583 = vdwg.mxu0
    %s1584 = scalar_lea.vmem [#allocation2], 24
    %v1585 = vld [vmem:[%s1584] sm:$0xff]
    %v1586 = vadd.f32 %v1585, %v1441
    %v1587 = vxor.u32 %v1586, 2147483648
    %v1588 = vmul.f32 %v1587, 1.442695
    %v1589 = vpow.pop %v1588
    %v1590 = vadd.f32 %v1589, 1.0
    %v1591 = vrcp.pop %v1590
    %v1592 = vmul.f32 1.0, %v1591
    %s1593 = sadd.s32 24, 64
    %s1594 = scalar_lea.vmem [#allocation2], %s1593
    %v1595 = vld [vmem:[%s1594] sm:$0xff]
    %v1596 = vadd.f32 %v1595, %v1511
    %v1597 = vxor.u32 %v1596, 2147483648
    %v1598 = vmul.f32 %v1597, 1.442695
    %v1599 = vpow.pop %v1598
    %v1600 = vadd.f32 %v1599, 1.0
    %v1601 = vrcp.pop %v1600
    %v1602 = vmul.f32 1.0, %v1601
    %s1603 = sadd.s32 24, 128
    %s1604 = scalar_lea.vmem [#allocation2], %s1603
    %v1605 = vld [vmem:[%s1604] sm:$0xff]
    %v1606 = vmul.f32 %v1592, %v1581
    %v1607 = vadd.f32 %v1605, %v1606
    %v1608 = vtanh.pop %v1607
    %v1609 = vsub.f32 1.0, %v1602
    %v1610 = vmul.f32 %v1609, %v1608
    %v1611 = vmul.f32 %v1602, %v1367
    %v1612 = vadd.f32 %v1610, %v1611
    %v1613 = vmax.f32 %v1612, 0.0
    %s1614 = scalar_lea.vmem [#allocation3], 24
    %1615 = vst.msk [vmem:[%s1614] sm:$0xff] %vm224, %v1613
    %v1617 = vsel %vm224, %v1612, 0
    %1619 = vmatprep.subr.mxu0 0.0
    %1620 = vmatpush1.msra.mxu0 %v616
    %1621 = vmatprep.subr.mxu0 0.0
    %1622 = vmatpush1.msra.mxu0 %v617
    %1623 = vmatprep.subr.mxu0 0.0
    %1624 = vmatpush1.msra.mxu0 %v618
    %1625 = vmatprep.subr.mxu0 0.0
    %1626 = vmatpush1.msra.mxu0 %v619
    %1627 = vmatprep.subr.mxu0 0.0
    %1628 = vmatpush1.msra.mxu0 0.0
    %1629 = vmatprep.subr.mxu0 0.0
    %1630 = vmatpush1.msra.mxu0 0.0
    %1631 = vmatprep.subr.mxu0 0.0
    %1632 = vmatpush1.msra.mxu0 0.0
    %1633 = vmatprep.subr.mxu0 0.0
    %1634 = vmatpush1.msra.mxu0 0.0
    %1635 = vmatprep.subr.mxu0 0.0
    %1636 = vmatpush1.msra.mxu0 0.0
    %1637 = vmatprep.subr.mxu0 0.0
    %1638 = vmatpush1.msra.mxu0 0.0
    %1639 = vmatprep.subr.mxu0 0.0
    %1640 = vmatpush1.msra.mxu0 0.0
    %1641 = vmatprep.subr.mxu0 0.0
    %1642 = vmatpush1.msra.mxu0 0.0
    %1643 = vmatprep.subr.mxu0 0.0
    %1644 = vmatpush1.msra.mxu0 0.0
    %1645 = vmatprep.subr.mxu0 0.0
    %1646 = vmatpush1.msra.mxu0 0.0
    %1647 = vmatprep.subr.mxu0 0.0
    %1648 = vmatpush1.msra.mxu0 0.0
    %1649 = vmatprep.subr.mxu0 0.0
    %1650 = vmatpush1.msra.mxu0 0.0
    %1651 = vmatprep.subr.mxu0 0.0
    %1652 = vmatpush1.msra.mxu0 0.0
    %1653 = vmatprep.subr.mxu0 0.0
    %1654 = vmatpush1.msra.mxu0 0.0
    %1655 = vmatprep.subr.mxu0 0.0
    %1656 = vmatpush1.msra.mxu0 0.0
    %1657 = vmatprep.subr.mxu0 0.0
    %1658 = vmatpush1.msra.mxu0 0.0
    %1659 = vmatprep.subr.mxu0 0.0
    %1660 = vmatpush1.msra.mxu0 0.0
    %1661 = vmatprep.subr.mxu0 0.0
    %1662 = vmatpush1.msra.mxu0 0.0
    %1663 = vmatprep.subr.mxu0 0.0
    %1664 = vmatpush1.msra.mxu0 0.0
    %1665 = vmatprep.subr.mxu0 0.0
    %1666 = vmatpush1.msra.mxu0 0.0
    %1667 = vmatprep.subr.mxu0 0.0
    %1668 = vmatpush1.msra.mxu0 0.0
    %1669 = vmatprep.subr.mxu0 0.0
    %1670 = vmatpush1.msra.mxu0 0.0
    %1671 = vmatprep.subr.mxu0 0.0
    %1672 = vmatpush1.msra.mxu0 0.0
    %1673 = vmatprep.subr.mxu0 0.0
    %1674 = vmatpush1.msra.mxu0 0.0
    %1675 = vmatprep.subr.mxu0 0.0
    %1676 = vmatpush1.msra.mxu0 0.0
    %1677 = vmatprep.subr.mxu0 0.0
    %1678 = vmatpush1.msra.mxu0 0.0
    %1679 = vmatprep.subr.mxu0 0.0
    %1680 = vmatpush1.msra.mxu0 0.0
    %1681 = vmatprep.subr.mxu0 0.0
    %1682 = vmatpush1.msra.mxu0 0.0
    %1683 = vmatprep.mubr.f32.mxu0 0.0
    %1684 = vmatmul.mubr.f32.gmra.mrb[0].mxu0 %v1617
    %v1685 = vpop.f32.mrb[0].mxu0
    %v1686 = vadd.f32 0.0, %v1685
    %v1687 = vpop.f32.mrb[0].mxu0
    %1688 = vdwg.mxu0
    %1689 = vmatprep.subr.mxu0 0.0
    %1690 = vmatpush1.msra.mxu0 %v621
    %1691 = vmatprep.subr.mxu0 0.0
    %1692 = vmatpush1.msra.mxu0 %v622
    %1693 = vmatprep.subr.mxu0 0.0
    %1694 = vmatpush1.msra.mxu0 %v623
    %1695 = vmatprep.subr.mxu0 0.0
    %1696 = vmatpush1.msra.mxu0 %v624
    %1697 = vmatprep.subr.mxu0 0.0
    %1698 = vmatpush1.msra.mxu0 0.0
    %1699 = vmatprep.subr.mxu0 0.0
    %1700 = vmatpush1.msra.mxu0 0.0
    %1701 = vmatprep.subr.mxu0 0.0
    %1702 = vmatpush1.msra.mxu0 0.0
    %1703 = vmatprep.subr.mxu0 0.0
    %1704 = vmatpush1.msra.mxu0 0.0
    %1705 = vmatprep.subr.mxu0 0.0
    %1706 = vmatpush1.msra.mxu0 0.0
    %1707 = vmatprep.subr.mxu0 0.0
    %1708 = vmatpush1.msra.mxu0 0.0
    %1709 = vmatprep.subr.mxu0 0.0
    %1710 = vmatpush1.msra.mxu0 0.0
    %1711 = vmatprep.subr.mxu0 0.0
    %1712 = vmatpush1.msra.mxu0 0.0
    %1713 = vmatprep.subr.mxu0 0.0
    %1714 = vmatpush1.msra.mxu0 0.0
    %1715 = vmatprep.subr.mxu0 0.0
    %1716 = vmatpush1.msra.mxu0 0.0
    %1717 = vmatprep.subr.mxu0 0.0
    %1718 = vmatpush1.msra.mxu0 0.0
    %1719 = vmatprep.subr.mxu0 0.0
    %1720 = vmatpush1.msra.mxu0 0.0
    %1721 = vmatprep.subr.mxu0 0.0
    %1722 = vmatpush1.msra.mxu0 0.0
    %1723 = vmatprep.subr.mxu0 0.0
    %1724 = vmatpush1.msra.mxu0 0.0
    %1725 = vmatprep.subr.mxu0 0.0
    %1726 = vmatpush1.msra.mxu0 0.0
    %1727 = vmatprep.subr.mxu0 0.0
    %1728 = vmatpush1.msra.mxu0 0.0
    %1729 = vmatprep.subr.mxu0 0.0
    %1730 = vmatpush1.msra.mxu0 0.0
    %1731 = vmatprep.subr.mxu0 0.0
    %1732 = vmatpush1.msra.mxu0 0.0
    %1733 = vmatprep.subr.mxu0 0.0
    %1734 = vmatpush1.msra.mxu0 0.0
    %1735 = vmatprep.subr.mxu0 0.0
    %1736 = vmatpush1.msra.mxu0 0.0
    %1737 = vmatprep.subr.mxu0 0.0
    %1738 = vmatpush1.msra.mxu0 0.0
    %1739 = vmatprep.subr.mxu0 0.0
    %1740 = vmatpush1.msra.mxu0 0.0
    %1741 = vmatprep.subr.mxu0 0.0
    %1742 = vmatpush1.msra.mxu0 0.0
    %1743 = vmatprep.subr.mxu0 0.0
    %1744 = vmatpush1.msra.mxu0 0.0
    %1745 = vmatprep.subr.mxu0 0.0
    %1746 = vmatpush1.msra.mxu0 0.0
    %1747 = vmatprep.subr.mxu0 0.0
    %1748 = vmatpush1.msra.mxu0 0.0
    %1749 = vmatprep.subr.mxu0 0.0
    %1750 = vmatpush1.msra.mxu0 0.0
    %1751 = vmatprep.subr.mxu0 0.0
    %1752 = vmatpush1.msra.mxu0 0.0
    %1753 = vmatprep.mubr.f32.mxu0 0.0
    %1754 = vmatmul.mubr.f32.gmra.mrb[0].mxu0 %v1617
    %v1755 = vpop.f32.mrb[0].mxu0
    %v1756 = vadd.f32 0.0, %v1755
    %v1757 = vpop.f32.mrb[0].mxu0
    %1758 = vdwg.mxu0
    %1759 = vmatprep.subr.mxu0 0.0
    %1760 = vmatpush1.msra.mxu0 %v626
    %1761 = vmatprep.subr.mxu0 0.0
    %1762 = vmatpush1.msra.mxu0 %v627
    %1763 = vmatprep.subr.mxu0 0.0
    %1764 = vmatpush1.msra.mxu0 %v628
    %1765 = vmatprep.subr.mxu0 0.0
    %1766 = vmatpush1.msra.mxu0 %v629
    %1767 = vmatprep.subr.mxu0 0.0
    %1768 = vmatpush1.msra.mxu0 0.0
    %1769 = vmatprep.subr.mxu0 0.0
    %1770 = vmatpush1.msra.mxu0 0.0
    %1771 = vmatprep.subr.mxu0 0.0
    %1772 = vmatpush1.msra.mxu0 0.0
    %1773 = vmatprep.subr.mxu0 0.0
    %1774 = vmatpush1.msra.mxu0 0.0
    %1775 = vmatprep.subr.mxu0 0.0
    %1776 = vmatpush1.msra.mxu0 0.0
    %1777 = vmatprep.subr.mxu0 0.0
    %1778 = vmatpush1.msra.mxu0 0.0
    %1779 = vmatprep.subr.mxu0 0.0
    %1780 = vmatpush1.msra.mxu0 0.0
    %1781 = vmatprep.subr.mxu0 0.0
    %1782 = vmatpush1.msra.mxu0 0.0
    %1783 = vmatprep.subr.mxu0 0.0
    %1784 = vmatpush1.msra.mxu0 0.0
    %1785 = vmatprep.subr.mxu0 0.0
    %1786 = vmatpush1.msra.mxu0 0.0
    %1787 = vmatprep.subr.mxu0 0.0
    %1788 = vmatpush1.msra.mxu0 0.0
    %1789 = vmatprep.subr.mxu0 0.0
    %1790 = vmatpush1.msra.mxu0 0.0
    %1791 = vmatprep.subr.mxu0 0.0
    %1792 = vmatpush1.msra.mxu0 0.0
    %1793 = vmatprep.subr.mxu0 0.0
    %1794 = vmatpush1.msra.mxu0 0.0
    %1795 = vmatprep.subr.mxu0 0.0
    %1796 = vmatpush1.msra.mxu0 0.0
    %1797 = vmatprep.subr.mxu0 0.0
    %1798 = vmatpush1.msra.mxu0 0.0
    %1799 = vmatprep.subr.mxu0 0.0
    %1800 = vmatpush1.msra.mxu0 0.0
    %1801 = vmatprep.subr.mxu0 0.0
    %1802 = vmatpush1.msra.mxu0 0.0
    %1803 = vmatprep.subr.mxu0 0.0
    %1804 = vmatpush1.msra.mxu0 0.0
    %1805 = vmatprep.subr.mxu0 0.0
    %1806 = vmatpush1.msra.mxu0 0.0
    %1807 = vmatprep.subr.mxu0 0.0
    %1808 = vmatpush1.msra.mxu0 0.0
    %1809 = vmatprep.subr.mxu0 0.0
    %1810 = vmatpush1.msra.mxu0 0.0
    %1811 = vmatprep.subr.mxu0 0.0
    %1812 = vmatpush1.msra.mxu0 0.0
    %1813 = vmatprep.subr.mxu0 0.0
    %1814 = vmatpush1.msra.mxu0 0.0
    %1815 = vmatprep.subr.mxu0 0.0
    %1816 = vmatpush1.msra.mxu0 0.0
    %1817 = vmatprep.subr.mxu0 0.0
    %1818 = vmatpush1.msra.mxu0 0.0
    %1819 = vmatprep.subr.mxu0 0.0
    %1820 = vmatpush1.msra.mxu0 0.0
    %1821 = vmatprep.subr.mxu0 0.0
    %1822 = vmatpush1.msra.mxu0 0.0
    %1823 = vmatprep.mubr.f32.mxu0 0.0
    %1824 = vmatmul.mubr.f32.gmra.mrb[0].mxu0 %v1617
    %v1825 = vpop.f32.mrb[0].mxu0
    %v1826 = vadd.f32 %v779, %v1825
    %v1827 = vpop.f32.mrb[0].mxu0
    %1828 = vdwg.mxu0
    %s1829 = scalar_lea.vmem [#allocation2], 32
    %v1830 = vld [vmem:[%s1829] sm:$0xff]
    %v1831 = vadd.f32 %v1830, %v1686
    %v1832 = vxor.u32 %v1831, 2147483648
    %v1833 = vmul.f32 %v1832, 1.442695
    %v1834 = vpow.pop %v1833
    %v1835 = vadd.f32 %v1834, 1.0
    %v1836 = vrcp.pop %v1835
    %v1837 = vmul.f32 1.0, %v1836
    %s1838 = sadd.s32 32, 64
    %s1839 = scalar_lea.vmem [#allocation2], %s1838
    %v1840 = vld [vmem:[%s1839] sm:$0xff]
    %v1841 = vadd.f32 %v1840, %v1756
    %v1842 = vxor.u32 %v1841, 2147483648
    %v1843 = vmul.f32 %v1842, 1.442695
    %v1844 = vpow.pop %v1843
    %v1845 = vadd.f32 %v1844, 1.0
    %v1846 = vrcp.pop %v1845
    %v1847 = vmul.f32 1.0, %v1846
    %s1848 = sadd.s32 32, 128
    %s1849 = scalar_lea.vmem [#allocation2], %s1848
    %v1850 = vld [vmem:[%s1849] sm:$0xff]
    %v1851 = vmul.f32 %v1837, %v1826
    %v1852 = vadd.f32 %v1850, %v1851
    %v1853 = vtanh.pop %v1852
    %v1854 = vsub.f32 1.0, %v1847
    %v1855 = vmul.f32 %v1854, %v1853
    %v1856 = vmul.f32 %v1847, %v1612
    %v1857 = vadd.f32 %v1855, %v1856
    %v1858 = vmax.f32 %v1857, 0.0
    %s1859 = scalar_lea.vmem [#allocation3], 32
    %1860 = vst.msk [vmem:[%s1859] sm:$0xff] %vm224, %v1858
    %v1862 = vsel %vm224, %v1857, 0
    %1864 = vmatprep.subr.mxu0 0.0
    %1865 = vmatpush1.msra.mxu0 %v616
    %1866 = vmatprep.subr.mxu0 0.0
    %1867 = vmatpush1.msra.mxu0 %v617
    %1868 = vmatprep.subr.mxu0 0.0
    %1869 = vmatpush1.msra.mxu0 %v618
    %1870 = vmatprep.subr.mxu0 0.0
    %1871 = vmatpush1.msra.mxu0 %v619
    %1872 = vmatprep.subr.mxu0 0.0
    %1873 = vmatpush1.msra.mxu0 0.0
    %1874 = vmatprep.subr.mxu0 0.0
    %1875 = vmatpush1.msra.mxu0 0.0
    %1876 = vmatprep.subr.mxu0 0.0
    %1877 = vmatpush1.msra.mxu0 0.0
    %1878 = vmatprep.subr.mxu0 0.0
    %1879 = vmatpush1.msra.mxu0 0.0
    %1880 = vmatprep.subr.mxu0 0.0
    %1881 = vmatpush1.msra.mxu0 0.0
    %1882 = vmatprep.subr.mxu0 0.0
    %1883 = vmatpush1.msra.mxu0 0.0
    %1884 = vmatprep.subr.mxu0 0.0
    %1885 = vmatpush1.msra.mxu0 0.0
    %1886 = vmatprep.subr.mxu0 0.0
    %1887 = vmatpush1.msra.mxu0 0.0
    %1888 = vmatprep.subr.mxu0 0.0
    %1889 = vmatpush1.msra.mxu0 0.0
    %1890 = vmatprep.subr.mxu0 0.0
    %1891 = vmatpush1.msra.mxu0 0.0
    %1892 = vmatprep.subr.mxu0 0.0
    %1893 = vmatpush1.msra.mxu0 0.0
    %1894 = vmatprep.subr.mxu0 0.0
    %1895 = vmatpush1.msra.mxu0 0.0
    %1896 = vmatprep.subr.mxu0 0.0
    %1897 = vmatpush1.msra.mxu0 0.0
    %1898 = vmatprep.subr.mxu0 0.0
    %1899 = vmatpush1.msra.mxu0 0.0
    %1900 = vmatprep.subr.mxu0 0.0
    %1901 = vmatpush1.msra.mxu0 0.0
    %1902 = vmatprep.subr.mxu0 0.0
    %1903 = vmatpush1.msra.mxu0 0.0
    %1904 = vmatprep.subr.mxu0 0.0
    %1905 = vmatpush1.msra.mxu0 0.0
    %1906 = vmatprep.subr.mxu0 0.0
    %1907 = vmatpush1.msra.mxu0 0.0
    %1908 = vmatprep.subr.mxu0 0.0
    %1909 = vmatpush1.msra.mxu0 0.0
    %1910 = vmatprep.subr.mxu0 0.0
    %1911 = vmatpush1.msra.mxu0 0.0
    %1912 = vmatprep.subr.mxu0 0.0
    %1913 = vmatpush1.msra.mxu0 0.0
    %1914 = vmatprep.subr.mxu0 0.0
    %1915 = vmatpush1.msra.mxu0 0.0
    %1916 = vmatprep.subr.mxu0 0.0
    %1917 = vmatpush1.msra.mxu0 0.0
    %1918 = vmatprep.subr.mxu0 0.0
    %1919 = vmatpush1.msra.mxu0 0.0
    %1920 = vmatprep.subr.mxu0 0.0
    %1921 = vmatpush1.msra.mxu0 0.0
    %1922 = vmatprep.subr.mxu0 0.0
    %1923 = vmatpush1.msra.mxu0 0.0
    %1924 = vmatprep.subr.mxu0 0.0
    %1925 = vmatpush1.msra.mxu0 0.0
    %1926 = vmatprep.subr.mxu0 0.0
    %1927 = vmatpush1.msra.mxu0 0.0
    %1928 = vmatprep.mubr.f32.mxu0 0.0
    %1929 = vmatmul.mubr.f32.gmra.mrb[0].mxu0 %v1862
    %v1930 = vpop.f32.mrb[0].mxu0
    %v1931 = vadd.f32 0.0, %v1930
    %v1932 = vpop.f32.mrb[0].mxu0
    %1933 = vdwg.mxu0
    %1934 = vmatprep.subr.mxu0 0.0
    %1935 = vmatpush1.msra.mxu0 %v621
    %1936 = vmatprep.subr.mxu0 0.0
    %1937 = vmatpush1.msra.mxu0 %v622
    %1938 = vmatprep.subr.mxu0 0.0
    %1939 = vmatpush1.msra.mxu0 %v623
    %1940 = vmatprep.subr.mxu0 0.0
    %1941 = vmatpush1.msra.mxu0 %v624
    %1942 = vmatprep.subr.mxu0 0.0
    %1943 = vmatpush1.msra.mxu0 0.0
    %1944 = vmatprep.subr.mxu0 0.0
    %1945 = vmatpush1.msra.mxu0 0.0
    %1946 = vmatprep.subr.mxu0 0.0
    %1947 = vmatpush1.msra.mxu0 0.0
    %1948 = vmatprep.subr.mxu0 0.0
    %1949 = vmatpush1.msra.mxu0 0.0
    %1950 = vmatprep.subr.mxu0 0.0
    %1951 = vmatpush1.msra.mxu0 0.0
    %1952 = vmatprep.subr.mxu0 0.0
    %1953 = vmatpush1.msra.mxu0 0.0
    %1954 = vmatprep.subr.mxu0 0.0
    %1955 = vmatpush1.msra.mxu0 0.0
    %1956 = vmatprep.subr.mxu0 0.0
    %1957 = vmatpush1.msra.mxu0 0.0
    %1958 = vmatprep.subr.mxu0 0.0
    %1959 = vmatpush1.msra.mxu0 0.0
    %1960 = vmatprep.subr.mxu0 0.0
    %1961 = vmatpush1.msra.mxu0 0.0
    %1962 = vmatprep.subr.mxu0 0.0
    %1963 = vmatpush1.msra.mxu0 0.0
    %1964 = vmatprep.subr.mxu0 0.0
    %1965 = vmatpush1.msra.mxu0 0.0
    %1966 = vmatprep.subr.mxu0 0.0
    %1967 = vmatpush1.msra.mxu0 0.0
    %1968 = vmatprep.subr.mxu0 0.0
    %1969 = vmatpush1.msra.mxu0 0.0
    %1970 = vmatprep.subr.mxu0 0.0
    %1971 = vmatpush1.msra.mxu0 0.0
    %1972 = vmatprep.subr.mxu0 0.0
    %1973 = vmatpush1.msra.mxu0 0.0
    %1974 = vmatprep.subr.mxu0 0.0
    %1975 = vmatpush1.msra.mxu0 0.0
    %1976 = vmatprep.subr.mxu0 0.0
    %1977 = vmatpush1.msra.mxu0 0.0
    %1978 = vmatprep.subr.mxu0 0.0
    %1979 = vmatpush1.msra.mxu0 0.0
    %1980 = vmatprep.subr.mxu0 0.0
    %1981 = vmatpush1.msra.mxu0 0.0
    %1982 = vmatprep.subr.mxu0 0.0
    %1983 = vmatpush1.msra.mxu0 0.0
    %1984 = vmatprep.subr.mxu0 0.0
    %1985 = vmatpush1.msra.mxu0 0.0
    %1986 = vmatprep.subr.mxu0 0.0
    %1987 = vmatpush1.msra.mxu0 0.0
    %1988 = vmatprep.subr.mxu0 0.0
    %1989 = vmatpush1.msra.mxu0 0.0
    %1990 = vmatprep.subr.mxu0 0.0
    %1991 = vmatpush1.msra.mxu0 0.0
    %1992 = vmatprep.subr.mxu0 0.0
    %1993 = vmatpush1.msra.mxu0 0.0
    %1994 = vmatprep.subr.mxu0 0.0
    %1995 = vmatpush1.msra.mxu0 0.0
    %1996 = vmatprep.subr.mxu0 0.0
    %1997 = vmatpush1.msra.mxu0 0.0
    %1998 = vmatprep.mubr.f32.mxu0 0.0
    %1999 = vmatmul.mubr.f32.gmra.mrb[0].mxu0 %v1862
    %v2000 = vpop.f32.mrb[0].mxu0
    %v2001 = vadd.f32 0.0, %v2000
    %v2002 = vpop.f32.mrb[0].mxu0
    %2003 = vdwg.mxu0
    %2004 = vmatprep.subr.mxu0 0.0
    %2005 = vmatpush1.msra.mxu0 %v626
    %2006 = vmatprep.subr.mxu0 0.0
    %2007 = vmatpush1.msra.mxu0 %v627
    %2008 = vmatprep.subr.mxu0 0.0
    %2009 = vmatpush1.msra.mxu0 %v628
    %2010 = vmatprep.subr.mxu0 0.0
    %2011 = vmatpush1.msra.mxu0 %v629
    %2012 = vmatprep.subr.mxu0 0.0
    %2013 = vmatpush1.msra.mxu0 0.0
    %2014 = vmatprep.subr.mxu0 0.0
    %2015 = vmatpush1.msra.mxu0 0.0
    %2016 = vmatprep.subr.mxu0 0.0
    %2017 = vmatpush1.msra.mxu0 0.0
    %2018 = vmatprep.subr.mxu0 0.0
    %2019 = vmatpush1.msra.mxu0 0.0
    %2020 = vmatprep.subr.mxu0 0.0
    %2021 = vmatpush1.msra.mxu0 0.0
    %2022 = vmatprep.subr.mxu0 0.0
    %2023 = vmatpush1.msra.mxu0 0.0
    %2024 = vmatprep.subr.mxu0 0.0
    %2025 = vmatpush1.msra.mxu0 0.0
    %2026 = vmatprep.subr.mxu0 0.0
    %2027 = vmatpush1.msra.mxu0 0.0
    %2028 = vmatprep.subr.mxu0 0.0
    %2029 = vmatpush1.msra.mxu0 0.0
    %2030 = vmatprep.subr.mxu0 0.0
    %2031 = vmatpush1.msra.mxu0 0.0
    %2032 = vmatprep.subr.mxu0 0.0
    %2033 = vmatpush1.msra.mxu0 0.0
    %2034 = vmatprep.subr.mxu0 0.0
    %2035 = vmatpush1.msra.mxu0 0.0
    %2036 = vmatprep.subr.mxu0 0.0
    %2037 = vmatpush1.msra.mxu0 0.0
    %2038 = vmatprep.subr.mxu0 0.0
    %2039 = vmatpush1.msra.mxu0 0.0
    %2040 = vmatprep.subr.mxu0 0.0
    %2041 = vmatpush1.msra.mxu0 0.0
    %2042 = vmatprep.subr.mxu0 0.0
    %2043 = vmatpush1.msra.mxu0 0.0
    %2044 = vmatprep.subr.mxu0 0.0
    %2045 = vmatpush1.msra.mxu0 0.0
    %2046 = vmatprep.subr.mxu0 0.0
    %2047 = vmatpush1.msra.mxu0 0.0
    %2048 = vmatprep.subr.mxu0 0.0
    %2049 = vmatpush1.msra.mxu0 0.0
    %2050 = vmatprep.subr.mxu0 0.0
    %2051 = vmatpush1.msra.mxu0 0.0
    %2052 = vmatprep.subr.mxu0 0.0
    %2053 = vmatpush1.msra.mxu0 0.0
    %2054 = vmatprep.subr.mxu0 0.0
    %2055 = vmatpush1.msra.mxu0 0.0
    %2056 = vmatprep.subr.mxu0 0.0
    %2057 = vmatpush1.msra.mxu0 0.0
    %2058 = vmatprep.subr.mxu0 0.0
    %2059 = vmatpush1.msra.mxu0 0.0
    %2060 = vmatprep.subr.mxu0 0.0
    %2061 = vmatpush1.msra.mxu0 0.0
    %2062 = vmatprep.subr.mxu0 0.0
    %2063 = vmatpush1.msra.mxu0 0.0
    %2064 = vmatprep.subr.mxu0 0.0
    %2065 = vmatpush1.msra.mxu0 0.0
    %2066 = vmatprep.subr.mxu0 0.0
    %2067 = vmatpush1.msra.mxu0 0.0
    %2068 = vmatprep.mubr.f32.mxu0 0.0
    %2069 = vmatmul.mubr.f32.gmra.mrb[0].mxu0 %v1862
    %v2070 = vpop.f32.mrb[0].mxu0
    %v2071 = vadd.f32 %v779, %v2070
    %v2072 = vpop.f32.mrb[0].mxu0
    %2073 = vdwg.mxu0
    %s2074 = scalar_lea.vmem [#allocation2], 40
    %v2075 = vld [vmem:[%s2074] sm:$0xff]
    %v2076 = vadd.f32 %v2075, %v1931
    %v2077 = vxor.u32 %v2076, 2147483648
    %v2078 = vmul.f32 %v2077, 1.442695
    %v2079 = vpow.pop %v2078
    %v2080 = vadd.f32 %v2079, 1.0
    %v2081 = vrcp.pop %v2080
    %v2082 = vmul.f32 1.0, %v2081
    %s2083 = sadd.s32 40, 64
    %s2084 = scalar_lea.vmem [#allocation2], %s2083
    %v2085 = vld [vmem:[%s2084] sm:$0xff]
    %v2086 = vadd.f32 %v2085, %v2001
    %v2087 = vxor.u32 %v2086, 2147483648
    %v2088 = vmul.f32 %v2087, 1.442695
    %v2089 = vpow.pop %v2088
    %v2090 = vadd.f32 %v2089, 1.0
    %v2091 = vrcp.pop %v2090
    %v2092 = vmul.f32 1.0, %v2091
    %s2093 = sadd.s32 40, 128
    %s2094 = scalar_lea.vmem [#allocation2], %s2093
    %v2095 = vld [vmem:[%s2094] sm:$0xff]
    %v2096 = vmul.f32 %v2082, %v2071
    %v2097 = vadd.f32 %v2095, %v2096
    %v2098 = vtanh.pop %v2097
    %v2099 = vsub.f32 1.0, %v2092
    %v2100 = vmul.f32 %v2099, %v2098
    %v2101 = vmul.f32 %v2092, %v1857
    %v2102 = vadd.f32 %v2100, %v2101
    %v2103 = vmax.f32 %v2102, 0.0
    %s2104 = scalar_lea.vmem [#allocation3], 40
    %2105 = vst.msk [vmem:[%s2104] sm:$0xff] %vm224, %v2103
    %v2107 = vsel %vm224, %v2102, 0
    %2109 = vmatprep.subr.mxu0 0.0
    %2110 = vmatpush1.msra.mxu0 %v616
    %2111 = vmatprep.subr.mxu0 0.0
    %2112 = vmatpush1.msra.mxu0 %v617
    %2113 = vmatprep.subr.mxu0 0.0
    %2114 = vmatpush1.msra.mxu0 %v618
    %2115 = vmatprep.subr.mxu0 0.0
    %2116 = vmatpush1.msra.mxu0 %v619
    %2117 = vmatprep.subr.mxu0 0.0
    %2118 = vmatpush1.msra.mxu0 0.0
    %2119 = vmatprep.subr.mxu0 0.0
    %2120 = vmatpush1.msra.mxu0 0.0
    %2121 = vmatprep.subr.mxu0 0.0
    %2122 = vmatpush1.msra.mxu0 0.0
    %2123 = vmatprep.subr.mxu0 0.0
    %2124 = vmatpush1.msra.mxu0 0.0
    %2125 = vmatprep.subr.mxu0 0.0
    %2126 = vmatpush1.msra.mxu0 0.0
    %2127 = vmatprep.subr.mxu0 0.0
    %2128 = vmatpush1.msra.mxu0 0.0
    %2129 = vmatprep.subr.mxu0 0.0
    %2130 = vmatpush1.msra.mxu0 0.0
    %2131 = vmatprep.subr.mxu0 0.0
    %2132 = vmatpush1.msra.mxu0 0.0
    %2133 = vmatprep.subr.mxu0 0.0
    %2134 = vmatpush1.msra.mxu0 0.0
    %2135 = vmatprep.subr.mxu0 0.0
    %2136 = vmatpush1.msra.mxu0 0.0
    %2137 = vmatprep.subr.mxu0 0.0
    %2138 = vmatpush1.msra.mxu0 0.0
    %2139 = vmatprep.subr.mxu0 0.0
    %2140 = vmatpush1.msra.mxu0 0.0
    %2141 = vmatprep.subr.mxu0 0.0
    %2142 = vmatpush1.msra.mxu0 0.0
    %2143 = vmatprep.subr.mxu0 0.0
    %2144 = vmatpush1.msra.mxu0 0.0
    %2145 = vmatprep.subr.mxu0 0.0
    %2146 = vmatpush1.msra.mxu0 0.0
    %2147 = vmatprep.subr.mxu0 0.0
    %2148 = vmatpush1.msra.mxu0 0.0
    %2149 = vmatprep.subr.mxu0 0.0
    %2150 = vmatpush1.msra.mxu0 0.0
    %2151 = vmatprep.subr.mxu0 0.0
    %2152 = vmatpush1.msra.mxu0 0.0
    %2153 = vmatprep.subr.mxu0 0.0
    %2154 = vmatpush1.msra.mxu0 0.0
    %2155 = vmatprep.subr.mxu0 0.0
    %2156 = vmatpush1.msra.mxu0 0.0
    %2157 = vmatprep.subr.mxu0 0.0
    %2158 = vmatpush1.msra.mxu0 0.0
    %2159 = vmatprep.subr.mxu0 0.0
    %2160 = vmatpush1.msra.mxu0 0.0
    %2161 = vmatprep.subr.mxu0 0.0
    %2162 = vmatpush1.msra.mxu0 0.0
    %2163 = vmatprep.subr.mxu0 0.0
    %2164 = vmatpush1.msra.mxu0 0.0
    %2165 = vmatprep.subr.mxu0 0.0
    %2166 = vmatpush1.msra.mxu0 0.0
    %2167 = vmatprep.subr.mxu0 0.0
    %2168 = vmatpush1.msra.mxu0 0.0
    %2169 = vmatprep.subr.mxu0 0.0
    %2170 = vmatpush1.msra.mxu0 0.0
    %2171 = vmatprep.subr.mxu0 0.0
    %2172 = vmatpush1.msra.mxu0 0.0
    %2173 = vmatprep.mubr.f32.mxu0 0.0
    %2174 = vmatmul.mubr.f32.gmra.mrb[0].mxu0 %v2107
    %v2175 = vpop.f32.mrb[0].mxu0
    %v2176 = vadd.f32 0.0, %v2175
    %v2177 = vpop.f32.mrb[0].mxu0
    %2178 = vdwg.mxu0
    %2179 = vmatprep.subr.mxu0 0.0
    %2180 = vmatpush1.msra.mxu0 %v621
    %2181 = vmatprep.subr.mxu0 0.0
    %2182 = vmatpush1.msra.mxu0 %v622
    %2183 = vmatprep.subr.mxu0 0.0
    %2184 = vmatpush1.msra.mxu0 %v623
    %2185 = vmatprep.subr.mxu0 0.0
    %2186 = vmatpush1.msra.mxu0 %v624
    %2187 = vmatprep.subr.mxu0 0.0
    %2188 = vmatpush1.msra.mxu0 0.0
    %2189 = vmatprep.subr.mxu0 0.0
    %2190 = vmatpush1.msra.mxu0 0.0
    %2191 = vmatprep.subr.mxu0 0.0
    %2192 = vmatpush1.msra.mxu0 0.0
    %2193 = vmatprep.subr.mxu0 0.0
    %2194 = vmatpush1.msra.mxu0 0.0
    %2195 = vmatprep.subr.mxu0 0.0
    %2196 = vmatpush1.msra.mxu0 0.0
    %2197 = vmatprep.subr.mxu0 0.0
    %2198 = vmatpush1.msra.mxu0 0.0
    %2199 = vmatprep.subr.mxu0 0.0
    %2200 = vmatpush1.msra.mxu0 0.0
    %2201 = vmatprep.subr.mxu0 0.0
    %2202 = vmatpush1.msra.mxu0 0.0
    %2203 = vmatprep.subr.mxu0 0.0
    %2204 = vmatpush1.msra.mxu0 0.0
    %2205 = vmatprep.subr.mxu0 0.0
    %2206 = vmatpush1.msra.mxu0 0.0
    %2207 = vmatprep.subr.mxu0 0.0
    %2208 = vmatpush1.msra.mxu0 0.0
    %2209 = vmatprep.subr.mxu0 0.0
    %2210 = vmatpush1.msra.mxu0 0.0
    %2211 = vmatprep.subr.mxu0 0.0
    %2212 = vmatpush1.msra.mxu0 0.0
    %2213 = vmatprep.subr.mxu0 0.0
    %2214 = vmatpush1.msra.mxu0 0.0
    %2215 = vmatprep.subr.mxu0 0.0
    %2216 = vmatpush1.msra.mxu0 0.0
    %2217 = vmatprep.subr.mxu0 0.0
    %2218 = vmatpush1.msra.mxu0 0.0
    %2219 = vmatprep.subr.mxu0 0.0
    %2220 = vmatpush1.msra.mxu0 0.0
    %2221 = vmatprep.subr.mxu0 0.0
    %2222 = vmatpush1.msra.mxu0 0.0
    %2223 = vmatprep.subr.mxu0 0.0
    %2224 = vmatpush1.msra.mxu0 0.0
    %2225 = vmatprep.subr.mxu0 0.0
    %2226 = vmatpush1.msra.mxu0 0.0
    %2227 = vmatprep.subr.mxu0 0.0
    %2228 = vmatpush1.msra.mxu0 0.0
    %2229 = vmatprep.subr.mxu0 0.0
    %2230 = vmatpush1.msra.mxu0 0.0
    %2231 = vmatprep.subr.mxu0 0.0
    %2232 = vmatpush1.msra.mxu0 0.0
    %2233 = vmatprep.subr.mxu0 0.0
    %2234 = vmatpush1.msra.mxu0 0.0
    %2235 = vmatprep.subr.mxu0 0.0
    %2236 = vmatpush1.msra.mxu0 0.0
    %2237 = vmatprep.subr.mxu0 0.0
    %2238 = vmatpush1.msra.mxu0 0.0
    %2239 = vmatprep.subr.mxu0 0.0
    %2240 = vmatpush1.msra.mxu0 0.0
    %2241 = vmatprep.subr.mxu0 0.0
    %2242 = vmatpush1.msra.mxu0 0.0
    %2243 = vmatprep.mubr.f32.mxu0 0.0
    %2244 = vmatmul.mubr.f32.gmra.mrb[0].mxu0 %v2107
    %v2245 = vpop.f32.mrb[0].mxu0
    %v2246 = vadd.f32 0.0, %v2245
    %v2247 = vpop.f32.mrb[0].mxu0
    %2248 = vdwg.mxu0
    %2249 = vmatprep.subr.mxu0 0.0
    %2250 = vmatpush1.msra.mxu0 %v626
    %2251 = vmatprep.subr.mxu0 0.0
    %2252 = vmatpush1.msra.mxu0 %v627
    %2253 = vmatprep.subr.mxu0 0.0
    %2254 = vmatpush1.msra.mxu0 %v628
    %2255 = vmatprep.subr.mxu0 0.0
    %2256 = vmatpush1.msra.mxu0 %v629
    %2257 = vmatprep.subr.mxu0 0.0
    %2258 = vmatpush1.msra.mxu0 0.0
    %2259 = vmatprep.subr.mxu0 0.0
    %2260 = vmatpush1.msra.mxu0 0.0
    %2261 = vmatprep.subr.mxu0 0.0
    %2262 = vmatpush1.msra.mxu0 0.0
    %2263 = vmatprep.subr.mxu0 0.0
    %2264 = vmatpush1.msra.mxu0 0.0
    %2265 = vmatprep.subr.mxu0 0.0
    %2266 = vmatpush1.msra.mxu0 0.0
    %2267 = vmatprep.subr.mxu0 0.0
    %2268 = vmatpush1.msra.mxu0 0.0
    %2269 = vmatprep.subr.mxu0 0.0
    %2270 = vmatpush1.msra.mxu0 0.0
    %2271 = vmatprep.subr.mxu0 0.0
    %2272 = vmatpush1.msra.mxu0 0.0
    %2273 = vmatprep.subr.mxu0 0.0
    %2274 = vmatpush1.msra.mxu0 0.0
    %2275 = vmatprep.subr.mxu0 0.0
    %2276 = vmatpush1.msra.mxu0 0.0
    %2277 = vmatprep.subr.mxu0 0.0
    %2278 = vmatpush1.msra.mxu0 0.0
    %2279 = vmatprep.subr.mxu0 0.0
    %2280 = vmatpush1.msra.mxu0 0.0
    %2281 = vmatprep.subr.mxu0 0.0
    %2282 = vmatpush1.msra.mxu0 0.0
    %2283 = vmatprep.subr.mxu0 0.0
    %2284 = vmatpush1.msra.mxu0 0.0
    %2285 = vmatprep.subr.mxu0 0.0
    %2286 = vmatpush1.msra.mxu0 0.0
    %2287 = vmatprep.subr.mxu0 0.0
    %2288 = vmatpush1.msra.mxu0 0.0
    %2289 = vmatprep.subr.mxu0 0.0
    %2290 = vmatpush1.msra.mxu0 0.0
    %2291 = vmatprep.subr.mxu0 0.0
    %2292 = vmatpush1.msra.mxu0 0.0
    %2293 = vmatprep.subr.mxu0 0.0
    %2294 = vmatpush1.msra.mxu0 0.0
    %2295 = vmatprep.subr.mxu0 0.0
    %2296 = vmatpush1.msra.mxu0 0.0
    %2297 = vmatprep.subr.mxu0 0.0
    %2298 = vmatpush1.msra.mxu0 0.0
    %2299 = vmatprep.subr.mxu0 0.0
    %2300 = vmatpush1.msra.mxu0 0.0
    %2301 = vmatprep.subr.mxu0 0.0
    %2302 = vmatpush1.msra.mxu0 0.0
    %2303 = vmatprep.subr.mxu0 0.0
    %2304 = vmatpush1.msra.mxu0 0.0
    %2305 = vmatprep.subr.mxu0 0.0
    %2306 = vmatpush1.msra.mxu0 0.0
    %2307 = vmatprep.subr.mxu0 0.0
    %2308 = vmatpush1.msra.mxu0 0.0
    %2309 = vmatprep.subr.mxu0 0.0
    %2310 = vmatpush1.msra.mxu0 0.0
    %2311 = vmatprep.subr.mxu0 0.0
    %2312 = vmatpush1.msra.mxu0 0.0
    %2313 = vmatprep.mubr.f32.mxu0 0.0
    %2314 = vmatmul.mubr.f32.gmra.mrb[0].mxu0 %v2107
    %v2315 = vpop.f32.mrb[0].mxu0
    %v2316 = vadd.f32 %v779, %v2315
    %v2317 = vpop.f32.mrb[0].mxu0
    %2318 = vdwg.mxu0
    %s2319 = scalar_lea.vmem [#allocation2], 48
    %v2320 = vld [vmem:[%s2319] sm:$0xff]
    %v2321 = vadd.f32 %v2320, %v2176
    %v2322 = vxor.u32 %v2321, 2147483648
    %v2323 = vmul.f32 %v2322, 1.442695
    %v2324 = vpow.pop %v2323
    %v2325 = vadd.f32 %v2324, 1.0
    %v2326 = vrcp.pop %v2325
    %v2327 = vmul.f32 1.0, %v2326
    %s2328 = sadd.s32 48, 64
    %s2329 = scalar_lea.vmem [#allocation2], %s2328
    %v2330 = vld [vmem:[%s2329] sm:$0xff]
    %v2331 = vadd.f32 %v2330, %v2246
    %v2332 = vxor.u32 %v2331, 2147483648
    %v2333 = vmul.f32 %v2332, 1.442695
    %v2334 = vpow.pop %v2333
    %v2335 = vadd.f32 %v2334, 1.0
    %v2336 = vrcp.pop %v2335
    %v2337 = vmul.f32 1.0, %v2336
    %s2338 = sadd.s32 48, 128
    %s2339 = scalar_lea.vmem [#allocation2], %s2338
    %v2340 = vld [vmem:[%s2339] sm:$0xff]
    %v2341 = vmul.f32 %v2327, %v2316
    %v2342 = vadd.f32 %v2340, %v2341
    %v2343 = vtanh.pop %v2342
    %v2344 = vsub.f32 1.0, %v2337
    %v2345 = vmul.f32 %v2344, %v2343
    %v2346 = vmul.f32 %v2337, %v2102
    %v2347 = vadd.f32 %v2345, %v2346
    %v2348 = vmax.f32 %v2347, 0.0
    %s2349 = scalar_lea.vmem [#allocation3], 48
    %2350 = vst.msk [vmem:[%s2349] sm:$0xff] %vm224, %v2348
    %v2352 = vsel %vm224, %v2347, 0
    %2354 = vmatprep.subr.mxu0 0.0
    %2355 = vmatpush1.msra.mxu0 %v616
    %2356 = vmatprep.subr.mxu0 0.0
    %2357 = vmatpush1.msra.mxu0 %v617
    %2358 = vmatprep.subr.mxu0 0.0
    %2359 = vmatpush1.msra.mxu0 %v618
    %2360 = vmatprep.subr.mxu0 0.0
    %2361 = vmatpush1.msra.mxu0 %v619
    %2362 = vmatprep.subr.mxu0 0.0
    %2363 = vmatpush1.msra.mxu0 0.0
    %2364 = vmatprep.subr.mxu0 0.0
    %2365 = vmatpush1.msra.mxu0 0.0
    %2366 = vmatprep.subr.mxu0 0.0
    %2367 = vmatpush1.msra.mxu0 0.0
    %2368 = vmatprep.subr.mxu0 0.0
    %2369 = vmatpush1.msra.mxu0 0.0
    %2370 = vmatprep.subr.mxu0 0.0
    %2371 = vmatpush1.msra.mxu0 0.0
    %2372 = vmatprep.subr.mxu0 0.0
    %2373 = vmatpush1.msra.mxu0 0.0
    %2374 = vmatprep.subr.mxu0 0.0
    %2375 = vmatpush1.msra.mxu0 0.0
    %2376 = vmatprep.subr.mxu0 0.0
    %2377 = vmatpush1.msra.mxu0 0.0
    %2378 = vmatprep.subr.mxu0 0.0
    %2379 = vmatpush1.msra.mxu0 0.0
    %2380 = vmatprep.subr.mxu0 0.0
    %2381 = vmatpush1.msra.mxu0 0.0
    %2382 = vmatprep.subr.mxu0 0.0
    %2383 = vmatpush1.msra.mxu0 0.0
    %2384 = vmatprep.subr.mxu0 0.0
    %2385 = vmatpush1.msra.mxu0 0.0
    %2386 = vmatprep.subr.mxu0 0.0
    %2387 = vmatpush1.msra.mxu0 0.0
    %2388 = vmatprep.subr.mxu0 0.0
    %2389 = vmatpush1.msra.mxu0 0.0
    %2390 = vmatprep.subr.mxu0 0.0
    %2391 = vmatpush1.msra.mxu0 0.0
    %2392 = vmatprep.subr.mxu0 0.0
    %2393 = vmatpush1.msra.mxu0 0.0
    %2394 = vmatprep.subr.mxu0 0.0
    %2395 = vmatpush1.msra.mxu0 0.0
    %2396 = vmatprep.subr.mxu0 0.0
    %2397 = vmatpush1.msra.mxu0 0.0
    %2398 = vmatprep.subr.mxu0 0.0
    %2399 = vmatpush1.msra.mxu0 0.0
    %2400 = vmatprep.subr.mxu0 0.0
    %2401 = vmatpush1.msra.mxu0 0.0
    %2402 = vmatprep.subr.mxu0 0.0
    %2403 = vmatpush1.msra.mxu0 0.0
    %2404 = vmatprep.subr.mxu0 0.0
    %2405 = vmatpush1.msra.mxu0 0.0
    %2406 = vmatprep.subr.mxu0 0.0
    %2407 = vmatpush1.msra.mxu0 0.0
    %2408 = vmatprep.subr.mxu0 0.0
    %2409 = vmatpush1.msra.mxu0 0.0
    %2410 = vmatprep.subr.mxu0 0.0
    %2411 = vmatpush1.msra.mxu0 0.0
    %2412 = vmatprep.subr.mxu0 0.0
    %2413 = vmatpush1.msra.mxu0 0.0
    %2414 = vmatprep.subr.mxu0 0.0
    %2415 = vmatpush1.msra.mxu0 0.0
    %2416 = vmatprep.subr.mxu0 0.0
    %2417 = vmatpush1.msra.mxu0 0.0
    %2418 = vmatprep.mubr.f32.mxu0 0.0
    %2419 = vmatmul.mubr.f32.gmra.mrb[0].mxu0 %v2352
    %v2420 = vpop.f32.mrb[0].mxu0
    %v2421 = vadd.f32 0.0, %v2420
    %v2422 = vpop.f32.mrb[0].mxu0
    %2423 = vdwg.mxu0
    %2424 = vmatprep.subr.mxu0 0.0
    %2425 = vmatpush1.msra.mxu0 %v621
    %2426 = vmatprep.subr.mxu0 0.0
    %2427 = vmatpush1.msra.mxu0 %v622
    %2428 = vmatprep.subr.mxu0 0.0
    %2429 = vmatpush1.msra.mxu0 %v623
    %2430 = vmatprep.subr.mxu0 0.0
    %2431 = vmatpush1.msra.mxu0 %v624
    %2432 = vmatprep.subr.mxu0 0.0
    %2433 = vmatpush1.msra.mxu0 0.0
    %2434 = vmatprep.subr.mxu0 0.0
    %2435 = vmatpush1.msra.mxu0 0.0
    %2436 = vmatprep.subr.mxu0 0.0
    %2437 = vmatpush1.msra.mxu0 0.0
    %2438 = vmatprep.subr.mxu0 0.0
    %2439 = vmatpush1.msra.mxu0 0.0
    %2440 = vmatprep.subr.mxu0 0.0
    %2441 = vmatpush1.msra.mxu0 0.0
    %2442 = vmatprep.subr.mxu0 0.0
    %2443 = vmatpush1.msra.mxu0 0.0
    %2444 = vmatprep.subr.mxu0 0.0
    %2445 = vmatpush1.msra.mxu0 0.0
    %2446 = vmatprep.subr.mxu0 0.0
    %2447 = vmatpush1.msra.mxu0 0.0
    %2448 = vmatprep.subr.mxu0 0.0
    %2449 = vmatpush1.msra.mxu0 0.0
    %2450 = vmatprep.subr.mxu0 0.0
    %2451 = vmatpush1.msra.mxu0 0.0
    %2452 = vmatprep.subr.mxu0 0.0
    %2453 = vmatpush1.msra.mxu0 0.0
    %2454 = vmatprep.subr.mxu0 0.0
    %2455 = vmatpush1.msra.mxu0 0.0
    %2456 = vmatprep.subr.mxu0 0.0
    %2457 = vmatpush1.msra.mxu0 0.0
    %2458 = vmatprep.subr.mxu0 0.0
    %2459 = vmatpush1.msra.mxu0 0.0
    %2460 = vmatprep.subr.mxu0 0.0
    %2461 = vmatpush1.msra.mxu0 0.0
    %2462 = vmatprep.subr.mxu0 0.0
    %2463 = vmatpush1.msra.mxu0 0.0
    %2464 = vmatprep.subr.mxu0 0.0
    %2465 = vmatpush1.msra.mxu0 0.0
    %2466 = vmatprep.subr.mxu0 0.0
    %2467 = vmatpush1.msra.mxu0 0.0
    %2468 = vmatprep.subr.mxu0 0.0
    %2469 = vmatpush1.msra.mxu0 0.0
    %2470 = vmatprep.subr.mxu0 0.0
    %2471 = vmatpush1.msra.mxu0 0.0
    %2472 = vmatprep.subr.mxu0 0.0
    %2473 = vmatpush1.msra.mxu0 0.0
    %2474 = vmatprep.subr.mxu0 0.0
    %2475 = vmatpush1.msra.mxu0 0.0
    %2476 = vmatprep.subr.mxu0 0.0
    %2477 = vmatpush1.msra.mxu0 0.0
    %2478 = vmatprep.subr.mxu0 0.0
    %2479 = vmatpush1.msra.mxu0 0.0
    %2480 = vmatprep.subr.mxu0 0.0
    %2481 = vmatpush1.msra.mxu0 0.0
    %2482 = vmatprep.subr.mxu0 0.0
    %2483 = vmatpush1.msra.mxu0 0.0
    %2484 = vmatprep.subr.mxu0 0.0
    %2485 = vmatpush1.msra.mxu0 0.0
    %2486 = vmatprep.subr.mxu0 0.0
    %2487 = vmatpush1.msra.mxu0 0.0
    %2488 = vmatprep.mubr.f32.mxu0 0.0
    %2489 = vmatmul.mubr.f32.gmra.mrb[0].mxu0 %v2352
    %v2490 = vpop.f32.mrb[0].mxu0
    %v2491 = vadd.f32 0.0, %v2490
    %v2492 = vpop.f32.mrb[0].mxu0
    %2493 = vdwg.mxu0
    %2494 = vmatprep.subr.mxu0 0.0
    %2495 = vmatpush1.msra.mxu0 %v626
    %2496 = vmatprep.subr.mxu0 0.0
    %2497 = vmatpush1.msra.mxu0 %v627
    %2498 = vmatprep.subr.mxu0 0.0
    %2499 = vmatpush1.msra.mxu0 %v628
    %2500 = vmatprep.subr.mxu0 0.0
    %2501 = vmatpush1.msra.mxu0 %v629
    %2502 = vmatprep.subr.mxu0 0.0
    %2503 = vmatpush1.msra.mxu0 0.0
    %2504 = vmatprep.subr.mxu0 0.0
    %2505 = vmatpush1.msra.mxu0 0.0
    %2506 = vmatprep.subr.mxu0 0.0
    %2507 = vmatpush1.msra.mxu0 0.0
    %2508 = vmatprep.subr.mxu0 0.0
    %2509 = vmatpush1.msra.mxu0 0.0
    %2510 = vmatprep.subr.mxu0 0.0
    %2511 = vmatpush1.msra.mxu0 0.0
    %2512 = vmatprep.subr.mxu0 0.0
    %2513 = vmatpush1.msra.mxu0 0.0
    %2514 = vmatprep.subr.mxu0 0.0
    %2515 = vmatpush1.msra.mxu0 0.0
    %2516 = vmatprep.subr.mxu0 0.0
    %2517 = vmatpush1.msra.mxu0 0.0
    %2518 = vmatprep.subr.mxu0 0.0
    %2519 = vmatpush1.msra.mxu0 0.0
    %2520 = vmatprep.subr.mxu0 0.0
    %2521 = vmatpush1.msra.mxu0 0.0
    %2522 = vmatprep.subr.mxu0 0.0
    %2523 = vmatpush1.msra.mxu0 0.0
    %2524 = vmatprep.subr.mxu0 0.0
    %2525 = vmatpush1.msra.mxu0 0.0
    %2526 = vmatprep.subr.mxu0 0.0
    %2527 = vmatpush1.msra.mxu0 0.0
    %2528 = vmatprep.subr.mxu0 0.0
    %2529 = vmatpush1.msra.mxu0 0.0
    %2530 = vmatprep.subr.mxu0 0.0
    %2531 = vmatpush1.msra.mxu0 0.0
    %2532 = vmatprep.subr.mxu0 0.0
    %2533 = vmatpush1.msra.mxu0 0.0
    %2534 = vmatprep.subr.mxu0 0.0
    %2535 = vmatpush1.msra.mxu0 0.0
    %2536 = vmatprep.subr.mxu0 0.0
    %2537 = vmatpush1.msra.mxu0 0.0
    %2538 = vmatprep.subr.mxu0 0.0
    %2539 = vmatpush1.msra.mxu0 0.0
    %2540 = vmatprep.subr.mxu0 0.0
    %2541 = vmatpush1.msra.mxu0 0.0
    %2542 = vmatprep.subr.mxu0 0.0
    %2543 = vmatpush1.msra.mxu0 0.0
    %2544 = vmatprep.subr.mxu0 0.0
    %2545 = vmatpush1.msra.mxu0 0.0
    %2546 = vmatprep.subr.mxu0 0.0
    %2547 = vmatpush1.msra.mxu0 0.0
    %2548 = vmatprep.subr.mxu0 0.0
    %2549 = vmatpush1.msra.mxu0 0.0
    %2550 = vmatprep.subr.mxu0 0.0
    %2551 = vmatpush1.msra.mxu0 0.0
    %2552 = vmatprep.subr.mxu0 0.0
    %2553 = vmatpush1.msra.mxu0 0.0
    %2554 = vmatprep.subr.mxu0 0.0
    %2555 = vmatpush1.msra.mxu0 0.0
    %2556 = vmatprep.subr.mxu0 0.0
    %2557 = vmatpush1.msra.mxu0 0.0
    %2558 = vmatprep.mubr.f32.mxu0 0.0
    %2559 = vmatmul.mubr.f32.gmra.mrb[0].mxu0 %v2352
    %v2560 = vpop.f32.mrb[0].mxu0
    %v2561 = vadd.f32 %v779, %v2560
    %v2562 = vpop.f32.mrb[0].mxu0
    %2563 = vdwg.mxu0
    %s2564 = scalar_lea.vmem [#allocation2], 56
    %v2565 = vld [vmem:[%s2564] sm:$0xff]
    %v2566 = vadd.f32 %v2565, %v2421
    %v2567 = vxor.u32 %v2566, 2147483648
    %v2568 = vmul.f32 %v2567, 1.442695
    %v2569 = vpow.pop %v2568
    %v2570 = vadd.f32 %v2569, 1.0
    %v2571 = vrcp.pop %v2570
    %v2572 = vmul.f32 1.0, %v2571
    %s2573 = sadd.s32 56, 64
    %s2574 = scalar_lea.vmem [#allocation2], %s2573
    %v2575 = vld [vmem:[%s2574] sm:$0xff]
    %v2576 = vadd.f32 %v2575, %v2491
    %v2577 = vxor.u32 %v2576, 2147483648
    %v2578 = vmul.f32 %v2577, 1.442695
    %v2579 = vpow.pop %v2578
    %v2580 = vadd.f32 %v2579, 1.0
    %v2581 = vrcp.pop %v2580
    %v2582 = vmul.f32 1.0, %v2581
    %s2583 = sadd.s32 56, 128
    %s2584 = scalar_lea.vmem [#allocation2], %s2583
    %v2585 = vld [vmem:[%s2584] sm:$0xff]
    %v2586 = vmul.f32 %v2572, %v2561
    %v2587 = vadd.f32 %v2585, %v2586
    %v2588 = vtanh.pop %v2587
    %v2589 = vsub.f32 1.0, %v2582
    %v2590 = vmul.f32 %v2589, %v2588
    %v2591 = vmul.f32 %v2582, %v2347
    %v2592 = vadd.f32 %v2590, %v2591
    %v2593 = vmax.f32 %v2592, 0.0
    %s2594 = scalar_lea.vmem [#allocation3], 56
    %2595 = vst.msk [vmem:[%s2594] sm:$0xff] %vm224, %v2593
    %v2596 = vld [vmem:[#allocation3] sm:$0xff]
    %v2597 = vld [vmem:[#allocation3 + $0x8] sm:$0xff]
    %v2598 = vld [vmem:[#allocation3 + $0x10] sm:$0xff]
    %v2599 = vld [vmem:[#allocation3 + $0x18] sm:$0xff]
    %v2600 = vld [vmem:[#allocation3 + $0x20] sm:$0xff]
    %v2601 = vld [vmem:[#allocation3 + $0x28] sm:$0xff]
    %v2602 = vld [vmem:[#allocation3 + $0x30] sm:$0xff]
    %v2603 = vld [vmem:[#allocation3 + $0x38] sm:$0xff]
    %v2604 = vld [vmem:[%s6] sm:$0xff]
    %v2605 = vld [vmem:[%s6 + $0x8] sm:$0xff]
    %v2606 = vld [vmem:[%s6 + $0x10] sm:$0xff]
    %v2607 = vld [vmem:[%s6 + $0x18] sm:$0xff]
    %v2608 = vld [vmem:[%s7] sm:$0x1]
    %v2610 = vlaneseq
    %v2611 = vshrl.u32 %v2610, 7
    %v2612 = vsub.s32 0, %v2611
    %v2613 = vrot.slane %v2608, %v2612
    %v2616 = vsel %vm224, %v2596, 0
    %v2619 = vsel %vm224, %v2597, 0
    %v2622 = vsel %vm224, %v2598, 0
    %v2625 = vsel %vm224, %v2599, 0
    %v2628 = vsel %vm224, %v2600, 0
    %v2631 = vsel %vm224, %v2601, 0
    %v2634 = vsel %vm224, %v2602, 0
    %v2637 = vsel %vm224, %v2603, 0
    %2639 = vmatprep.subr.mxu0 0.0
    %2640 = vmatpush1.msra.mxu0 %v2604
    %2641 = vmatprep.subr.mxu0 0.0
    %2642 = vmatpush1.msra.mxu0 %v2605
    %2643 = vmatprep.subr.mxu0 0.0
    %2644 = vmatpush1.msra.mxu0 %v2606
    %2645 = vmatprep.subr.mxu0 0.0
    %2646 = vmatpush1.msra.mxu0 %v2607
    %2647 = vmatprep.subr.mxu0 0.0
    %2648 = vmatpush1.msra.mxu0 0.0
    %2649 = vmatprep.subr.mxu0 0.0
    %2650 = vmatpush1.msra.mxu0 0.0
    %2651 = vmatprep.subr.mxu0 0.0
    %2652 = vmatpush1.msra.mxu0 0.0
    %2653 = vmatprep.subr.mxu0 0.0
    %2654 = vmatpush1.msra.mxu0 0.0
    %2655 = vmatprep.subr.mxu0 0.0
    %2656 = vmatpush1.msra.mxu0 0.0
    %2657 = vmatprep.subr.mxu0 0.0
    %2658 = vmatpush1.msra.mxu0 0.0
    %2659 = vmatprep.subr.mxu0 0.0
    %2660 = vmatpush1.msra.mxu0 0.0
    %2661 = vmatprep.subr.mxu0 0.0
    %2662 = vmatpush1.msra.mxu0 0.0
    %2663 = vmatprep.subr.mxu0 0.0
    %2664 = vmatpush1.msra.mxu0 0.0
    %2665 = vmatprep.subr.mxu0 0.0
    %2666 = vmatpush1.msra.mxu0 0.0
    %2667 = vmatprep.subr.mxu0 0.0
    %2668 = vmatpush1.msra.mxu0 0.0
    %2669 = vmatprep.subr.mxu0 0.0
    %2670 = vmatpush1.msra.mxu0 0.0
    %2671 = vmatprep.subr.mxu0 0.0
    %2672 = vmatpush1.msra.mxu0 0.0
    %2673 = vmatprep.subr.mxu0 0.0
    %2674 = vmatpush1.msra.mxu0 0.0
    %2675 = vmatprep.subr.mxu0 0.0
    %2676 = vmatpush1.msra.mxu0 0.0
    %2677 = vmatprep.subr.mxu0 0.0
    %2678 = vmatpush1.msra.mxu0 0.0
    %2679 = vmatprep.subr.mxu0 0.0
    %2680 = vmatpush1.msra.mxu0 0.0
    %2681 = vmatprep.subr.mxu0 0.0
    %2682 = vmatpush1.msra.mxu0 0.0
    %2683 = vmatprep.subr.mxu0 0.0
    %2684 = vmatpush1.msra.mxu0 0.0
    %2685 = vmatprep.subr.mxu0 0.0
    %2686 = vmatpush1.msra.mxu0 0.0
    %2687 = vmatprep.subr.mxu0 0.0
    %2688 = vmatpush1.msra.mxu0 0.0
    %2689 = vmatprep.subr.mxu0 0.0
    %2690 = vmatpush1.msra.mxu0 0.0
    %2691 = vmatprep.subr.mxu0 0.0
    %2692 = vmatpush1.msra.mxu0 0.0
    %2693 = vmatprep.subr.mxu0 0.0
    %2694 = vmatpush1.msra.mxu0 0.0
    %2695 = vmatprep.subr.mxu0 0.0
    %2696 = vmatpush1.msra.mxu0 0.0
    %2697 = vmatprep.subr.mxu0 0.0
    %2698 = vmatpush1.msra.mxu0 0.0
    %2699 = vmatprep.subr.mxu0 0.0
    %2700 = vmatpush1.msra.mxu0 0.0
    %2701 = vmatprep.subr.mxu0 0.0
    %2702 = vmatpush1.msra.mxu0 0.0
    %2703 = vmatprep.mubr.f32.mxu0 0.0
    %2704 = vmatmul.mubr.f32.gmra.mrb[0].mxu0 %v2616
    %v2705 = vpop.f32.mrb[0].mxu0
    %v2706 = vadd.f32 %v2613, %v2705
    %v2707 = vpop.f32.mrb[0].mxu0
    %2708 = vmatprep.mubr.f32.mxu0 0.0
    %2709 = vmatmul.mubr.f32.gmra.mrb[0].mxu0 %v2619
    %v2710 = vpop.f32.mrb[0].mxu0
    %v2711 = vadd.f32 %v2613, %v2710
    %v2712 = vpop.f32.mrb[0].mxu0
    %2713 = vmatprep.mubr.f32.mxu0 0.0
    %2714 = vmatmul.mubr.f32.gmra.mrb[0].mxu0 %v2622
    %v2715 = vpop.f32.mrb[0].mxu0
    %v2716 = vadd.f32 %v2613, %v2715
    %v2717 = vpop.f32.mrb[0].mxu0
    %2718 = vmatprep.mubr.f32.mxu0 0.0
    %2719 = vmatmul.mubr.f32.gmra.mrb[0].mxu0 %v2625
    %v2720 = vpop.f32.mrb[0].mxu0
    %v2721 = vadd.f32 %v2613, %v2720
    %v2722 = vpop.f32.mrb[0].mxu0
    %2723 = vmatprep.mubr.f32.mxu0 0.0
    %2724 = vmatmul.mubr.f32.gmra.mrb[0].mxu0 %v2628
    %v2725 = vpop.f32.mrb[0].mxu0
    %v2726 = vadd.f32 %v2613, %v2725
    %v2727 = vpop.f32.mrb[0].mxu0
    %2728 = vmatprep.mubr.f32.mxu0 0.0
    %2729 = vmatmul.mubr.f32.gmra.mrb[0].mxu0 %v2631
    %v2730 = vpop.f32.mrb[0].mxu0
    %v2731 = vadd.f32 %v2613, %v2730
    %v2732 = vpop.f32.mrb[0].mxu0
    %2733 = vmatprep.mubr.f32.mxu0 0.0
    %2734 = vmatmul.mubr.f32.gmra.mrb[0].mxu0 %v2634
    %v2735 = vpop.f32.mrb[0].mxu0
    %v2736 = vadd.f32 %v2613, %v2735
    %v2737 = vpop.f32.mrb[0].mxu0
    %2738 = vmatprep.mubr.f32.mxu0 0.0
    %2739 = vmatmul.mubr.f32.gmra.mrb[0].mxu0 %v2637
    %v2740 = vpop.f32.mrb[0].mxu0
    %v2741 = vadd.f32 %v2613, %v2740
    %v2742 = vpop.f32.mrb[0].mxu0
    %2743 = vdwg.mxu0
    %2744 = vst [vmem:[#allocation9] sm:$0xff] %v2706
    %2745 = vst [vmem:[#allocation9 + $0x8] sm:$0xff] %v2711
    %2746 = vst [vmem:[#allocation9 + $0x10] sm:$0xff] %v2716
    %2747 = vst [vmem:[#allocation9 + $0x18] sm:$0xff] %v2721
    %2748 = vst [vmem:[#allocation9 + $0x20] sm:$0xff] %v2726
    %2749 = vst [vmem:[#allocation9 + $0x28] sm:$0xff] %v2731
    %2750 = vst [vmem:[#allocation9 + $0x30] sm:$0xff] %v2736
    %2751 = vst [vmem:[#allocation9 + $0x38] sm:$0xff] %v2741
    // Predicated region
    $region42: #{tpu_custom_call.1} parent=1 // pred_check
      _
    $region43: #{tpu_custom_call.1} parent=1 // pred_check_branch
      %2753 = sbr.rel (0) target = $region45
    $region44: #{tpu_custom_call.1} parent=1 // pred_region
      %s2755 = ssub.s32 1024, 1024
      %2756 = vsyncadd [#allocation6], %s2755
      %s2757 = sshll.u32 [#allocation9], 4
      %s2758 = int_to_ptr.vmem [resolvable:$true] %s2757
      %2763 = dma.vmem_to_hbm [thread:$0]  %s2758, 1024, %s8, [#allocation6], 128, 128, 8
    $region45: #{tpu_custom_call.1} parent=1 // pred_fallthru
      _
    // Predicated region
    $region46: #{tpu_custom_call.1} parent=1 // pred_check
      _
    $region47: #{tpu_custom_call.1} parent=1 // pred_check_branch
      %2765 = sbr.rel (0) target = $region49
    $region48: #{tpu_custom_call.1} parent=1 // pred_region
      %2766 = dma.done [#allocation6], 1024
    $region49: #{tpu_custom_call.1} parent=1 // pred_fallthru
      _
    %2767 = vsyncpa [#allocation5], 1
    %2768 = vsyncpa [#allocation8], 1
    %2769 = vsyncpa [#allocation6], 1

</llo_original>
